<compile_context>
chip_gen: v7x
topology: tpu7x:2x2x1
jax: 0.10.0
libtpu: 0.0.40
codegen_flags: <defaults>
</compile_context>

<pallas_src>
import math

import jax
import jax.numpy as jnp
from jax.experimental import pallas as pl
from jax.experimental.pallas import tpu as pltpu

INPUT_SIZE = 784   # 28 * 28
INPUT_PAD = 896    # 7 * 128 -- lane-dense padding of the feature dimension
H1 = 512
H2 = 256
LATENT = 128


def _round_up(x, m):
    return ((x + m - 1) // m) * m


def _autoencoder_kernel(x_ref, w1_ref, w2_ref, w34_ref, w5_ref, w6_ref,
                        out_ref):
    # Entire forward pass fused: 5 chained MXU matmuls (bf16 operands, f32
    # accumulation) + ReLU / Sigmoid in f32, all resident in VMEM.
    bf16 = jnp.bfloat16
    x = x_ref[...].astype(bf16)

    # Encoder
    h = jnp.dot(x, w1_ref[...], preferred_element_type=jnp.float32)
    h = jnp.maximum(h, 0.0)
    h = jnp.dot(h.astype(bf16), w2_ref[...], preferred_element_type=jnp.float32)
    h = jnp.maximum(h, 0.0)

    # Latent + first decoder linear, fused:
    #   z = h @ W3 (no activation on z), d = z @ W4  ==>  d = h @ (W3 @ W4)
    h = jnp.dot(h.astype(bf16), w34_ref[...], preferred_element_type=jnp.float32)
    h = jnp.maximum(h, 0.0)

    # Decoder tail
    h = jnp.dot(h.astype(bf16), w5_ref[...], preferred_element_type=jnp.float32)
    h = jnp.maximum(h, 0.0)
    y = jnp.dot(h.astype(bf16), w6_ref[...], preferred_element_type=jnp.float32)

    # Sigmoid: exp and approx reciprocal both go to the EUP slot (frees VALU).
    out_ref[...] = pl.reciprocal(1.0 + jnp.exp(-y), approx=True)


def _choose_tiling(batch, batch_tile):
    """Pick (tile_rows, padded_batch, n_grid_steps).

    * >= 2 grid steps whenever the batch permits, so the "parallel" batch axis
      actually shards across v7x's two TensorCores (no-op on v5e/v6e).
    * tile rounded up to the 8-row sublane granule.
    * batch pad waste bounded to < 8 * n_steps rows.
    """
    n_steps = pl.cdiv(batch, batch_tile)
    if batch > 8:
        n_steps = max(n_steps, 2)
    tile = _round_up(pl.cdiv(batch, n_steps), 8)
    return tile, tile * n_steps, n_steps


def autoencoder_forward(x_nchw, kernel_weights, *, batch_tile=512,
                        vmem_limit_bytes=40 << 20):
    """Fused autoencoder forward pass.

    x_nchw: (B, 1, 28, 28) float32 (or bfloat16) input, NCHW like the module.
    kernel_weights: output of prepare_kernel_weights() -- 5 bf16 matrices in
      (in, out) layout, feature-padded and with W3@W4 pre-multiplied.
    """
    B = x_nchw.shape[0]
    x = x_nchw.reshape(B, -1)                 # matches torch .view(B, -1)
    assert x.shape[1] == INPUT_SIZE
    if x.dtype != jnp.bfloat16:               # bf16 pass-through if available
        x = x.astype(jnp.float32)

    bt, Bp, n_steps = _choose_tiling(B, batch_tile)

    # Pad: batch rows to the tile, feature columns 784 -> 896 (zeros).
    x = jnp.pad(x, ((0, Bp - B), (0, INPUT_PAD - INPUT_SIZE)))

    w1, w2, w34, w5, w6 = kernel_weights

    def weight_spec(w):
        # Fully resident weight block, constant index map (fetched once).
        # Single-buffered: never re-fetched, so no second VMEM copy needed.
        return pl.BlockSpec(w.shape, lambda i: (0, 0),
                            pipeline_mode=pl.Buffered(1))

    out = pl.pallas_call(
        _autoencoder_kernel,
        out_shape=jax.ShapeDtypeStruct((Bp, INPUT_PAD), jnp.float32),
        grid_spec=pltpu.PrefetchScalarGridSpec(
            num_scalar_prefetch=0,
            grid=(n_steps,),
            in_specs=[
                pl.BlockSpec((bt, INPUT_PAD), lambda i: (i, 0)),
                weight_spec(w1),
                weight_spec(w2),
                weight_spec(w34),
                weight_spec(w5),
                weight_spec(w6),
            ],
            out_specs=pl.BlockSpec((bt, INPUT_PAD), lambda i: (i, 0)),
        ),
        compiler_params=pltpu.CompilerParams(
            dimension_semantics=("parallel",),
            vmem_limit_bytes=vmem_limit_bytes,
        ),
    )(x, w1, w2, w34, w5, w6)

    # Drop padded batch rows and padded feature columns.
    return out[:B, :INPUT_SIZE]


def xavier_uniform(key, fan_out, fan_in):
    """Matches torch.nn.init.xavier_uniform_ on a (out, in) Linear weight."""
    bound = math.sqrt(6.0 / (fan_in + fan_out))
    return jax.random.uniform(key, (fan_out, fan_in), jnp.float32, -bound, bound)


def make_weights(key):
    """Six f32 weights in (in, out) layout, xavier-init like the module."""
    shapes = [
        (H1, INPUT_SIZE),   # encoder linear 1  (out, in) as in PyTorch
        (H2, H1),           # encoder linear 2
        (LATENT, H2),       # encoder linear 3
        (H2, LATENT),       # decoder linear 1
        (H1, H2),           # decoder linear 2
        (INPUT_SIZE, H1),   # decoder linear 3
    ]
    keys = jax.random.split(key, len(shapes))
    return tuple(
        xavier_uniform(k, o, i).T for k, (o, i) in zip(keys, shapes))


def prepare_kernel_weights(weights_f32):
    """Kernel-side weight prep: pad 784-dims to 896, fuse W3@W4, cast bf16."""
    w1, w2, w3, w4, w5, w6 = weights_f32
    w1p = jnp.pad(w1, ((0, INPUT_PAD - INPUT_SIZE), (0, 0)))   # (896, 512)
    w34 = w3 @ w4                                              # (256, 256), f32
    w6p = jnp.pad(w6, ((0, 0), (0, INPUT_PAD - INPUT_SIZE)))   # (512, 896)
    return tuple(w.astype(jnp.bfloat16) for w in (w1p, w2, w34, w5, w6p))


def reference_forward(x_nchw, weights_f32):
    """Pure-JAX f32 reference (unfused, full precision)."""
    x = x_nchw.reshape(x_nchw.shape[0], -1).astype(jnp.float32)
    w1, w2, w3, w4, w5, w6 = weights_f32
    h = jnp.maximum(x @ w1, 0.0)
    h = jnp.maximum(h @ w2, 0.0)
    z = h @ w3
    h = jnp.maximum(z @ w4, 0.0)
    h = jnp.maximum(h @ w5, 0.0)
    return jax.nn.sigmoid(h @ w6)


if __name__ == "__main__":
    key = jax.random.PRNGKey(0)
    k_w, k_x = jax.random.split(key)

    weights_f32 = make_weights(k_w)
    kernel_weights = prepare_kernel_weights(weights_f32)

    # Small MNIST-like NCHW input. batch=19 deliberately exercises the
    # multi-step grid (2 steps) and the ragged-batch padding path.
    batch = 19
    x = jax.random.uniform(k_x, (batch, 1, 28, 28), jnp.float32)

    out = jax.block_until_ready(autoencoder_forward(x, kernel_weights))
    ref = reference_forward(x, weights_f32)

    assert out.shape == (batch, INPUT_SIZE)
    max_err = float(jnp.max(jnp.abs(out - ref)))
    # bf16 matmul operands + fused-W3W4 rounding + approx reciprocal vs f32 ref.
    assert max_err < 3e-2, f"max abs diff {max_err}"

    print("KERNEL_OK")
</pallas_src>

<mosaic_0001>
module attributes {stable_mosaic.version = 11 : i64} {
  func.func @_autoencoder_kernel(%arg0: i32, %arg1: memref<16x896xf32, #tpu.memory_space<vmem>>, %arg2: memref<896x512xbf16, #tpu.memory_space<vmem>>, %arg3: memref<512x256xbf16, #tpu.memory_space<vmem>>, %arg4: memref<256x256xbf16, #tpu.memory_space<vmem>>, %arg5: memref<256x512xbf16, #tpu.memory_space<vmem>>, %arg6: memref<512x896xbf16, #tpu.memory_space<vmem>>, %arg7: memref<16x896xf32, #tpu.memory_space<vmem>>) attributes {dimension_semantics = [#tpu.dimension_semantics<parallel>], iteration_bounds = array<i64: 2>, scalar_prefetch = 0 : i64, scratch_operands = 0 : i64, tpu.core_type = #tpu.core_type<tc>, window_params = [{transform_indices = @transform_0, window_bounds = array<i64: 16, 896>}, {pipeline_mode = #tpu.pipeline_mode<synchronous>, transform_indices = @transform_1, window_bounds = array<i64: 896, 512>}, {pipeline_mode = #tpu.pipeline_mode<synchronous>, transform_indices = @transform_2, window_bounds = array<i64: 512, 256>}, {pipeline_mode = #tpu.pipeline_mode<synchronous>, transform_indices = @transform_3, window_bounds = array<i64: 256, 256>}, {pipeline_mode = #tpu.pipeline_mode<synchronous>, transform_indices = @transform_4, window_bounds = array<i64: 256, 512>}, {pipeline_mode = #tpu.pipeline_mode<synchronous>, transform_indices = @transform_5, window_bounds = array<i64: 512, 896>}, {transform_indices = @transform_6, window_bounds = array<i64: 16, 896>}]} {
    %c0 = arith.constant 0 : index
    %c0_0 = arith.constant 0 : index
    %0 = vector.load %arg1[%c0, %c0_0] : memref<16x896xf32, #tpu.memory_space<vmem>>, vector<16x896xf32>
    %1 = arith.truncf %0 : vector<16x896xf32> to vector<16x896xbf16>
    %c0_1 = arith.constant 0 : index
    %c0_2 = arith.constant 0 : index
    %2 = vector.load %arg2[%c0_1, %c0_2] : memref<896x512xbf16, #tpu.memory_space<vmem>>, vector<896x512xbf16>
    %cst = arith.constant dense<0.000000e+00> : vector<16x512xf32>
    %3 = tpu.matmul %1, %2, %cst {dimension_numbers = #tpu.dot_dimension_numbers<[1], [0], [0], [1], [0, 0, 1, 1], [], []>} : vector<16x896xbf16>, vector<896x512xbf16>, vector<16x512xf32> -> vector<16x512xf32>
    %cst_3 = arith.constant 0.000000e+00 : f32
    %4 = vector.broadcast %cst_3 : f32 to vector<16x512xf32>
    %5 = arith.maximumf %3, %4 : vector<16x512xf32>
    %6 = arith.truncf %5 : vector<16x512xf32> to vector<16x512xbf16>
    %c0_4 = arith.constant 0 : index
    %c0_5 = arith.constant 0 : index
    %7 = vector.load %arg3[%c0_4, %c0_5] : memref<512x256xbf16, #tpu.memory_space<vmem>>, vector<512x256xbf16>
    %cst_6 = arith.constant dense<0.000000e+00> : vector<16x256xf32>
    %8 = tpu.matmul %6, %7, %cst_6 {dimension_numbers = #tpu.dot_dimension_numbers<[1], [0], [0], [1], [0, 0, 1, 1], [], []>} : vector<16x512xbf16>, vector<512x256xbf16>, vector<16x256xf32> -> vector<16x256xf32>
    %cst_7 = arith.constant 0.000000e+00 : f32
    %9 = vector.broadcast %cst_7 : f32 to vector<16x256xf32>
    %10 = arith.maximumf %8, %9 : vector<16x256xf32>
    %11 = arith.truncf %10 : vector<16x256xf32> to vector<16x256xbf16>
    %c0_8 = arith.constant 0 : index
    %c0_9 = arith.constant 0 : index
    %12 = vector.load %arg4[%c0_8, %c0_9] : memref<256x256xbf16, #tpu.memory_space<vmem>>, vector<256x256xbf16>
    %cst_10 = arith.constant dense<0.000000e+00> : vector<16x256xf32>
    %13 = tpu.matmul %11, %12, %cst_10 {dimension_numbers = #tpu.dot_dimension_numbers<[1], [0], [0], [1], [0, 0, 1, 1], [], []>} : vector<16x256xbf16>, vector<256x256xbf16>, vector<16x256xf32> -> vector<16x256xf32>
    %cst_11 = arith.constant 0.000000e+00 : f32
    %14 = vector.broadcast %cst_11 : f32 to vector<16x256xf32>
    %15 = arith.maximumf %13, %14 : vector<16x256xf32>
    %16 = arith.truncf %15 : vector<16x256xf32> to vector<16x256xbf16>
    %c0_12 = arith.constant 0 : index
    %c0_13 = arith.constant 0 : index
    %17 = vector.load %arg5[%c0_12, %c0_13] : memref<256x512xbf16, #tpu.memory_space<vmem>>, vector<256x512xbf16>
    %cst_14 = arith.constant dense<0.000000e+00> : vector<16x512xf32>
    %18 = tpu.matmul %16, %17, %cst_14 {dimension_numbers = #tpu.dot_dimension_numbers<[1], [0], [0], [1], [0, 0, 1, 1], [], []>} : vector<16x256xbf16>, vector<256x512xbf16>, vector<16x512xf32> -> vector<16x512xf32>
    %cst_15 = arith.constant 0.000000e+00 : f32
    %19 = vector.broadcast %cst_15 : f32 to vector<16x512xf32>
    %20 = arith.maximumf %18, %19 : vector<16x512xf32>
    %21 = arith.truncf %20 : vector<16x512xf32> to vector<16x512xbf16>
    %c0_16 = arith.constant 0 : index
    %c0_17 = arith.constant 0 : index
    %22 = vector.load %arg6[%c0_16, %c0_17] : memref<512x896xbf16, #tpu.memory_space<vmem>>, vector<512x896xbf16>
    %cst_18 = arith.constant dense<0.000000e+00> : vector<16x896xf32>
    %23 = tpu.matmul %21, %22, %cst_18 {dimension_numbers = #tpu.dot_dimension_numbers<[1], [0], [0], [1], [0, 0, 1, 1], [], []>} : vector<16x512xbf16>, vector<512x896xbf16>, vector<16x896xf32> -> vector<16x896xf32>
    %cst_19 = arith.constant 0.000000e+00 : f32
    %24 = vector.broadcast %cst_19 : f32 to vector<16x896xf32>
    %25 = arith.subf %24, %23 : vector<16x896xf32>
    %26 = math.exp %25 : vector<16x896xf32>
    %cst_20 = arith.constant 1.000000e+00 : f32
    %27 = vector.broadcast %cst_20 : f32 to vector<16x896xf32>
    %28 = arith.addf %27, %26 : vector<16x896xf32>
    %29 = tpu.reciprocal %28 {approx = true} : vector<16x896xf32> -> vector<16x896xf32>
    %c0_21 = arith.constant 0 : index
    %c0_22 = arith.constant 0 : index
    %30 = vector.load %arg7[%c0_21, %c0_22] : memref<16x896xf32, #tpu.memory_space<vmem>>, vector<16x896xf32>
    tpu.vector_store %arg7[%c0_21, %c0_22], %29 {strides = array<i32>} : memref<16x896xf32, #tpu.memory_space<vmem>>, vector<16x896xf32>,
    return
  }
  func.func @transform_0(%arg0: i32) -> (i32, i32) {
    %c0_i32 = arith.constant 0 : i32
    %c0_i32_0 = arith.constant 0 : i32
    return %arg0, %c0_i32 : i32, i32
  }
  func.func @transform_1(%arg0: i32) -> (i32, i32) {
    %c0_i32 = arith.constant 0 : i32
    %c0_i32_0 = arith.constant 0 : i32
    %c0_i32_1 = arith.constant 0 : i32
    return %c0_i32, %c0_i32_0 : i32, i32
  }
  func.func @transform_2(%arg0: i32) -> (i32, i32) {
    %c0_i32 = arith.constant 0 : i32
    %c0_i32_0 = arith.constant 0 : i32
    %c0_i32_1 = arith.constant 0 : i32
    return %c0_i32, %c0_i32_0 : i32, i32
  }
  func.func @transform_3(%arg0: i32) -> (i32, i32) {
    %c0_i32 = arith.constant 0 : i32
    %c0_i32_0 = arith.constant 0 : i32
    %c0_i32_1 = arith.constant 0 : i32
    return %c0_i32, %c0_i32_0 : i32, i32
  }
  func.func @transform_4(%arg0: i32) -> (i32, i32) {
    %c0_i32 = arith.constant 0 : i32
    %c0_i32_0 = arith.constant 0 : i32
    %c0_i32_1 = arith.constant 0 : i32
    return %c0_i32, %c0_i32_0 : i32, i32
  }
  func.func @transform_5(%arg0: i32) -> (i32, i32) {
    %c0_i32 = arith.constant 0 : i32
    %c0_i32_0 = arith.constant 0 : i32
    %c0_i32_1 = arith.constant 0 : i32
    return %c0_i32, %c0_i32_0 : i32, i32
  }
  func.func @transform_6(%arg0: i32) -> (i32, i32) {
    %c0_i32 = arith.constant 0 : i32
    %c0_i32_0 = arith.constant 0 : i32
    return %arg0, %c0_i32 : i32, i32
  }
}

</mosaic_0001>

<llo_original>
// kernel: tpu_custom_call.1
$region0: #{tpu_custom_call.1}
  #allocation0 [shape = 'u32[]', space=smem, size = 0x4, offset = 0x4, fixed_abs, tag = 'smem constant byte address 0x4 - core index']
  #allocation1 [shape = 'u32[144,128]{1,0:T(1,128)}', space=vmem, size = 0x12000, scoped, tag = 'internal scratch']
  %s0 = inlined_call_operand.hbm [shape: f32[32,896], index: 0, kind: input, shape index: {}]
  %s1 = inlined_call_operand.hbm [shape: bf16[896,512], index: 1, kind: input, shape index: {}]
  %s2 = inlined_call_operand.hbm [shape: bf16[512,256], index: 2, kind: input, shape index: {}]
  %s3 = inlined_call_operand.hbm [shape: bf16[256,256], index: 3, kind: input, shape index: {}]
  %s4 = inlined_call_operand.hbm [shape: bf16[256,512], index: 4, kind: input, shape index: {}]
  %s5 = inlined_call_operand.hbm [shape: bf16[512,896], index: 5, kind: input, shape index: {}]
  %s6 = inlined_call_operand.hbm [shape: f32[32,896], index: 6, kind: output, shape index: {}]
  %s7 = sld [smem:[#allocation0]]
  $region81: #{tpu_custom_call.1} parent=0
    _
  %s9 = ssub.s32 1, %s7
  %s10 = scalar_select 0, %s9, %s7
  $region1: #{tpu_custom_call.1} parent=0
    #allocation2 [shape = 'u8[114688]{0}', space=vmem, size = 0x1c000, scoped, tag = 'input window, operand 0']
    #allocation3 [shape = 's32[2]{0}', space=sflag, size = 0x8, scoped, tag = 'scoped memory for tpu_custom_call.1']
    #allocation4 [shape = 's32[2]{0}', space=sflag, size = 0x8, scoped, tag = 'scoped memory for tpu_custom_call.1']
    #allocation5 [shape = 'u8[917504]{0}', space=vmem, size = 0xe0000, scoped, tag = 'input window, operand 1, single buffered']
    #allocation6 [shape = 's32[1]{0}', space=sflag, size = 0x4, scoped, tag = 'scoped memory for tpu_custom_call.1']
    #allocation7 [shape = 'u8[262144]{0}', space=vmem, size = 0x40000, scoped, tag = 'input window, operand 2, single buffered']
    #allocation8 [shape = 'u8[131072]{0}', space=vmem, size = 0x20000, scoped, tag = 'input window, operand 3, single buffered']
    #allocation9 [shape = 's32[1]{0}', space=sflag, size = 0x4, scoped, tag = 'scoped memory for tpu_custom_call.1']
    #allocation10 [shape = 'u8[262144]{0}', space=vmem, size = 0x40000, scoped, tag = 'input window, operand 4, single buffered']
    #allocation11 [shape = 'u8[917504]{0}', space=vmem, size = 0xe0000, scoped, tag = 'input window, operand 5, single buffered']
    #allocation12 [shape = 's32[1]{0}', space=sflag, size = 0x4, scoped, tag = 'scoped memory for tpu_custom_call.1']
    #allocation13 [shape = 'u8[114688]{0}', space=vmem, size = 0x1c000, scoped, tag = 'output window, operand 0']
    %11 = vsyncpa [#allocation3], 0
    %s12 = scalar_lea.sflag [#allocation3], 1
    %13 = vsyncpa %s12, 0
    %14 = vsyncpa [#allocation6], 0
    %15 = vsyncpa [#allocation9], 0
    %16 = vsyncpa [#allocation12], 0
    %17 = vsyncpa [#allocation4], 0
    %s18 = scalar_lea.sflag [#allocation4], 1
    %19 = vsyncpa %s18, 0
    loop: start=0, step=1, limit=4
    $region2: #{tpu_custom_call.1} parent=1 // loop_pre_header
      _
    $region3: #{tpu_custom_call.1} parent=1 // loop_header
      %s21 = sphi 0, %s25
      %p22 = scmp.ge.s32.totalorder %s21, 4
      %s31 = sphi 0, %s33
      %s34 = sphi 0, %s31
      %s35 = sphi 0, %s34
      %s51 = sphi 0, %s35
      %s55 = sphi 0, %s55
      %s57 = sphi 0, %s55
      %s58 = sphi 0, %s57
      %s72 = sphi 0, %s58
      %s76 = sphi 0, %s76
      %s78 = sphi 0, %s76
      %s79 = sphi 0, %s78
      %s93 = sphi 0, %s79
      %s97 = sphi 0, %s97
      %s99 = sphi 0, %s97
      %s100 = sphi 0, %s99
      %s114 = sphi 0, %s100
      %s118 = sphi 0, %s118
      %s120 = sphi 0, %s118
      %s121 = sphi 0, %s120
      %s135 = sphi 0, %s121
      %s139 = sphi 0, %s139
      %s141 = sphi 0, %s139
      %s142 = sphi 0, %s141
      %s156 = sphi 0, %s142
      %s162 = sphi 0, %s164
      %s165 = sphi 0, %s162
      %s166 = sphi 0, %s165
      %s182 = sphi 0, %s166
    $region4: #{tpu_custom_call.1} parent=1 // loop_header_branch
      %24 = sbr.rel (%p22) target = $region8
    $region5: #{tpu_custom_call.1} parent=1 // loop_body
      %s26 = ssub.s32 %s21, 1
      %s27 = ssub.s32 %s21, 2
      %s28 = sadd.s32 %s21, 1
      %s29 = ssub.s32 %s21, %s28
      %p30 = scmp.eq.s32.totalorder %s29, 0
      %s32 = sadd.s32 %s31, 1
      %s33 = scalar_select %p30, %s31, %s32
      %p36 = pneg %p30
      %p37 = scmp.eq.s32.totalorder %s21, 1
      %p38 = por %p36, %p37
      %p39 = scmp.ne.s32.totalorder %s31, %s34
      %p40 = scmp.eq.s32.totalorder %s21, 0
      %p41 = por %p39, %p40
      %p42 = scmp.ne.s32.totalorder %s31, %s34
      %p43 = scmp.eq.s32.totalorder %s26, 1
      %p44 = por %p42, %p43
      %p45 = scmp.ne.s32.totalorder %s34, %s35
      %p46 = scmp.eq.s32.totalorder %s26, 0
      %p47 = por %p45, %p46
      %p48 = scmp.ne.s32.totalorder %s34, %s35
      %p49 = scmp.eq.s32.totalorder %s27, 1
      %p50 = por %p48, %p49
      %p52 = scmp.ne.s32.totalorder %s35, %s51
      %p53 = scmp.eq.s32.totalorder %s27, 0
      %p54 = por %p52, %p53
      %s56 = sadd.s32 %s55, 1
      %p59 = scmp.eq.s32.totalorder %s21, 1
      %p60 = scmp.ne.s32.totalorder %s55, %s57
      %p61 = scmp.eq.s32.totalorder %s21, 0
      %p62 = por %p60, %p61
      %p63 = scmp.ne.s32.totalorder %s55, %s57
      %p64 = scmp.eq.s32.totalorder %s26, 1
      %p65 = por %p63, %p64
      %p66 = scmp.ne.s32.totalorder %s57, %s58
      %p67 = scmp.eq.s32.totalorder %s26, 0
      %p68 = por %p66, %p67
      %p69 = scmp.ne.s32.totalorder %s57, %s58
      %p70 = scmp.eq.s32.totalorder %s27, 1
      %p71 = por %p69, %p70
      %p73 = scmp.ne.s32.totalorder %s58, %s72
      %p74 = scmp.eq.s32.totalorder %s27, 0
      %p75 = por %p73, %p74
      %s77 = sadd.s32 %s76, 1
      %p80 = scmp.eq.s32.totalorder %s21, 1
      %p81 = scmp.ne.s32.totalorder %s76, %s78
      %p82 = scmp.eq.s32.totalorder %s21, 0
      %p83 = por %p81, %p82
      %p84 = scmp.ne.s32.totalorder %s76, %s78
      %p85 = scmp.eq.s32.totalorder %s26, 1
      %p86 = por %p84, %p85
      %p87 = scmp.ne.s32.totalorder %s78, %s79
      %p88 = scmp.eq.s32.totalorder %s26, 0
      %p89 = por %p87, %p88
      %p90 = scmp.ne.s32.totalorder %s78, %s79
      %p91 = scmp.eq.s32.totalorder %s27, 1
      %p92 = por %p90, %p91
      %p94 = scmp.ne.s32.totalorder %s79, %s93
      %p95 = scmp.eq.s32.totalorder %s27, 0
      %p96 = por %p94, %p95
      %s98 = sadd.s32 %s97, 1
      %p101 = scmp.eq.s32.totalorder %s21, 1
      %p102 = scmp.ne.s32.totalorder %s97, %s99
      %p103 = scmp.eq.s32.totalorder %s21, 0
      %p104 = por %p102, %p103
      %p105 = scmp.ne.s32.totalorder %s97, %s99
      %p106 = scmp.eq.s32.totalorder %s26, 1
      %p107 = por %p105, %p106
      %p108 = scmp.ne.s32.totalorder %s99, %s100
      %p109 = scmp.eq.s32.totalorder %s26, 0
      %p110 = por %p108, %p109
      %p111 = scmp.ne.s32.totalorder %s99, %s100
      %p112 = scmp.eq.s32.totalorder %s27, 1
      %p113 = por %p111, %p112
      %p115 = scmp.ne.s32.totalorder %s100, %s114
      %p116 = scmp.eq.s32.totalorder %s27, 0
      %p117 = por %p115, %p116
      %s119 = sadd.s32 %s118, 1
      %p122 = scmp.eq.s32.totalorder %s21, 1
      %p123 = scmp.ne.s32.totalorder %s118, %s120
      %p124 = scmp.eq.s32.totalorder %s21, 0
      %p125 = por %p123, %p124
      %p126 = scmp.ne.s32.totalorder %s118, %s120
      %p127 = scmp.eq.s32.totalorder %s26, 1
      %p128 = por %p126, %p127
      %p129 = scmp.ne.s32.totalorder %s120, %s121
      %p130 = scmp.eq.s32.totalorder %s26, 0
      %p131 = por %p129, %p130
      %p132 = scmp.ne.s32.totalorder %s120, %s121
      %p133 = scmp.eq.s32.totalorder %s27, 1
      %p134 = por %p132, %p133
      %p136 = scmp.ne.s32.totalorder %s121, %s135
      %p137 = scmp.eq.s32.totalorder %s27, 0
      %p138 = por %p136, %p137
      %s140 = sadd.s32 %s139, 1
      %p143 = scmp.eq.s32.totalorder %s21, 1
      %p144 = scmp.ne.s32.totalorder %s139, %s141
      %p145 = scmp.eq.s32.totalorder %s21, 0
      %p146 = por %p144, %p145
      %p147 = scmp.ne.s32.totalorder %s139, %s141
      %p148 = scmp.eq.s32.totalorder %s26, 1
      %p149 = por %p147, %p148
      %p150 = scmp.ne.s32.totalorder %s141, %s142
      %p151 = scmp.eq.s32.totalorder %s26, 0
      %p152 = por %p150, %p151
      %p153 = scmp.ne.s32.totalorder %s141, %s142
      %p154 = scmp.eq.s32.totalorder %s27, 1
      %p155 = por %p153, %p154
      %p157 = scmp.ne.s32.totalorder %s142, %s156
      %p158 = scmp.eq.s32.totalorder %s27, 0
      %p159 = por %p157, %p158
      %s160 = ssub.s32 %s21, %s28
      %p161 = scmp.eq.s32.totalorder %s160, 0
      %s163 = sadd.s32 %s162, 1
      %s164 = scalar_select %p161, %s162, %s163
      %p167 = pneg %p161
      %p168 = scmp.eq.s32.totalorder %s21, 1
      %p169 = por %p167, %p168
      %p170 = scmp.ne.s32.totalorder %s162, %s165
      %p171 = scmp.eq.s32.totalorder %s21, 0
      %p172 = por %p170, %p171
      %p173 = scmp.ne.s32.totalorder %s162, %s165
      %p174 = scmp.eq.s32.totalorder %s26, 1
      %p175 = por %p173, %p174
      %p176 = scmp.ne.s32.totalorder %s165, %s166
      %p177 = scmp.eq.s32.totalorder %s26, 0
      %p178 = por %p176, %p177
      %p179 = scmp.ne.s32.totalorder %s165, %s166
      %p180 = scmp.eq.s32.totalorder %s27, 1
      %p181 = por %p179, %p180
      %p183 = scmp.ne.s32.totalorder %s166, %s182
      %p184 = scmp.eq.s32.totalorder %s27, 0
      %p185 = por %p183, %p184
      %p186 = scmp.le.s32.totalorder 1, %s21
      %p187 = scmp.lt.s32.totalorder %s21, 3
      %p188 = pnand %p186, %p187
      %p189 = pneg %p188
      // Predicated region
      $region9: #{tpu_custom_call.1} parent=5 // pred_check
        _
      $region10: #{tpu_custom_call.1} parent=5 // pred_check_branch
        %191 = sbr.rel (%p188) target = $region12
      $region11: #{tpu_custom_call.1} parent=5 // pred_region
        %s192 = ssub.s32 %s21, 1
        // Predicated region
        $region13: #{tpu_custom_call.1} parent=11 // pred_check
          %p193 = pneg %p68
        $region14: #{tpu_custom_call.1} parent=11 // pred_check_branch
          %195 = sbr.rel (%p193) target = $region16
        $region15: #{tpu_custom_call.1} parent=11 // pred_region
          %s197 = ssub.s32 28672, 28672
          %198 = vsyncadd [#allocation6], %s197
          %s199 = sshll.u32 [#allocation5], 4
          %s200 = int_to_ptr.vmem [resolvable:$true] %s199
          %205 = dma.hbm_to_vmem [thread:$0]  %s1, 28672, %s200, [#allocation6], 256, 256, 16
        $region16: #{tpu_custom_call.1} parent=11 // pred_fallthru
          _
        // Predicated region
        $region17: #{tpu_custom_call.1} parent=11 // pred_check
          %p206 = pneg %p89
        $region18: #{tpu_custom_call.1} parent=11 // pred_check_branch
          %208 = sbr.rel (%p206) target = $region20
        $region19: #{tpu_custom_call.1} parent=11 // pred_region
          %s210 = ssub.s32 8192, 8192
          %211 = vsyncadd [#allocation6], %s210
          %s212 = sshll.u32 [#allocation7], 4
          %s213 = int_to_ptr.vmem [resolvable:$true] %s212
          %218 = dma.hbm_to_vmem [thread:$0]  %s2, 8192, %s213, [#allocation6], 128, 128, 8
        $region20: #{tpu_custom_call.1} parent=11 // pred_fallthru
          _
        // Predicated region
        $region21: #{tpu_custom_call.1} parent=11 // pred_check
          %p219 = pneg %p110
        $region22: #{tpu_custom_call.1} parent=11 // pred_check_branch
          %221 = sbr.rel (%p219) target = $region24
        $region23: #{tpu_custom_call.1} parent=11 // pred_region
          %s223 = ssub.s32 4096, 4096
          %224 = vsyncadd [#allocation9], %s223
          %s225 = sshll.u32 [#allocation8], 4
          %s226 = int_to_ptr.vmem [resolvable:$true] %s225
          %231 = dma.hbm_to_vmem [thread:$0]  %s3, 4096, %s226, [#allocation9], 128, 128, 8
        $region24: #{tpu_custom_call.1} parent=11 // pred_fallthru
          _
        // Predicated region
        $region25: #{tpu_custom_call.1} parent=11 // pred_check
          %p232 = pneg %p131
        $region26: #{tpu_custom_call.1} parent=11 // pred_check_branch
          %234 = sbr.rel (%p232) target = $region28
        $region27: #{tpu_custom_call.1} parent=11 // pred_region
          %s236 = ssub.s32 8192, 8192
          %237 = vsyncadd [#allocation9], %s236
          %s238 = sshll.u32 [#allocation10], 4
          %s239 = int_to_ptr.vmem [resolvable:$true] %s238
          %244 = dma.hbm_to_vmem [thread:$0]  %s4, 8192, %s239, [#allocation9], 256, 256, 16
        $region28: #{tpu_custom_call.1} parent=11 // pred_fallthru
          _
        // Predicated region
        $region29: #{tpu_custom_call.1} parent=11 // pred_check
          %p245 = pneg %p152
        $region30: #{tpu_custom_call.1} parent=11 // pred_check_branch
          %247 = sbr.rel (%p245) target = $region32
        $region31: #{tpu_custom_call.1} parent=11 // pred_region
          %s249 = ssub.s32 28672, 28672
          %250 = vsyncadd [#allocation12], %s249
          %s251 = sshll.u32 [#allocation11], 4
          %s252 = int_to_ptr.vmem [resolvable:$true] %s251
          %257 = dma.hbm_to_vmem [thread:$0]  %s5, 28672, %s252, [#allocation12], 448, 448, 28
        $region32: #{tpu_custom_call.1} parent=11 // pred_fallthru
          _
      $region12: #{tpu_custom_call.1} parent=5 // pred_fallthru
        _
      %p258 = scmp.lt.s32.totalorder %s21, 2
      // Predicated region
      $region33: #{tpu_custom_call.1} parent=5 // pred_check
        %p259 = pneg %p258
      $region34: #{tpu_custom_call.1} parent=5 // pred_check_branch
        %261 = sbr.rel (%p259) target = $region36
      $region35: #{tpu_custom_call.1} parent=5 // pred_region
        // Predicated region
        $region37: #{tpu_custom_call.1} parent=35 // pred_check
          %p262 = pneg %p41
        $region38: #{tpu_custom_call.1} parent=35 // pred_check_branch
          %264 = sbr.rel (%p262) target = $region40
        $region39: #{tpu_custom_call.1} parent=35 // pred_region
          %s265 = sand.u32 %s31, 1
          %s266 = scalar_lea.sflag [#allocation3], %s265
          %s267 = sand.u32 %s31, 1
          %s268 = smul.addr %s267, 112
          %s269 = scalar_lea.vmem [#allocation2], %s268
          %s270 = smul.u32 2, %s21
          %s272 = ssub.s32 1792, 1792
          %273 = vsyncadd %s266, %s272
          %s274 = smul.addr %s270, 7
          %s275 = smul.addr %s274, 128
          %s276 = scalar_lea.hbm %s0, %s275
          %s277 = sshll.u32 %s269, 4
          %s278 = int_to_ptr.vmem [resolvable:$true] %s277
          %283 = dma.hbm_to_vmem [thread:$0]  %s276, 1792, %s278, %s266, 896, 896, 56
        $region40: #{tpu_custom_call.1} parent=35 // pred_fallthru
          _
      $region36: #{tpu_custom_call.1} parent=5 // pred_fallthru
        _
      %p284 = scmp.le.s32.totalorder 1, %s21
      %p285 = scmp.lt.s32.totalorder %s21, 3
      %p286 = pnand %p284, %p285
      %p287 = pneg %p286
      // Predicated region
      $region41: #{tpu_custom_call.1} parent=5 // pred_check
        _
      $region42: #{tpu_custom_call.1} parent=5 // pred_check_branch
        %289 = sbr.rel (%p286) target = $region44
      $region43: #{tpu_custom_call.1} parent=5 // pred_region
        %s290 = ssub.s32 %s21, 1
        %s291 = sand.u32 %s34, 1
        %s292 = scalar_lea.sflag [#allocation3], %s291
        %s293 = sand.u32 %s34, 1
        %s294 = smul.addr %s293, 112
        %s295 = scalar_lea.vmem [#allocation2], %s294
        // Predicated region
        $region45: #{tpu_custom_call.1} parent=43 // pred_check
          %p296 = pneg %p47
        $region46: #{tpu_custom_call.1} parent=43 // pred_check_branch
          %298 = sbr.rel (%p296) target = $region48
        $region47: #{tpu_custom_call.1} parent=43 // pred_region
          %299 = dma.done %s292, 1792
        $region48: #{tpu_custom_call.1} parent=43 // pred_fallthru
          _
        // Predicated region
        $region49: #{tpu_custom_call.1} parent=43 // pred_check
          %p300 = pneg %p68
        $region50: #{tpu_custom_call.1} parent=43 // pred_check_branch
          %302 = sbr.rel (%p300) target = $region52
        $region51: #{tpu_custom_call.1} parent=43 // pred_region
          %303 = dma.done [#allocation6], 28672
        $region52: #{tpu_custom_call.1} parent=43 // pred_fallthru
          _
        // Predicated region
        $region53: #{tpu_custom_call.1} parent=43 // pred_check
          %p304 = pneg %p89
        $region54: #{tpu_custom_call.1} parent=43 // pred_check_branch
          %306 = sbr.rel (%p304) target = $region56
        $region55: #{tpu_custom_call.1} parent=43 // pred_region
          %307 = dma.done [#allocation6], 8192
        $region56: #{tpu_custom_call.1} parent=43 // pred_fallthru
          _
        // Predicated region
        $region57: #{tpu_custom_call.1} parent=43 // pred_check
          %p308 = pneg %p110
        $region58: #{tpu_custom_call.1} parent=43 // pred_check_branch
          %310 = sbr.rel (%p308) target = $region60
        $region59: #{tpu_custom_call.1} parent=43 // pred_region
          %311 = dma.done [#allocation9], 4096
        $region60: #{tpu_custom_call.1} parent=43 // pred_fallthru
          _
        // Predicated region
        $region61: #{tpu_custom_call.1} parent=43 // pred_check
          %p312 = pneg %p131
        $region62: #{tpu_custom_call.1} parent=43 // pred_check_branch
          %314 = sbr.rel (%p312) target = $region64
        $region63: #{tpu_custom_call.1} parent=43 // pred_region
          %315 = dma.done [#allocation9], 8192
        $region64: #{tpu_custom_call.1} parent=43 // pred_fallthru
          _
        // Predicated region
        $region65: #{tpu_custom_call.1} parent=43 // pred_check
          %p316 = pneg %p152
        $region66: #{tpu_custom_call.1} parent=43 // pred_check_branch
          %318 = sbr.rel (%p316) target = $region68
        $region67: #{tpu_custom_call.1} parent=43 // pred_region
          %319 = dma.done [#allocation12], 28672
        $region68: #{tpu_custom_call.1} parent=43 // pred_fallthru
          _
        %s320 = sand.u32 %s34, 1
        %s321 = scalar_lea.sflag [#allocation3], %s320
        %s322 = sand.u32 %s34, 1
        %s323 = smul.addr %s322, 112
        %s324 = scalar_lea.vmem [#allocation2], %s323
        %p325 = pneg %p47
        %p326 = pneg %p44
        %p327 = pneg %p68
        %p328 = pneg %p65
        %p329 = pneg %p89
        %p330 = pneg %p86
        %p331 = pneg %p110
        %p332 = pneg %p107
        %p333 = pneg %p131
        %p334 = pneg %p128
        %p335 = pneg %p152
        %p336 = pneg %p149
        %p337 = pneg %p178
        %p338 = pneg %p175
        %s339 = sand.u32 %s165, 1
        %s340 = scalar_lea.sflag [#allocation4], %s339
        %s341 = sand.u32 %s165, 1
        %s342 = smul.addr %s341, 112
        %s343 = scalar_lea.vmem [#allocation13], %s342
        %s344 = smul.u32 2, %s26
        %s345 = smul.u32 2, %s26
        %v347 = vld [vmem:[%s295] sm:$0xff]
        %v348 = vld [vmem:[%s295 + $0x8] sm:$0xff]
        %v349 = vld [vmem:[%s295 + $0x10] sm:$0xff]
        %v350 = vld [vmem:[%s295 + $0x18] sm:$0xff]
        %v351 = vld [vmem:[%s295 + $0x20] sm:$0xff]
        %v352 = vld [vmem:[%s295 + $0x28] sm:$0xff]
        %v353 = vld [vmem:[%s295 + $0x30] sm:$0xff]
        %v354 = vld [vmem:[%s295 + $0x38] sm:$0xff]
        %v355 = vld [vmem:[%s295 + $0x40] sm:$0xff]
        %v356 = vld [vmem:[%s295 + $0x48] sm:$0xff]
        %v357 = vld [vmem:[%s295 + $0x50] sm:$0xff]
        %v358 = vld [vmem:[%s295 + $0x58] sm:$0xff]
        %v359 = vld [vmem:[%s295 + $0x60] sm:$0xff]
        %v360 = vld [vmem:[%s295 + $0x68] sm:$0xff]
        %v361 = vpack.c.bf16 %v354, %v347
        %v362 = vpack.c.bf16 %v355, %v348
        %v363 = vpack.c.bf16 %v356, %v349
        %v364 = vpack.c.bf16 %v357, %v350
        %v365 = vpack.c.bf16 %v358, %v351
        %v366 = vpack.c.bf16 %v359, %v352
        %v367 = vpack.c.bf16 %v360, %v353
        %v368 = vld [vmem:[#allocation5] sm:$0xff]
        %v369 = vld [vmem:[#allocation5 + $0x8] sm:$0xff]
        %v370 = vld [vmem:[#allocation5 + $0x10] sm:$0xff]
        %v371 = vld [vmem:[#allocation5 + $0x18] sm:$0xff]
        %v372 = vld [vmem:[#allocation5 + $0x20] sm:$0xff]
        %v373 = vld [vmem:[#allocation5 + $0x28] sm:$0xff]
        %v374 = vld [vmem:[#allocation5 + $0x30] sm:$0xff]
        %v375 = vld [vmem:[#allocation5 + $0x38] sm:$0xff]
        %v376 = vld [vmem:[#allocation5 + $0x40] sm:$0xff]
        %v377 = vld [vmem:[#allocation5 + $0x48] sm:$0xff]
        %v378 = vld [vmem:[#allocation5 + $0x50] sm:$0xff]
        %v379 = vld [vmem:[#allocation5 + $0x58] sm:$0xff]
        %v380 = vld [vmem:[#allocation5 + $0x60] sm:$0xff]
        %v381 = vld [vmem:[#allocation5 + $0x68] sm:$0xff]
        %v382 = vld [vmem:[#allocation5 + $0x70] sm:$0xff]
        %v383 = vld [vmem:[#allocation5 + $0x78] sm:$0xff]
        %v384 = vld [vmem:[#allocation5 + $0x80] sm:$0xff]
        %v385 = vld [vmem:[#allocation5 + $0x88] sm:$0xff]
        %v386 = vld [vmem:[#allocation5 + $0x90] sm:$0xff]
        %v387 = vld [vmem:[#allocation5 + $0x98] sm:$0xff]
        %v388 = vld [vmem:[#allocation5 + $0xa0] sm:$0xff]
        %v389 = vld [vmem:[#allocation5 + $0xa8] sm:$0xff]
        %v390 = vld [vmem:[#allocation5 + $0xb0] sm:$0xff]
        %v391 = vld [vmem:[#allocation5 + $0xb8] sm:$0xff]
        %v392 = vld [vmem:[#allocation5 + $0xc0] sm:$0xff]
        %v393 = vld [vmem:[#allocation5 + $0xc8] sm:$0xff]
        %v394 = vld [vmem:[#allocation5 + $0xd0] sm:$0xff]
        %v395 = vld [vmem:[#allocation5 + $0xd8] sm:$0xff]
        %v396 = vld [vmem:[#allocation5 + $0xe0] sm:$0xff]
        %v397 = vld [vmem:[#allocation5 + $0xe8] sm:$0xff]
        %v398 = vld [vmem:[#allocation5 + $0xf0] sm:$0xff]
        %v399 = vld [vmem:[#allocation5 + $0xf8] sm:$0xff]
        %v400 = vld [vmem:[#allocation5 + $0x100] sm:$0xff]
        %v401 = vld [vmem:[#allocation5 + $0x108] sm:$0xff]
        %v402 = vld [vmem:[#allocation5 + $0x110] sm:$0xff]
        %v403 = vld [vmem:[#allocation5 + $0x118] sm:$0xff]
        %v404 = vld [vmem:[#allocation5 + $0x120] sm:$0xff]
        %v405 = vld [vmem:[#allocation5 + $0x128] sm:$0xff]
        %v406 = vld [vmem:[#allocation5 + $0x130] sm:$0xff]
        %v407 = vld [vmem:[#allocation5 + $0x138] sm:$0xff]
        %v408 = vld [vmem:[#allocation5 + $0x140] sm:$0xff]
        %v409 = vld [vmem:[#allocation5 + $0x148] sm:$0xff]
        %v410 = vld [vmem:[#allocation5 + $0x150] sm:$0xff]
        %v411 = vld [vmem:[#allocation5 + $0x158] sm:$0xff]
        %v412 = vld [vmem:[#allocation5 + $0x160] sm:$0xff]
        %v413 = vld [vmem:[#allocation5 + $0x168] sm:$0xff]
        %v414 = vld [vmem:[#allocation5 + $0x170] sm:$0xff]
        %v415 = vld [vmem:[#allocation5 + $0x178] sm:$0xff]
        %v416 = vld [vmem:[#allocation5 + $0x180] sm:$0xff]
        %v417 = vld [vmem:[#allocation5 + $0x188] sm:$0xff]
        %v418 = vld [vmem:[#allocation5 + $0x190] sm:$0xff]
        %v419 = vld [vmem:[#allocation5 + $0x198] sm:$0xff]
        %v420 = vld [vmem:[#allocation5 + $0x1a0] sm:$0xff]
        %v421 = vld [vmem:[#allocation5 + $0x1a8] sm:$0xff]
        %v422 = vld [vmem:[#allocation5 + $0x1b0] sm:$0xff]
        %v423 = vld [vmem:[#allocation5 + $0x1b8] sm:$0xff]
        %v424 = vld [vmem:[#allocation5 + $0x1c0] sm:$0xff]
        %v425 = vld [vmem:[#allocation5 + $0x1c8] sm:$0xff]
        %v426 = vld [vmem:[#allocation5 + $0x1d0] sm:$0xff]
        %v427 = vld [vmem:[#allocation5 + $0x1d8] sm:$0xff]
        %v428 = vld [vmem:[#allocation5 + $0x1e0] sm:$0xff]
        %v429 = vld [vmem:[#allocation5 + $0x1e8] sm:$0xff]
        %v430 = vld [vmem:[#allocation5 + $0x1f0] sm:$0xff]
        %v431 = vld [vmem:[#allocation5 + $0x1f8] sm:$0xff]
        %v432 = vld [vmem:[#allocation5 + $0x200] sm:$0xff]
        %v433 = vld [vmem:[#allocation5 + $0x208] sm:$0xff]
        %v434 = vld [vmem:[#allocation5 + $0x210] sm:$0xff]
        %v435 = vld [vmem:[#allocation5 + $0x218] sm:$0xff]
        %v436 = vld [vmem:[#allocation5 + $0x220] sm:$0xff]
        %v437 = vld [vmem:[#allocation5 + $0x228] sm:$0xff]
        %v438 = vld [vmem:[#allocation5 + $0x230] sm:$0xff]
        %v439 = vld [vmem:[#allocation5 + $0x238] sm:$0xff]
        %v440 = vld [vmem:[#allocation5 + $0x240] sm:$0xff]
        %v441 = vld [vmem:[#allocation5 + $0x248] sm:$0xff]
        %v442 = vld [vmem:[#allocation5 + $0x250] sm:$0xff]
        %v443 = vld [vmem:[#allocation5 + $0x258] sm:$0xff]
        %v444 = vld [vmem:[#allocation5 + $0x260] sm:$0xff]
        %v445 = vld [vmem:[#allocation5 + $0x268] sm:$0xff]
        %v446 = vld [vmem:[#allocation5 + $0x270] sm:$0xff]
        %v447 = vld [vmem:[#allocation5 + $0x278] sm:$0xff]
        %v448 = vld [vmem:[#allocation5 + $0x280] sm:$0xff]
        %v449 = vld [vmem:[#allocation5 + $0x288] sm:$0xff]
        %v450 = vld [vmem:[#allocation5 + $0x290] sm:$0xff]
        %v451 = vld [vmem:[#allocation5 + $0x298] sm:$0xff]
        %v452 = vld [vmem:[#allocation5 + $0x2a0] sm:$0xff]
        %v453 = vld [vmem:[#allocation5 + $0x2a8] sm:$0xff]
        %v454 = vld [vmem:[#allocation5 + $0x2b0] sm:$0xff]
        %v455 = vld [vmem:[#allocation5 + $0x2b8] sm:$0xff]
        %v456 = vld [vmem:[#allocation5 + $0x2c0] sm:$0xff]
        %v457 = vld [vmem:[#allocation5 + $0x2c8] sm:$0xff]
        %v458 = vld [vmem:[#allocation5 + $0x2d0] sm:$0xff]
        %v459 = vld [vmem:[#allocation5 + $0x2d8] sm:$0xff]
        %v460 = vld [vmem:[#allocation5 + $0x2e0] sm:$0xff]
        %v461 = vld [vmem:[#allocation5 + $0x2e8] sm:$0xff]
        %v462 = vld [vmem:[#allocation5 + $0x2f0] sm:$0xff]
        %v463 = vld [vmem:[#allocation5 + $0x2f8] sm:$0xff]
        %v464 = vld [vmem:[#allocation5 + $0x300] sm:$0xff]
        %v465 = vld [vmem:[#allocation5 + $0x308] sm:$0xff]
        %v466 = vld [vmem:[#allocation5 + $0x310] sm:$0xff]
        %v467 = vld [vmem:[#allocation5 + $0x318] sm:$0xff]
        %v468 = vld [vmem:[#allocation5 + $0x320] sm:$0xff]
        %v469 = vld [vmem:[#allocation5 + $0x328] sm:$0xff]
        %v470 = vld [vmem:[#allocation5 + $0x330] sm:$0xff]
        %v471 = vld [vmem:[#allocation5 + $0x338] sm:$0xff]
        %v472 = vld [vmem:[#allocation5 + $0x340] sm:$0xff]
        %v473 = vld [vmem:[#allocation5 + $0x348] sm:$0xff]
        %v474 = vld [vmem:[#allocation5 + $0x350] sm:$0xff]
        %v475 = vld [vmem:[#allocation5 + $0x358] sm:$0xff]
        %v476 = vld [vmem:[#allocation5 + $0x360] sm:$0xff]
        %v477 = vld [vmem:[#allocation5 + $0x368] sm:$0xff]
        %v478 = vld [vmem:[#allocation5 + $0x370] sm:$0xff]
        %v479 = vld [vmem:[#allocation5 + $0x378] sm:$0xff]
        %v480 = vld [vmem:[#allocation5 + $0x380] sm:$0xff]
        %v481 = vld [vmem:[#allocation5 + $0x388] sm:$0xff]
        %v482 = vld [vmem:[#allocation5 + $0x390] sm:$0xff]
        %v483 = vld [vmem:[#allocation5 + $0x398] sm:$0xff]
        %v484 = vld [vmem:[#allocation5 + $0x3a0] sm:$0xff]
        %v485 = vld [vmem:[#allocation5 + $0x3a8] sm:$0xff]
        %v486 = vld [vmem:[#allocation5 + $0x3b0] sm:$0xff]
        %v487 = vld [vmem:[#allocation5 + $0x3b8] sm:$0xff]
        %v488 = vld [vmem:[#allocation5 + $0x3c0] sm:$0xff]
        %v489 = vld [vmem:[#allocation5 + $0x3c8] sm:$0xff]
        %v490 = vld [vmem:[#allocation5 + $0x3d0] sm:$0xff]
        %v491 = vld [vmem:[#allocation5 + $0x3d8] sm:$0xff]
        %v492 = vld [vmem:[#allocation5 + $0x3e0] sm:$0xff]
        %v493 = vld [vmem:[#allocation5 + $0x3e8] sm:$0xff]
        %v494 = vld [vmem:[#allocation5 + $0x3f0] sm:$0xff]
        %v495 = vld [vmem:[#allocation5 + $0x3f8] sm:$0xff]
        %v496 = vld [vmem:[#allocation5 + $0x400] sm:$0xff]
        %v497 = vld [vmem:[#allocation5 + $0x408] sm:$0xff]
        %v498 = vld [vmem:[#allocation5 + $0x410] sm:$0xff]
        %v499 = vld [vmem:[#allocation5 + $0x418] sm:$0xff]
        %v500 = vld [vmem:[#allocation5 + $0x420] sm:$0xff]
        %v501 = vld [vmem:[#allocation5 + $0x428] sm:$0xff]
        %v502 = vld [vmem:[#allocation5 + $0x430] sm:$0xff]
        %v503 = vld [vmem:[#allocation5 + $0x438] sm:$0xff]
        %v504 = vld [vmem:[#allocation5 + $0x440] sm:$0xff]
        %v505 = vld [vmem:[#allocation5 + $0x448] sm:$0xff]
        %v506 = vld [vmem:[#allocation5 + $0x450] sm:$0xff]
        %v507 = vld [vmem:[#allocation5 + $0x458] sm:$0xff]
        %v508 = vld [vmem:[#allocation5 + $0x460] sm:$0xff]
        %v509 = vld [vmem:[#allocation5 + $0x468] sm:$0xff]
        %v510 = vld [vmem:[#allocation5 + $0x470] sm:$0xff]
        %v511 = vld [vmem:[#allocation5 + $0x478] sm:$0xff]
        %v512 = vld [vmem:[#allocation5 + $0x480] sm:$0xff]
        %v513 = vld [vmem:[#allocation5 + $0x488] sm:$0xff]
        %v514 = vld [vmem:[#allocation5 + $0x490] sm:$0xff]
        %v515 = vld [vmem:[#allocation5 + $0x498] sm:$0xff]
        %v516 = vld [vmem:[#allocation5 + $0x4a0] sm:$0xff]
        %v517 = vld [vmem:[#allocation5 + $0x4a8] sm:$0xff]
        %v518 = vld [vmem:[#allocation5 + $0x4b0] sm:$0xff]
        %v519 = vld [vmem:[#allocation5 + $0x4b8] sm:$0xff]
        %v520 = vld [vmem:[#allocation5 + $0x4c0] sm:$0xff]
        %v521 = vld [vmem:[#allocation5 + $0x4c8] sm:$0xff]
        %v522 = vld [vmem:[#allocation5 + $0x4d0] sm:$0xff]
        %v523 = vld [vmem:[#allocation5 + $0x4d8] sm:$0xff]
        %v524 = vld [vmem:[#allocation5 + $0x4e0] sm:$0xff]
        %v525 = vld [vmem:[#allocation5 + $0x4e8] sm:$0xff]
        %v526 = vld [vmem:[#allocation5 + $0x4f0] sm:$0xff]
        %v527 = vld [vmem:[#allocation5 + $0x4f8] sm:$0xff]
        %v528 = vld [vmem:[#allocation5 + $0x500] sm:$0xff]
        %v529 = vld [vmem:[#allocation5 + $0x508] sm:$0xff]
        %v530 = vld [vmem:[#allocation5 + $0x510] sm:$0xff]
        %v531 = vld [vmem:[#allocation5 + $0x518] sm:$0xff]
        %v532 = vld [vmem:[#allocation5 + $0x520] sm:$0xff]
        %v533 = vld [vmem:[#allocation5 + $0x528] sm:$0xff]
        %v534 = vld [vmem:[#allocation5 + $0x530] sm:$0xff]
        %v535 = vld [vmem:[#allocation5 + $0x538] sm:$0xff]
        %v536 = vld [vmem:[#allocation5 + $0x540] sm:$0xff]
        %v537 = vld [vmem:[#allocation5 + $0x548] sm:$0xff]
        %v538 = vld [vmem:[#allocation5 + $0x550] sm:$0xff]
        %v539 = vld [vmem:[#allocation5 + $0x558] sm:$0xff]
        %v540 = vld [vmem:[#allocation5 + $0x560] sm:$0xff]
        %v541 = vld [vmem:[#allocation5 + $0x568] sm:$0xff]
        %v542 = vld [vmem:[#allocation5 + $0x570] sm:$0xff]
        %v543 = vld [vmem:[#allocation5 + $0x578] sm:$0xff]
        %v544 = vld [vmem:[#allocation5 + $0x580] sm:$0xff]
        %v545 = vld [vmem:[#allocation5 + $0x588] sm:$0xff]
        %v546 = vld [vmem:[#allocation5 + $0x590] sm:$0xff]
        %v547 = vld [vmem:[#allocation5 + $0x598] sm:$0xff]
        %v548 = vld [vmem:[#allocation5 + $0x5a0] sm:$0xff]
        %v549 = vld [vmem:[#allocation5 + $0x5a8] sm:$0xff]
        %v550 = vld [vmem:[#allocation5 + $0x5b0] sm:$0xff]
        %v551 = vld [vmem:[#allocation5 + $0x5b8] sm:$0xff]
        %v552 = vld [vmem:[#allocation5 + $0x5c0] sm:$0xff]
        %v553 = vld [vmem:[#allocation5 + $0x5c8] sm:$0xff]
        %v554 = vld [vmem:[#allocation5 + $0x5d0] sm:$0xff]
        %v555 = vld [vmem:[#allocation5 + $0x5d8] sm:$0xff]
        %v556 = vld [vmem:[#allocation5 + $0x5e0] sm:$0xff]
        %v557 = vld [vmem:[#allocation5 + $0x5e8] sm:$0xff]
        %v558 = vld [vmem:[#allocation5 + $0x5f0] sm:$0xff]
        %v559 = vld [vmem:[#allocation5 + $0x5f8] sm:$0xff]
        %v560 = vld [vmem:[#allocation5 + $0x600] sm:$0xff]
        %v561 = vld [vmem:[#allocation5 + $0x608] sm:$0xff]
        %v562 = vld [vmem:[#allocation5 + $0x610] sm:$0xff]
        %v563 = vld [vmem:[#allocation5 + $0x618] sm:$0xff]
        %v564 = vld [vmem:[#allocation5 + $0x620] sm:$0xff]
        %v565 = vld [vmem:[#allocation5 + $0x628] sm:$0xff]
        %v566 = vld [vmem:[#allocation5 + $0x630] sm:$0xff]
        %v567 = vld [vmem:[#allocation5 + $0x638] sm:$0xff]
        %v568 = vld [vmem:[#allocation5 + $0x640] sm:$0xff]
        %v569 = vld [vmem:[#allocation5 + $0x648] sm:$0xff]
        %v570 = vld [vmem:[#allocation5 + $0x650] sm:$0xff]
        %v571 = vld [vmem:[#allocation5 + $0x658] sm:$0xff]
        %v572 = vld [vmem:[#allocation5 + $0x660] sm:$0xff]
        %v573 = vld [vmem:[#allocation5 + $0x668] sm:$0xff]
        %v574 = vld [vmem:[#allocation5 + $0x670] sm:$0xff]
        %v575 = vld [vmem:[#allocation5 + $0x678] sm:$0xff]
        %v576 = vld [vmem:[#allocation5 + $0x680] sm:$0xff]
        %v577 = vld [vmem:[#allocation5 + $0x688] sm:$0xff]
        %v578 = vld [vmem:[#allocation5 + $0x690] sm:$0xff]
        %v579 = vld [vmem:[#allocation5 + $0x698] sm:$0xff]
        %v580 = vld [vmem:[#allocation5 + $0x6a0] sm:$0xff]
        %v581 = vld [vmem:[#allocation5 + $0x6a8] sm:$0xff]
        %v582 = vld [vmem:[#allocation5 + $0x6b0] sm:$0xff]
        %v583 = vld [vmem:[#allocation5 + $0x6b8] sm:$0xff]
        %v584 = vld [vmem:[#allocation5 + $0x6c0] sm:$0xff]
        %v585 = vld [vmem:[#allocation5 + $0x6c8] sm:$0xff]
        %v586 = vld [vmem:[#allocation5 + $0x6d0] sm:$0xff]
        %v587 = vld [vmem:[#allocation5 + $0x6d8] sm:$0xff]
        %v588 = vld [vmem:[#allocation5 + $0x6e0] sm:$0xff]
        %v589 = vld [vmem:[#allocation5 + $0x6e8] sm:$0xff]
        %v590 = vld [vmem:[#allocation5 + $0x6f0] sm:$0xff]
        %v591 = vld [vmem:[#allocation5 + $0x6f8] sm:$0xff]
        %v816 = vunpack.c.l.b16 %v368
        %v817 = vunpack.c.h.b16 %v368
        %v818 = vunpack.c.l.b16 %v369
        %v819 = vunpack.c.h.b16 %v369
        %v820 = vunpack.c.l.b16 %v370
        %v821 = vunpack.c.h.b16 %v370
        %v822 = vunpack.c.l.b16 %v371
        %v823 = vunpack.c.h.b16 %v371
        %v824 = vunpack.c.l.b16 %v372
        %v825 = vunpack.c.h.b16 %v372
        %v826 = vunpack.c.l.b16 %v373
        %v827 = vunpack.c.h.b16 %v373
        %v828 = vunpack.c.l.b16 %v374
        %v829 = vunpack.c.h.b16 %v374
        %v830 = vunpack.c.l.b16 %v375
        %v831 = vunpack.c.h.b16 %v375
        %v832 = vunpack.c.l.b16 %v376
        %v833 = vunpack.c.h.b16 %v376
        %v834 = vunpack.c.l.b16 %v377
        %v835 = vunpack.c.h.b16 %v377
        %v836 = vunpack.c.l.b16 %v378
        %v837 = vunpack.c.h.b16 %v378
        %v838 = vunpack.c.l.b16 %v379
        %v839 = vunpack.c.h.b16 %v379
        %v840 = vunpack.c.l.b16 %v380
        %v841 = vunpack.c.h.b16 %v380
        %v842 = vunpack.c.l.b16 %v381
        %v843 = vunpack.c.h.b16 %v381
        %v844 = vunpack.c.l.b16 %v382
        %v845 = vunpack.c.h.b16 %v382
        %v846 = vunpack.c.l.b16 %v383
        %v847 = vunpack.c.h.b16 %v383
        %v848 = vunpack.c.l.b16 %v384
        %v849 = vunpack.c.h.b16 %v384
        %v850 = vunpack.c.l.b16 %v385
        %v851 = vunpack.c.h.b16 %v385
        %v852 = vunpack.c.l.b16 %v386
        %v853 = vunpack.c.h.b16 %v386
        %v854 = vunpack.c.l.b16 %v387
        %v855 = vunpack.c.h.b16 %v387
        %v856 = vunpack.c.l.b16 %v388
        %v857 = vunpack.c.h.b16 %v388
        %v858 = vunpack.c.l.b16 %v389
        %v859 = vunpack.c.h.b16 %v389
        %v860 = vunpack.c.l.b16 %v390
        %v861 = vunpack.c.h.b16 %v390
        %v862 = vunpack.c.l.b16 %v391
        %v863 = vunpack.c.h.b16 %v391
        %v864 = vunpack.c.l.b16 %v392
        %v865 = vunpack.c.h.b16 %v392
        %v866 = vunpack.c.l.b16 %v393
        %v867 = vunpack.c.h.b16 %v393
        %v868 = vunpack.c.l.b16 %v394
        %v869 = vunpack.c.h.b16 %v394
        %v870 = vunpack.c.l.b16 %v395
        %v871 = vunpack.c.h.b16 %v395
        %v872 = vunpack.c.l.b16 %v396
        %v873 = vunpack.c.h.b16 %v396
        %v874 = vunpack.c.l.b16 %v397
        %v875 = vunpack.c.h.b16 %v397
        %v876 = vunpack.c.l.b16 %v398
        %v877 = vunpack.c.h.b16 %v398
        %v878 = vunpack.c.l.b16 %v399
        %v879 = vunpack.c.h.b16 %v399
        %v880 = vunpack.c.l.b16 %v400
        %v881 = vunpack.c.h.b16 %v400
        %v882 = vunpack.c.l.b16 %v401
        %v883 = vunpack.c.h.b16 %v401
        %v884 = vunpack.c.l.b16 %v402
        %v885 = vunpack.c.h.b16 %v402
        %v886 = vunpack.c.l.b16 %v403
        %v887 = vunpack.c.h.b16 %v403
        %v888 = vunpack.c.l.b16 %v404
        %v889 = vunpack.c.h.b16 %v404
        %v890 = vunpack.c.l.b16 %v405
        %v891 = vunpack.c.h.b16 %v405
        %v892 = vunpack.c.l.b16 %v406
        %v893 = vunpack.c.h.b16 %v406
        %v894 = vunpack.c.l.b16 %v407
        %v895 = vunpack.c.h.b16 %v407
        %v896 = vunpack.c.l.b16 %v408
        %v897 = vunpack.c.h.b16 %v408
        %v898 = vunpack.c.l.b16 %v409
        %v899 = vunpack.c.h.b16 %v409
        %v900 = vunpack.c.l.b16 %v410
        %v901 = vunpack.c.h.b16 %v410
        %v902 = vunpack.c.l.b16 %v411
        %v903 = vunpack.c.h.b16 %v411
        %v904 = vunpack.c.l.b16 %v412
        %v905 = vunpack.c.h.b16 %v412
        %v906 = vunpack.c.l.b16 %v413
        %v907 = vunpack.c.h.b16 %v413
        %v908 = vunpack.c.l.b16 %v414
        %v909 = vunpack.c.h.b16 %v414
        %v910 = vunpack.c.l.b16 %v415
        %v911 = vunpack.c.h.b16 %v415
        %v912 = vunpack.c.l.b16 %v416
        %v913 = vunpack.c.h.b16 %v416
        %v914 = vunpack.c.l.b16 %v417
        %v915 = vunpack.c.h.b16 %v417
        %v916 = vunpack.c.l.b16 %v418
        %v917 = vunpack.c.h.b16 %v418
        %v918 = vunpack.c.l.b16 %v419
        %v919 = vunpack.c.h.b16 %v419
        %v920 = vunpack.c.l.b16 %v420
        %v921 = vunpack.c.h.b16 %v420
        %v922 = vunpack.c.l.b16 %v421
        %v923 = vunpack.c.h.b16 %v421
        %v924 = vunpack.c.l.b16 %v422
        %v925 = vunpack.c.h.b16 %v422
        %v926 = vunpack.c.l.b16 %v423
        %v927 = vunpack.c.h.b16 %v423
        %v928 = vunpack.c.l.b16 %v424
        %v929 = vunpack.c.h.b16 %v424
        %v930 = vunpack.c.l.b16 %v425
        %v931 = vunpack.c.h.b16 %v425
        %v932 = vunpack.c.l.b16 %v426
        %v933 = vunpack.c.h.b16 %v426
        %v934 = vunpack.c.l.b16 %v427
        %v935 = vunpack.c.h.b16 %v427
        %v936 = vunpack.c.l.b16 %v428
        %v937 = vunpack.c.h.b16 %v428
        %v938 = vunpack.c.l.b16 %v429
        %v939 = vunpack.c.h.b16 %v429
        %v940 = vunpack.c.l.b16 %v430
        %v941 = vunpack.c.h.b16 %v430
        %v942 = vunpack.c.l.b16 %v431
        %v943 = vunpack.c.h.b16 %v431
        %v944 = vunpack.c.l.b16 %v432
        %v945 = vunpack.c.h.b16 %v432
        %v946 = vunpack.c.l.b16 %v433
        %v947 = vunpack.c.h.b16 %v433
        %v948 = vunpack.c.l.b16 %v434
        %v949 = vunpack.c.h.b16 %v434
        %v950 = vunpack.c.l.b16 %v435
        %v951 = vunpack.c.h.b16 %v435
        %v952 = vunpack.c.l.b16 %v436
        %v953 = vunpack.c.h.b16 %v436
        %v954 = vunpack.c.l.b16 %v437
        %v955 = vunpack.c.h.b16 %v437
        %v956 = vunpack.c.l.b16 %v438
        %v957 = vunpack.c.h.b16 %v438
        %v958 = vunpack.c.l.b16 %v439
        %v959 = vunpack.c.h.b16 %v439
        %v960 = vunpack.c.l.b16 %v440
        %v961 = vunpack.c.h.b16 %v440
        %v962 = vunpack.c.l.b16 %v441
        %v963 = vunpack.c.h.b16 %v441
        %v964 = vunpack.c.l.b16 %v442
        %v965 = vunpack.c.h.b16 %v442
        %v966 = vunpack.c.l.b16 %v443
        %v967 = vunpack.c.h.b16 %v443
        %v968 = vunpack.c.l.b16 %v444
        %v969 = vunpack.c.h.b16 %v444
        %v970 = vunpack.c.l.b16 %v445
        %v971 = vunpack.c.h.b16 %v445
        %v972 = vunpack.c.l.b16 %v446
        %v973 = vunpack.c.h.b16 %v446
        %v974 = vunpack.c.l.b16 %v447
        %v975 = vunpack.c.h.b16 %v447
        %v976 = vunpack.c.l.b16 %v448
        %v977 = vunpack.c.h.b16 %v448
        %v978 = vunpack.c.l.b16 %v449
        %v979 = vunpack.c.h.b16 %v449
        %v980 = vunpack.c.l.b16 %v450
        %v981 = vunpack.c.h.b16 %v450
        %v982 = vunpack.c.l.b16 %v451
        %v983 = vunpack.c.h.b16 %v451
        %v984 = vunpack.c.l.b16 %v452
        %v985 = vunpack.c.h.b16 %v452
        %v986 = vunpack.c.l.b16 %v453
        %v987 = vunpack.c.h.b16 %v453
        %v988 = vunpack.c.l.b16 %v454
        %v989 = vunpack.c.h.b16 %v454
        %v990 = vunpack.c.l.b16 %v455
        %v991 = vunpack.c.h.b16 %v455
        %v992 = vunpack.c.l.b16 %v456
        %v993 = vunpack.c.h.b16 %v456
        %v994 = vunpack.c.l.b16 %v457
        %v995 = vunpack.c.h.b16 %v457
        %v996 = vunpack.c.l.b16 %v458
        %v997 = vunpack.c.h.b16 %v458
        %v998 = vunpack.c.l.b16 %v459
        %v999 = vunpack.c.h.b16 %v459
        %v1000 = vunpack.c.l.b16 %v460
        %v1001 = vunpack.c.h.b16 %v460
        %v1002 = vunpack.c.l.b16 %v461
        %v1003 = vunpack.c.h.b16 %v461
        %v1004 = vunpack.c.l.b16 %v462
        %v1005 = vunpack.c.h.b16 %v462
        %v1006 = vunpack.c.l.b16 %v463
        %v1007 = vunpack.c.h.b16 %v463
        %v1008 = vunpack.c.l.b16 %v464
        %v1009 = vunpack.c.h.b16 %v464
        %v1010 = vunpack.c.l.b16 %v465
        %v1011 = vunpack.c.h.b16 %v465
        %v1012 = vunpack.c.l.b16 %v466
        %v1013 = vunpack.c.h.b16 %v466
        %v1014 = vunpack.c.l.b16 %v467
        %v1015 = vunpack.c.h.b16 %v467
        %v1016 = vunpack.c.l.b16 %v468
        %v1017 = vunpack.c.h.b16 %v468
        %v1018 = vunpack.c.l.b16 %v469
        %v1019 = vunpack.c.h.b16 %v469
        %v1020 = vunpack.c.l.b16 %v470
        %v1021 = vunpack.c.h.b16 %v470
        %v1022 = vunpack.c.l.b16 %v471
        %v1023 = vunpack.c.h.b16 %v471
        %v1024 = vunpack.c.l.b16 %v472
        %v1025 = vunpack.c.h.b16 %v472
        %v1026 = vunpack.c.l.b16 %v473
        %v1027 = vunpack.c.h.b16 %v473
        %v1028 = vunpack.c.l.b16 %v474
        %v1029 = vunpack.c.h.b16 %v474
        %v1030 = vunpack.c.l.b16 %v475
        %v1031 = vunpack.c.h.b16 %v475
        %v1032 = vunpack.c.l.b16 %v476
        %v1033 = vunpack.c.h.b16 %v476
        %v1034 = vunpack.c.l.b16 %v477
        %v1035 = vunpack.c.h.b16 %v477
        %v1036 = vunpack.c.l.b16 %v478
        %v1037 = vunpack.c.h.b16 %v478
        %v1038 = vunpack.c.l.b16 %v479
        %v1039 = vunpack.c.h.b16 %v479
        %v1040 = vunpack.c.l.b16 %v480
        %v1041 = vunpack.c.h.b16 %v480
        %v1042 = vunpack.c.l.b16 %v481
        %v1043 = vunpack.c.h.b16 %v481
        %v1044 = vunpack.c.l.b16 %v482
        %v1045 = vunpack.c.h.b16 %v482
        %v1046 = vunpack.c.l.b16 %v483
        %v1047 = vunpack.c.h.b16 %v483
        %v1048 = vunpack.c.l.b16 %v484
        %v1049 = vunpack.c.h.b16 %v484
        %v1050 = vunpack.c.l.b16 %v485
        %v1051 = vunpack.c.h.b16 %v485
        %v1052 = vunpack.c.l.b16 %v486
        %v1053 = vunpack.c.h.b16 %v486
        %v1054 = vunpack.c.l.b16 %v487
        %v1055 = vunpack.c.h.b16 %v487
        %v1056 = vunpack.c.l.b16 %v488
        %v1057 = vunpack.c.h.b16 %v488
        %v1058 = vunpack.c.l.b16 %v489
        %v1059 = vunpack.c.h.b16 %v489
        %v1060 = vunpack.c.l.b16 %v490
        %v1061 = vunpack.c.h.b16 %v490
        %v1062 = vunpack.c.l.b16 %v491
        %v1063 = vunpack.c.h.b16 %v491
        %v1064 = vunpack.c.l.b16 %v492
        %v1065 = vunpack.c.h.b16 %v492
        %v1066 = vunpack.c.l.b16 %v493
        %v1067 = vunpack.c.h.b16 %v493
        %v1068 = vunpack.c.l.b16 %v494
        %v1069 = vunpack.c.h.b16 %v494
        %v1070 = vunpack.c.l.b16 %v495
        %v1071 = vunpack.c.h.b16 %v495
        %v1072 = vunpack.c.l.b16 %v496
        %v1073 = vunpack.c.h.b16 %v496
        %v1074 = vunpack.c.l.b16 %v497
        %v1075 = vunpack.c.h.b16 %v497
        %v1076 = vunpack.c.l.b16 %v498
        %v1077 = vunpack.c.h.b16 %v498
        %v1078 = vunpack.c.l.b16 %v499
        %v1079 = vunpack.c.h.b16 %v499
        %v1080 = vunpack.c.l.b16 %v500
        %v1081 = vunpack.c.h.b16 %v500
        %v1082 = vunpack.c.l.b16 %v501
        %v1083 = vunpack.c.h.b16 %v501
        %v1084 = vunpack.c.l.b16 %v502
        %v1085 = vunpack.c.h.b16 %v502
        %v1086 = vunpack.c.l.b16 %v503
        %v1087 = vunpack.c.h.b16 %v503
        %v1088 = vunpack.c.l.b16 %v504
        %v1089 = vunpack.c.h.b16 %v504
        %v1090 = vunpack.c.l.b16 %v505
        %v1091 = vunpack.c.h.b16 %v505
        %v1092 = vunpack.c.l.b16 %v506
        %v1093 = vunpack.c.h.b16 %v506
        %v1094 = vunpack.c.l.b16 %v507
        %v1095 = vunpack.c.h.b16 %v507
        %v1096 = vunpack.c.l.b16 %v508
        %v1097 = vunpack.c.h.b16 %v508
        %v1098 = vunpack.c.l.b16 %v509
        %v1099 = vunpack.c.h.b16 %v509
        %v1100 = vunpack.c.l.b16 %v510
        %v1101 = vunpack.c.h.b16 %v510
        %v1102 = vunpack.c.l.b16 %v511
        %v1103 = vunpack.c.h.b16 %v511
        %v1104 = vunpack.c.l.b16 %v512
        %v1105 = vunpack.c.h.b16 %v512
        %v1106 = vunpack.c.l.b16 %v513
        %v1107 = vunpack.c.h.b16 %v513
        %v1108 = vunpack.c.l.b16 %v514
        %v1109 = vunpack.c.h.b16 %v514
        %v1110 = vunpack.c.l.b16 %v515
        %v1111 = vunpack.c.h.b16 %v515
        %v1112 = vunpack.c.l.b16 %v516
        %v1113 = vunpack.c.h.b16 %v516
        %v1114 = vunpack.c.l.b16 %v517
        %v1115 = vunpack.c.h.b16 %v517
        %v1116 = vunpack.c.l.b16 %v518
        %v1117 = vunpack.c.h.b16 %v518
        %v1118 = vunpack.c.l.b16 %v519
        %v1119 = vunpack.c.h.b16 %v519
        %v1120 = vunpack.c.l.b16 %v520
        %v1121 = vunpack.c.h.b16 %v520
        %v1122 = vunpack.c.l.b16 %v521
        %v1123 = vunpack.c.h.b16 %v521
        %v1124 = vunpack.c.l.b16 %v522
        %v1125 = vunpack.c.h.b16 %v522
        %v1126 = vunpack.c.l.b16 %v523
        %v1127 = vunpack.c.h.b16 %v523
        %v1128 = vunpack.c.l.b16 %v524
        %v1129 = vunpack.c.h.b16 %v524
        %v1130 = vunpack.c.l.b16 %v525
        %v1131 = vunpack.c.h.b16 %v525
        %v1132 = vunpack.c.l.b16 %v526
        %v1133 = vunpack.c.h.b16 %v526
        %v1134 = vunpack.c.l.b16 %v527
        %v1135 = vunpack.c.h.b16 %v527
        %v1136 = vunpack.c.l.b16 %v528
        %v1137 = vunpack.c.h.b16 %v528
        %v1138 = vunpack.c.l.b16 %v529
        %v1139 = vunpack.c.h.b16 %v529
        %v1140 = vunpack.c.l.b16 %v530
        %v1141 = vunpack.c.h.b16 %v530
        %v1142 = vunpack.c.l.b16 %v531
        %v1143 = vunpack.c.h.b16 %v531
        %v1144 = vunpack.c.l.b16 %v532
        %v1145 = vunpack.c.h.b16 %v532
        %v1146 = vunpack.c.l.b16 %v533
        %v1147 = vunpack.c.h.b16 %v533
        %v1148 = vunpack.c.l.b16 %v534
        %v1149 = vunpack.c.h.b16 %v534
        %v1150 = vunpack.c.l.b16 %v535
        %v1151 = vunpack.c.h.b16 %v535
        %v1152 = vunpack.c.l.b16 %v536
        %v1153 = vunpack.c.h.b16 %v536
        %v1154 = vunpack.c.l.b16 %v537
        %v1155 = vunpack.c.h.b16 %v537
        %v1156 = vunpack.c.l.b16 %v538
        %v1157 = vunpack.c.h.b16 %v538
        %v1158 = vunpack.c.l.b16 %v539
        %v1159 = vunpack.c.h.b16 %v539
        %v1160 = vunpack.c.l.b16 %v540
        %v1161 = vunpack.c.h.b16 %v540
        %v1162 = vunpack.c.l.b16 %v541
        %v1163 = vunpack.c.h.b16 %v541
        %v1164 = vunpack.c.l.b16 %v542
        %v1165 = vunpack.c.h.b16 %v542
        %v1166 = vunpack.c.l.b16 %v543
        %v1167 = vunpack.c.h.b16 %v543
        %v1168 = vunpack.c.l.b16 %v544
        %v1169 = vunpack.c.h.b16 %v544
        %v1170 = vunpack.c.l.b16 %v545
        %v1171 = vunpack.c.h.b16 %v545
        %v1172 = vunpack.c.l.b16 %v546
        %v1173 = vunpack.c.h.b16 %v546
        %v1174 = vunpack.c.l.b16 %v547
        %v1175 = vunpack.c.h.b16 %v547
        %v1176 = vunpack.c.l.b16 %v548
        %v1177 = vunpack.c.h.b16 %v548
        %v1178 = vunpack.c.l.b16 %v549
        %v1179 = vunpack.c.h.b16 %v549
        %v1180 = vunpack.c.l.b16 %v550
        %v1181 = vunpack.c.h.b16 %v550
        %v1182 = vunpack.c.l.b16 %v551
        %v1183 = vunpack.c.h.b16 %v551
        %v1184 = vunpack.c.l.b16 %v552
        %v1185 = vunpack.c.h.b16 %v552
        %v1186 = vunpack.c.l.b16 %v553
        %v1187 = vunpack.c.h.b16 %v553
        %v1188 = vunpack.c.l.b16 %v554
        %v1189 = vunpack.c.h.b16 %v554
        %v1190 = vunpack.c.l.b16 %v555
        %v1191 = vunpack.c.h.b16 %v555
        %v1192 = vunpack.c.l.b16 %v556
        %v1193 = vunpack.c.h.b16 %v556
        %v1194 = vunpack.c.l.b16 %v557
        %v1195 = vunpack.c.h.b16 %v557
        %v1196 = vunpack.c.l.b16 %v558
        %v1197 = vunpack.c.h.b16 %v558
        %v1198 = vunpack.c.l.b16 %v559
        %v1199 = vunpack.c.h.b16 %v559
        %v1200 = vunpack.c.l.b16 %v560
        %v1201 = vunpack.c.h.b16 %v560
        %v1202 = vunpack.c.l.b16 %v561
        %v1203 = vunpack.c.h.b16 %v561
        %v1204 = vunpack.c.l.b16 %v562
        %v1205 = vunpack.c.h.b16 %v562
        %v1206 = vunpack.c.l.b16 %v563
        %v1207 = vunpack.c.h.b16 %v563
        %v1208 = vunpack.c.l.b16 %v564
        %v1209 = vunpack.c.h.b16 %v564
        %v1210 = vunpack.c.l.b16 %v565
        %v1211 = vunpack.c.h.b16 %v565
        %v1212 = vunpack.c.l.b16 %v566
        %v1213 = vunpack.c.h.b16 %v566
        %v1214 = vunpack.c.l.b16 %v567
        %v1215 = vunpack.c.h.b16 %v567
        %v1216 = vunpack.c.l.b16 %v568
        %v1217 = vunpack.c.h.b16 %v568
        %v1218 = vunpack.c.l.b16 %v569
        %v1219 = vunpack.c.h.b16 %v569
        %v1220 = vunpack.c.l.b16 %v570
        %v1221 = vunpack.c.h.b16 %v570
        %v1222 = vunpack.c.l.b16 %v571
        %v1223 = vunpack.c.h.b16 %v571
        %v1224 = vunpack.c.l.b16 %v572
        %v1225 = vunpack.c.h.b16 %v572
        %v1226 = vunpack.c.l.b16 %v573
        %v1227 = vunpack.c.h.b16 %v573
        %v1228 = vunpack.c.l.b16 %v574
        %v1229 = vunpack.c.h.b16 %v574
        %v1230 = vunpack.c.l.b16 %v575
        %v1231 = vunpack.c.h.b16 %v575
        %v1232 = vunpack.c.l.b16 %v576
        %v1233 = vunpack.c.h.b16 %v576
        %v1234 = vunpack.c.l.b16 %v577
        %v1235 = vunpack.c.h.b16 %v577
        %v1236 = vunpack.c.l.b16 %v578
        %v1237 = vunpack.c.h.b16 %v578
        %v1238 = vunpack.c.l.b16 %v579
        %v1239 = vunpack.c.h.b16 %v579
        %v1240 = vunpack.c.l.b16 %v580
        %v1241 = vunpack.c.h.b16 %v580
        %v1242 = vunpack.c.l.b16 %v581
        %v1243 = vunpack.c.h.b16 %v581
        %v1244 = vunpack.c.l.b16 %v582
        %v1245 = vunpack.c.h.b16 %v582
        %v1246 = vunpack.c.l.b16 %v583
        %v1247 = vunpack.c.h.b16 %v583
        %v1248 = vunpack.c.l.b16 %v584
        %v1249 = vunpack.c.h.b16 %v584
        %v1250 = vunpack.c.l.b16 %v585
        %v1251 = vunpack.c.h.b16 %v585
        %v1252 = vunpack.c.l.b16 %v586
        %v1253 = vunpack.c.h.b16 %v586
        %v1254 = vunpack.c.l.b16 %v587
        %v1255 = vunpack.c.h.b16 %v587
        %v1256 = vunpack.c.l.b16 %v588
        %v1257 = vunpack.c.h.b16 %v588
        %v1258 = vunpack.c.l.b16 %v589
        %v1259 = vunpack.c.h.b16 %v589
        %v1260 = vunpack.c.l.b16 %v590
        %v1261 = vunpack.c.h.b16 %v590
        %v1262 = vunpack.c.l.b16 %v591
        %v1263 = vunpack.c.h.b16 %v591
        %v1264 = vpack.c.b16 %v820, %v816
        %v1265 = vpack.c.b16 %v821, %v817
        %v1266 = vpack.c.b16 %v822, %v818
        %v1267 = vpack.c.b16 %v823, %v819
        %v1268 = vpack.c.b16 %v828, %v824
        %v1269 = vpack.c.b16 %v829, %v825
        %v1270 = vpack.c.b16 %v830, %v826
        %v1271 = vpack.c.b16 %v831, %v827
        %v1272 = vpack.c.b16 %v836, %v832
        %v1273 = vpack.c.b16 %v837, %v833
        %v1274 = vpack.c.b16 %v838, %v834
        %v1275 = vpack.c.b16 %v839, %v835
        %v1276 = vpack.c.b16 %v844, %v840
        %v1277 = vpack.c.b16 %v845, %v841
        %v1278 = vpack.c.b16 %v846, %v842
        %v1279 = vpack.c.b16 %v847, %v843
        %v1280 = vpack.c.b16 %v852, %v848
        %v1281 = vpack.c.b16 %v853, %v849
        %v1282 = vpack.c.b16 %v854, %v850
        %v1283 = vpack.c.b16 %v855, %v851
        %v1284 = vpack.c.b16 %v860, %v856
        %v1285 = vpack.c.b16 %v861, %v857
        %v1286 = vpack.c.b16 %v862, %v858
        %v1287 = vpack.c.b16 %v863, %v859
        %v1288 = vpack.c.b16 %v868, %v864
        %v1289 = vpack.c.b16 %v869, %v865
        %v1290 = vpack.c.b16 %v870, %v866
        %v1291 = vpack.c.b16 %v871, %v867
        %v1292 = vpack.c.b16 %v876, %v872
        %v1293 = vpack.c.b16 %v877, %v873
        %v1294 = vpack.c.b16 %v878, %v874
        %v1295 = vpack.c.b16 %v879, %v875
        %v1296 = vpack.c.b16 %v884, %v880
        %v1297 = vpack.c.b16 %v885, %v881
        %v1298 = vpack.c.b16 %v886, %v882
        %v1299 = vpack.c.b16 %v887, %v883
        %v1300 = vpack.c.b16 %v892, %v888
        %v1301 = vpack.c.b16 %v893, %v889
        %v1302 = vpack.c.b16 %v894, %v890
        %v1303 = vpack.c.b16 %v895, %v891
        %v1304 = vpack.c.b16 %v900, %v896
        %v1305 = vpack.c.b16 %v901, %v897
        %v1306 = vpack.c.b16 %v902, %v898
        %v1307 = vpack.c.b16 %v903, %v899
        %v1308 = vpack.c.b16 %v908, %v904
        %v1309 = vpack.c.b16 %v909, %v905
        %v1310 = vpack.c.b16 %v910, %v906
        %v1311 = vpack.c.b16 %v911, %v907
        %v1312 = vpack.c.b16 %v916, %v912
        %v1313 = vpack.c.b16 %v917, %v913
        %v1314 = vpack.c.b16 %v918, %v914
        %v1315 = vpack.c.b16 %v919, %v915
        %v1316 = vpack.c.b16 %v924, %v920
        %v1317 = vpack.c.b16 %v925, %v921
        %v1318 = vpack.c.b16 %v926, %v922
        %v1319 = vpack.c.b16 %v927, %v923
        %v1320 = vpack.c.b16 %v932, %v928
        %v1321 = vpack.c.b16 %v933, %v929
        %v1322 = vpack.c.b16 %v934, %v930
        %v1323 = vpack.c.b16 %v935, %v931
        %v1324 = vpack.c.b16 %v940, %v936
        %v1325 = vpack.c.b16 %v941, %v937
        %v1326 = vpack.c.b16 %v942, %v938
        %v1327 = vpack.c.b16 %v943, %v939
        %v1328 = vpack.c.b16 %v948, %v944
        %v1329 = vpack.c.b16 %v949, %v945
        %v1330 = vpack.c.b16 %v950, %v946
        %v1331 = vpack.c.b16 %v951, %v947
        %v1332 = vpack.c.b16 %v956, %v952
        %v1333 = vpack.c.b16 %v957, %v953
        %v1334 = vpack.c.b16 %v958, %v954
        %v1335 = vpack.c.b16 %v959, %v955
        %v1336 = vpack.c.b16 %v964, %v960
        %v1337 = vpack.c.b16 %v965, %v961
        %v1338 = vpack.c.b16 %v966, %v962
        %v1339 = vpack.c.b16 %v967, %v963
        %v1340 = vpack.c.b16 %v972, %v968
        %v1341 = vpack.c.b16 %v973, %v969
        %v1342 = vpack.c.b16 %v974, %v970
        %v1343 = vpack.c.b16 %v975, %v971
        %v1344 = vpack.c.b16 %v980, %v976
        %v1345 = vpack.c.b16 %v981, %v977
        %v1346 = vpack.c.b16 %v982, %v978
        %v1347 = vpack.c.b16 %v983, %v979
        %v1348 = vpack.c.b16 %v988, %v984
        %v1349 = vpack.c.b16 %v989, %v985
        %v1350 = vpack.c.b16 %v990, %v986
        %v1351 = vpack.c.b16 %v991, %v987
        %v1352 = vpack.c.b16 %v996, %v992
        %v1353 = vpack.c.b16 %v997, %v993
        %v1354 = vpack.c.b16 %v998, %v994
        %v1355 = vpack.c.b16 %v999, %v995
        %v1356 = vpack.c.b16 %v1004, %v1000
        %v1357 = vpack.c.b16 %v1005, %v1001
        %v1358 = vpack.c.b16 %v1006, %v1002
        %v1359 = vpack.c.b16 %v1007, %v1003
        %v1360 = vpack.c.b16 %v1012, %v1008
        %v1361 = vpack.c.b16 %v1013, %v1009
        %v1362 = vpack.c.b16 %v1014, %v1010
        %v1363 = vpack.c.b16 %v1015, %v1011
        %v1364 = vpack.c.b16 %v1020, %v1016
        %v1365 = vpack.c.b16 %v1021, %v1017
        %v1366 = vpack.c.b16 %v1022, %v1018
        %v1367 = vpack.c.b16 %v1023, %v1019
        %v1368 = vpack.c.b16 %v1028, %v1024
        %v1369 = vpack.c.b16 %v1029, %v1025
        %v1370 = vpack.c.b16 %v1030, %v1026
        %v1371 = vpack.c.b16 %v1031, %v1027
        %v1372 = vpack.c.b16 %v1036, %v1032
        %v1373 = vpack.c.b16 %v1037, %v1033
        %v1374 = vpack.c.b16 %v1038, %v1034
        %v1375 = vpack.c.b16 %v1039, %v1035
        %v1376 = vpack.c.b16 %v1044, %v1040
        %v1377 = vpack.c.b16 %v1045, %v1041
        %v1378 = vpack.c.b16 %v1046, %v1042
        %v1379 = vpack.c.b16 %v1047, %v1043
        %v1380 = vpack.c.b16 %v1052, %v1048
        %v1381 = vpack.c.b16 %v1053, %v1049
        %v1382 = vpack.c.b16 %v1054, %v1050
        %v1383 = vpack.c.b16 %v1055, %v1051
        %v1384 = vpack.c.b16 %v1060, %v1056
        %v1385 = vpack.c.b16 %v1061, %v1057
        %v1386 = vpack.c.b16 %v1062, %v1058
        %v1387 = vpack.c.b16 %v1063, %v1059
        %v1388 = vpack.c.b16 %v1068, %v1064
        %v1389 = vpack.c.b16 %v1069, %v1065
        %v1390 = vpack.c.b16 %v1070, %v1066
        %v1391 = vpack.c.b16 %v1071, %v1067
        %v1392 = vpack.c.b16 %v1076, %v1072
        %v1393 = vpack.c.b16 %v1077, %v1073
        %v1394 = vpack.c.b16 %v1078, %v1074
        %v1395 = vpack.c.b16 %v1079, %v1075
        %v1396 = vpack.c.b16 %v1084, %v1080
        %v1397 = vpack.c.b16 %v1085, %v1081
        %v1398 = vpack.c.b16 %v1086, %v1082
        %v1399 = vpack.c.b16 %v1087, %v1083
        %v1400 = vpack.c.b16 %v1092, %v1088
        %v1401 = vpack.c.b16 %v1093, %v1089
        %v1402 = vpack.c.b16 %v1094, %v1090
        %v1403 = vpack.c.b16 %v1095, %v1091
        %v1404 = vpack.c.b16 %v1100, %v1096
        %v1405 = vpack.c.b16 %v1101, %v1097
        %v1406 = vpack.c.b16 %v1102, %v1098
        %v1407 = vpack.c.b16 %v1103, %v1099
        %v1408 = vpack.c.b16 %v1108, %v1104
        %v1409 = vpack.c.b16 %v1109, %v1105
        %v1410 = vpack.c.b16 %v1110, %v1106
        %v1411 = vpack.c.b16 %v1111, %v1107
        %v1412 = vpack.c.b16 %v1116, %v1112
        %v1413 = vpack.c.b16 %v1117, %v1113
        %v1414 = vpack.c.b16 %v1118, %v1114
        %v1415 = vpack.c.b16 %v1119, %v1115
        %v1416 = vpack.c.b16 %v1124, %v1120
        %v1417 = vpack.c.b16 %v1125, %v1121
        %v1418 = vpack.c.b16 %v1126, %v1122
        %v1419 = vpack.c.b16 %v1127, %v1123
        %v1420 = vpack.c.b16 %v1132, %v1128
        %v1421 = vpack.c.b16 %v1133, %v1129
        %v1422 = vpack.c.b16 %v1134, %v1130
        %v1423 = vpack.c.b16 %v1135, %v1131
        %v1424 = vpack.c.b16 %v1140, %v1136
        %v1425 = vpack.c.b16 %v1141, %v1137
        %v1426 = vpack.c.b16 %v1142, %v1138
        %v1427 = vpack.c.b16 %v1143, %v1139
        %v1428 = vpack.c.b16 %v1148, %v1144
        %v1429 = vpack.c.b16 %v1149, %v1145
        %v1430 = vpack.c.b16 %v1150, %v1146
        %v1431 = vpack.c.b16 %v1151, %v1147
        %v1432 = vpack.c.b16 %v1156, %v1152
        %v1433 = vpack.c.b16 %v1157, %v1153
        %v1434 = vpack.c.b16 %v1158, %v1154
        %v1435 = vpack.c.b16 %v1159, %v1155
        %v1436 = vpack.c.b16 %v1164, %v1160
        %v1437 = vpack.c.b16 %v1165, %v1161
        %v1438 = vpack.c.b16 %v1166, %v1162
        %v1439 = vpack.c.b16 %v1167, %v1163
        %v1440 = vpack.c.b16 %v1172, %v1168
        %v1441 = vpack.c.b16 %v1173, %v1169
        %v1442 = vpack.c.b16 %v1174, %v1170
        %v1443 = vpack.c.b16 %v1175, %v1171
        %v1444 = vpack.c.b16 %v1180, %v1176
        %v1445 = vpack.c.b16 %v1181, %v1177
        %v1446 = vpack.c.b16 %v1182, %v1178
        %v1447 = vpack.c.b16 %v1183, %v1179
        %v1448 = vpack.c.b16 %v1188, %v1184
        %v1449 = vpack.c.b16 %v1189, %v1185
        %v1450 = vpack.c.b16 %v1190, %v1186
        %v1451 = vpack.c.b16 %v1191, %v1187
        %v1452 = vpack.c.b16 %v1196, %v1192
        %v1453 = vpack.c.b16 %v1197, %v1193
        %v1454 = vpack.c.b16 %v1198, %v1194
        %v1455 = vpack.c.b16 %v1199, %v1195
        %v1456 = vpack.c.b16 %v1204, %v1200
        %v1457 = vpack.c.b16 %v1205, %v1201
        %v1458 = vpack.c.b16 %v1206, %v1202
        %v1459 = vpack.c.b16 %v1207, %v1203
        %v1460 = vpack.c.b16 %v1212, %v1208
        %v1461 = vpack.c.b16 %v1213, %v1209
        %v1462 = vpack.c.b16 %v1214, %v1210
        %v1463 = vpack.c.b16 %v1215, %v1211
        %v1464 = vpack.c.b16 %v1220, %v1216
        %v1465 = vpack.c.b16 %v1221, %v1217
        %v1466 = vpack.c.b16 %v1222, %v1218
        %v1467 = vpack.c.b16 %v1223, %v1219
        %v1468 = vpack.c.b16 %v1228, %v1224
        %v1469 = vpack.c.b16 %v1229, %v1225
        %v1470 = vpack.c.b16 %v1230, %v1226
        %v1471 = vpack.c.b16 %v1231, %v1227
        %v1472 = vpack.c.b16 %v1236, %v1232
        %v1473 = vpack.c.b16 %v1237, %v1233
        %v1474 = vpack.c.b16 %v1238, %v1234
        %v1475 = vpack.c.b16 %v1239, %v1235
        %v1476 = vpack.c.b16 %v1244, %v1240
        %v1477 = vpack.c.b16 %v1245, %v1241
        %v1478 = vpack.c.b16 %v1246, %v1242
        %v1479 = vpack.c.b16 %v1247, %v1243
        %v1480 = vpack.c.b16 %v1252, %v1248
        %v1481 = vpack.c.b16 %v1253, %v1249
        %v1482 = vpack.c.b16 %v1254, %v1250
        %v1483 = vpack.c.b16 %v1255, %v1251
        %v1484 = vpack.c.b16 %v1260, %v1256
        %v1485 = vpack.c.b16 %v1261, %v1257
        %v1486 = vpack.c.b16 %v1262, %v1258
        %v1487 = vpack.c.b16 %v1263, %v1259
        %1712 = vmatprep.subr.bf16.mxu0 %v1265
        %1713 = vmatpush1.bf16.msra.mxu0 %v1264
        %1714 = vmatprep.subr.bf16.mxu0 %v1269
        %1715 = vmatpush1.bf16.msra.mxu0 %v1268
        %1716 = vmatprep.subr.bf16.mxu0 %v1273
        %1717 = vmatpush1.bf16.msra.mxu0 %v1272
        %1718 = vmatprep.subr.bf16.mxu0 %v1277
        %1719 = vmatpush1.bf16.msra.mxu0 %v1276
        %1720 = vmatprep.subr.bf16.mxu0 %v1281
        %1721 = vmatpush1.bf16.msra.mxu0 %v1280
        %1722 = vmatprep.subr.bf16.mxu0 %v1285
        %1723 = vmatpush1.bf16.msra.mxu0 %v1284
        %1724 = vmatprep.subr.bf16.mxu0 %v1289
        %1725 = vmatpush1.bf16.msra.mxu0 %v1288
        %1726 = vmatprep.subr.bf16.mxu0 %v1293
        %1727 = vmatpush1.bf16.msra.mxu0 %v1292
        %1728 = vmatprep.subr.bf16.mxu0 %v1297
        %1729 = vmatpush1.bf16.msra.mxu0 %v1296
        %1730 = vmatprep.subr.bf16.mxu0 %v1301
        %1731 = vmatpush1.bf16.msra.mxu0 %v1300
        %1732 = vmatprep.subr.bf16.mxu0 %v1305
        %1733 = vmatpush1.bf16.msra.mxu0 %v1304
        %1734 = vmatprep.subr.bf16.mxu0 %v1309
        %1735 = vmatpush1.bf16.msra.mxu0 %v1308
        %1736 = vmatprep.subr.bf16.mxu0 %v1313
        %1737 = vmatpush1.bf16.msra.mxu0 %v1312
        %1738 = vmatprep.subr.bf16.mxu0 %v1317
        %1739 = vmatpush1.bf16.msra.mxu0 %v1316
        %1740 = vmatprep.subr.bf16.mxu0 %v1321
        %1741 = vmatpush1.bf16.msra.mxu0 %v1320
        %1742 = vmatprep.subr.bf16.mxu0 %v1325
        %1743 = vmatpush1.bf16.msra.mxu0 %v1324
        %1744 = vmatprep.mubr.bf16.mxu0 %v362
        %1745 = vmatmul.mubr.bf16.gmra.mrb[0].mxu0 %v361
        %v1746 = vpop.f32.mrb[0].mxu0
        %v1747 = vadd.f32 0.0, %v1746
        %v1748 = vpop.f32.mrb[0].mxu0
        %v1749 = vadd.f32 0.0, %v1748
        %v1750 = vpop.f32.mrb[0].mxu0
        %v1751 = vadd.f32 0.0, %v1750
        %v1752 = vpop.f32.mrb[0].mxu0
        %v1753 = vadd.f32 0.0, %v1752
        %1754 = vdwg.mxu0
        %1755 = vmatprep.subr.bf16.mxu0 %v1329
        %1756 = vmatpush1.bf16.msra.mxu0 %v1328
        %1757 = vmatprep.subr.bf16.mxu0 %v1333
        %1758 = vmatpush1.bf16.msra.mxu0 %v1332
        %1759 = vmatprep.subr.bf16.mxu0 %v1337
        %1760 = vmatpush1.bf16.msra.mxu0 %v1336
        %1761 = vmatprep.subr.bf16.mxu0 %v1341
        %1762 = vmatpush1.bf16.msra.mxu0 %v1340
        %1763 = vmatprep.subr.bf16.mxu0 %v1345
        %1764 = vmatpush1.bf16.msra.mxu0 %v1344
        %1765 = vmatprep.subr.bf16.mxu0 %v1349
        %1766 = vmatpush1.bf16.msra.mxu0 %v1348
        %1767 = vmatprep.subr.bf16.mxu0 %v1353
        %1768 = vmatpush1.bf16.msra.mxu0 %v1352
        %1769 = vmatprep.subr.bf16.mxu0 %v1357
        %1770 = vmatpush1.bf16.msra.mxu0 %v1356
        %1771 = vmatprep.subr.bf16.mxu0 %v1361
        %1772 = vmatpush1.bf16.msra.mxu0 %v1360
        %1773 = vmatprep.subr.bf16.mxu0 %v1365
        %1774 = vmatpush1.bf16.msra.mxu0 %v1364
        %1775 = vmatprep.subr.bf16.mxu0 %v1369
        %1776 = vmatpush1.bf16.msra.mxu0 %v1368
        %1777 = vmatprep.subr.bf16.mxu0 %v1373
        %1778 = vmatpush1.bf16.msra.mxu0 %v1372
        %1779 = vmatprep.subr.bf16.mxu0 %v1377
        %1780 = vmatpush1.bf16.msra.mxu0 %v1376
        %1781 = vmatprep.subr.bf16.mxu0 %v1381
        %1782 = vmatpush1.bf16.msra.mxu0 %v1380
        %1783 = vmatprep.subr.bf16.mxu0 %v1385
        %1784 = vmatpush1.bf16.msra.mxu0 %v1384
        %1785 = vmatprep.subr.bf16.mxu0 %v1389
        %1786 = vmatpush1.bf16.msra.mxu0 %v1388
        %1787 = vmatprep.mubr.bf16.mxu0 %v364
        %1788 = vmatmul.mubr.bf16.gmra.mrb[0].mxu0 %v363
        %v1789 = vpop.f32.mrb[0].mxu0
        %v1790 = vadd.f32 %v1747, %v1789
        %v1791 = vpop.f32.mrb[0].mxu0
        %v1792 = vadd.f32 %v1749, %v1791
        %v1793 = vpop.f32.mrb[0].mxu0
        %v1794 = vadd.f32 %v1751, %v1793
        %v1795 = vpop.f32.mrb[0].mxu0
        %v1796 = vadd.f32 %v1753, %v1795
        %1797 = vdwg.mxu0
        %1798 = vmatprep.subr.bf16.mxu0 %v1393
        %1799 = vmatpush1.bf16.msra.mxu0 %v1392
        %1800 = vmatprep.subr.bf16.mxu0 %v1397
        %1801 = vmatpush1.bf16.msra.mxu0 %v1396
        %1802 = vmatprep.subr.bf16.mxu0 %v1401
        %1803 = vmatpush1.bf16.msra.mxu0 %v1400
        %1804 = vmatprep.subr.bf16.mxu0 %v1405
        %1805 = vmatpush1.bf16.msra.mxu0 %v1404
        %1806 = vmatprep.subr.bf16.mxu0 %v1409
        %1807 = vmatpush1.bf16.msra.mxu0 %v1408
        %1808 = vmatprep.subr.bf16.mxu0 %v1413
        %1809 = vmatpush1.bf16.msra.mxu0 %v1412
        %1810 = vmatprep.subr.bf16.mxu0 %v1417
        %1811 = vmatpush1.bf16.msra.mxu0 %v1416
        %1812 = vmatprep.subr.bf16.mxu0 %v1421
        %1813 = vmatpush1.bf16.msra.mxu0 %v1420
        %1814 = vmatprep.subr.bf16.mxu0 %v1425
        %1815 = vmatpush1.bf16.msra.mxu0 %v1424
        %1816 = vmatprep.subr.bf16.mxu0 %v1429
        %1817 = vmatpush1.bf16.msra.mxu0 %v1428
        %1818 = vmatprep.subr.bf16.mxu0 %v1433
        %1819 = vmatpush1.bf16.msra.mxu0 %v1432
        %1820 = vmatprep.subr.bf16.mxu0 %v1437
        %1821 = vmatpush1.bf16.msra.mxu0 %v1436
        %1822 = vmatprep.subr.bf16.mxu0 %v1441
        %1823 = vmatpush1.bf16.msra.mxu0 %v1440
        %1824 = vmatprep.subr.bf16.mxu0 %v1445
        %1825 = vmatpush1.bf16.msra.mxu0 %v1444
        %1826 = vmatprep.subr.bf16.mxu0 %v1449
        %1827 = vmatpush1.bf16.msra.mxu0 %v1448
        %1828 = vmatprep.subr.bf16.mxu0 %v1453
        %1829 = vmatpush1.bf16.msra.mxu0 %v1452
        %1830 = vmatprep.mubr.bf16.mxu0 %v366
        %1831 = vmatmul.mubr.bf16.gmra.mrb[0].mxu0 %v365
        %v1832 = vpop.f32.mrb[0].mxu0
        %v1833 = vadd.f32 %v1790, %v1832
        %v1834 = vpop.f32.mrb[0].mxu0
        %v1835 = vadd.f32 %v1792, %v1834
        %v1836 = vpop.f32.mrb[0].mxu0
        %v1837 = vadd.f32 %v1794, %v1836
        %v1838 = vpop.f32.mrb[0].mxu0
        %v1839 = vadd.f32 %v1796, %v1838
        %1840 = vdwg.mxu0
        %1841 = vmatprep.subr.bf16.mxu0 %v1457
        %1842 = vmatpush1.bf16.msra.mxu0 %v1456
        %1843 = vmatprep.subr.bf16.mxu0 %v1461
        %1844 = vmatpush1.bf16.msra.mxu0 %v1460
        %1845 = vmatprep.subr.bf16.mxu0 %v1465
        %1846 = vmatpush1.bf16.msra.mxu0 %v1464
        %1847 = vmatprep.subr.bf16.mxu0 %v1469
        %1848 = vmatpush1.bf16.msra.mxu0 %v1468
        %1849 = vmatprep.subr.bf16.mxu0 %v1473
        %1850 = vmatpush1.bf16.msra.mxu0 %v1472
        %1851 = vmatprep.subr.bf16.mxu0 %v1477
        %1852 = vmatpush1.bf16.msra.mxu0 %v1476
        %1853 = vmatprep.subr.bf16.mxu0 %v1481
        %1854 = vmatpush1.bf16.msra.mxu0 %v1480
        %1855 = vmatprep.subr.bf16.mxu0 %v1485
        %1856 = vmatpush1.bf16.msra.mxu0 %v1484
        %1857 = vmatprep.subr.bf16.mxu0 0
        %1858 = vmatpush1.bf16.msra.mxu0 0
        %1859 = vmatprep.subr.bf16.mxu0 0
        %1860 = vmatpush1.bf16.msra.mxu0 0
        %1861 = vmatprep.subr.bf16.mxu0 0
        %1862 = vmatpush1.bf16.msra.mxu0 0
        %1863 = vmatprep.subr.bf16.mxu0 0
        %1864 = vmatpush1.bf16.msra.mxu0 0
        %1865 = vmatprep.subr.bf16.mxu0 0
        %1866 = vmatpush1.bf16.msra.mxu0 0
        %1867 = vmatprep.subr.bf16.mxu0 0
        %1868 = vmatpush1.bf16.msra.mxu0 0
        %1869 = vmatprep.subr.bf16.mxu0 0
        %1870 = vmatpush1.bf16.msra.mxu0 0
        %1871 = vmatprep.subr.bf16.mxu0 0
        %1872 = vmatpush1.bf16.msra.mxu0 0
        %1873 = vmatprep.mubr.bf16.mxu0 0
        %1874 = vmatmul.mubr.bf16.gmra.mrb[0].mxu0 %v367
        %v1875 = vpop.f32.mrb[0].mxu0
        %v1876 = vadd.f32 %v1833, %v1875
        %v1877 = vpop.f32.mrb[0].mxu0
        %v1878 = vadd.f32 %v1835, %v1877
        %v1879 = vpop.f32.mrb[0].mxu0
        %v1880 = vadd.f32 %v1837, %v1879
        %v1881 = vpop.f32.mrb[0].mxu0
        %v1882 = vadd.f32 %v1839, %v1881
        %1883 = vdwg.mxu0
        %1884 = vmatprep.subr.bf16.mxu0 %v1267
        %1885 = vmatpush1.bf16.msra.mxu0 %v1266
        %1886 = vmatprep.subr.bf16.mxu0 %v1271
        %1887 = vmatpush1.bf16.msra.mxu0 %v1270
        %1888 = vmatprep.subr.bf16.mxu0 %v1275
        %1889 = vmatpush1.bf16.msra.mxu0 %v1274
        %1890 = vmatprep.subr.bf16.mxu0 %v1279
        %1891 = vmatpush1.bf16.msra.mxu0 %v1278
        %1892 = vmatprep.subr.bf16.mxu0 %v1283
        %1893 = vmatpush1.bf16.msra.mxu0 %v1282
        %1894 = vmatprep.subr.bf16.mxu0 %v1287
        %1895 = vmatpush1.bf16.msra.mxu0 %v1286
        %1896 = vmatprep.subr.bf16.mxu0 %v1291
        %1897 = vmatpush1.bf16.msra.mxu0 %v1290
        %1898 = vmatprep.subr.bf16.mxu0 %v1295
        %1899 = vmatpush1.bf16.msra.mxu0 %v1294
        %1900 = vmatprep.subr.bf16.mxu0 %v1299
        %1901 = vmatpush1.bf16.msra.mxu0 %v1298
        %1902 = vmatprep.subr.bf16.mxu0 %v1303
        %1903 = vmatpush1.bf16.msra.mxu0 %v1302
        %1904 = vmatprep.subr.bf16.mxu0 %v1307
        %1905 = vmatpush1.bf16.msra.mxu0 %v1306
        %1906 = vmatprep.subr.bf16.mxu0 %v1311
        %1907 = vmatpush1.bf16.msra.mxu0 %v1310
        %1908 = vmatprep.subr.bf16.mxu0 %v1315
        %1909 = vmatpush1.bf16.msra.mxu0 %v1314
        %1910 = vmatprep.subr.bf16.mxu0 %v1319
        %1911 = vmatpush1.bf16.msra.mxu0 %v1318
        %1912 = vmatprep.subr.bf16.mxu0 %v1323
        %1913 = vmatpush1.bf16.msra.mxu0 %v1322
        %1914 = vmatprep.subr.bf16.mxu0 %v1327
        %1915 = vmatpush1.bf16.msra.mxu0 %v1326
        %1916 = vmatprep.mubr.bf16.mxu0 %v362
        %1917 = vmatmul.mubr.bf16.gmra.mrb[0].mxu0 %v361
        %v1918 = vpop.f32.mrb[0].mxu0
        %v1919 = vadd.f32 0.0, %v1918
        %v1920 = vpop.f32.mrb[0].mxu0
        %v1921 = vadd.f32 0.0, %v1920
        %v1922 = vpop.f32.mrb[0].mxu0
        %v1923 = vadd.f32 0.0, %v1922
        %v1924 = vpop.f32.mrb[0].mxu0
        %v1925 = vadd.f32 0.0, %v1924
        %1926 = vdwg.mxu0
        %1927 = vmatprep.subr.bf16.mxu0 %v1331
        %1928 = vmatpush1.bf16.msra.mxu0 %v1330
        %1929 = vmatprep.subr.bf16.mxu0 %v1335
        %1930 = vmatpush1.bf16.msra.mxu0 %v1334
        %1931 = vmatprep.subr.bf16.mxu0 %v1339
        %1932 = vmatpush1.bf16.msra.mxu0 %v1338
        %1933 = vmatprep.subr.bf16.mxu0 %v1343
        %1934 = vmatpush1.bf16.msra.mxu0 %v1342
        %1935 = vmatprep.subr.bf16.mxu0 %v1347
        %1936 = vmatpush1.bf16.msra.mxu0 %v1346
        %1937 = vmatprep.subr.bf16.mxu0 %v1351
        %1938 = vmatpush1.bf16.msra.mxu0 %v1350
        %1939 = vmatprep.subr.bf16.mxu0 %v1355
        %1940 = vmatpush1.bf16.msra.mxu0 %v1354
        %1941 = vmatprep.subr.bf16.mxu0 %v1359
        %1942 = vmatpush1.bf16.msra.mxu0 %v1358
        %1943 = vmatprep.subr.bf16.mxu0 %v1363
        %1944 = vmatpush1.bf16.msra.mxu0 %v1362
        %1945 = vmatprep.subr.bf16.mxu0 %v1367
        %1946 = vmatpush1.bf16.msra.mxu0 %v1366
        %1947 = vmatprep.subr.bf16.mxu0 %v1371
        %1948 = vmatpush1.bf16.msra.mxu0 %v1370
        %1949 = vmatprep.subr.bf16.mxu0 %v1375
        %1950 = vmatpush1.bf16.msra.mxu0 %v1374
        %1951 = vmatprep.subr.bf16.mxu0 %v1379
        %1952 = vmatpush1.bf16.msra.mxu0 %v1378
        %1953 = vmatprep.subr.bf16.mxu0 %v1383
        %1954 = vmatpush1.bf16.msra.mxu0 %v1382
        %1955 = vmatprep.subr.bf16.mxu0 %v1387
        %1956 = vmatpush1.bf16.msra.mxu0 %v1386
        %1957 = vmatprep.subr.bf16.mxu0 %v1391
        %1958 = vmatpush1.bf16.msra.mxu0 %v1390
        %1959 = vmatprep.mubr.bf16.mxu0 %v364
        %1960 = vmatmul.mubr.bf16.gmra.mrb[0].mxu0 %v363
        %v1961 = vpop.f32.mrb[0].mxu0
        %v1962 = vadd.f32 %v1919, %v1961
        %v1963 = vpop.f32.mrb[0].mxu0
        %v1964 = vadd.f32 %v1921, %v1963
        %v1965 = vpop.f32.mrb[0].mxu0
        %v1966 = vadd.f32 %v1923, %v1965
        %v1967 = vpop.f32.mrb[0].mxu0
        %v1968 = vadd.f32 %v1925, %v1967
        %1969 = vdwg.mxu0
        %1970 = vmatprep.subr.bf16.mxu0 %v1395
        %1971 = vmatpush1.bf16.msra.mxu0 %v1394
        %1972 = vmatprep.subr.bf16.mxu0 %v1399
        %1973 = vmatpush1.bf16.msra.mxu0 %v1398
        %1974 = vmatprep.subr.bf16.mxu0 %v1403
        %1975 = vmatpush1.bf16.msra.mxu0 %v1402
        %1976 = vmatprep.subr.bf16.mxu0 %v1407
        %1977 = vmatpush1.bf16.msra.mxu0 %v1406
        %1978 = vmatprep.subr.bf16.mxu0 %v1411
        %1979 = vmatpush1.bf16.msra.mxu0 %v1410
        %1980 = vmatprep.subr.bf16.mxu0 %v1415
        %1981 = vmatpush1.bf16.msra.mxu0 %v1414
        %1982 = vmatprep.subr.bf16.mxu0 %v1419
        %1983 = vmatpush1.bf16.msra.mxu0 %v1418
        %1984 = vmatprep.subr.bf16.mxu0 %v1423
        %1985 = vmatpush1.bf16.msra.mxu0 %v1422
        %1986 = vmatprep.subr.bf16.mxu0 %v1427
        %1987 = vmatpush1.bf16.msra.mxu0 %v1426
        %1988 = vmatprep.subr.bf16.mxu0 %v1431
        %1989 = vmatpush1.bf16.msra.mxu0 %v1430
        %1990 = vmatprep.subr.bf16.mxu0 %v1435
        %1991 = vmatpush1.bf16.msra.mxu0 %v1434
        %1992 = vmatprep.subr.bf16.mxu0 %v1439
        %1993 = vmatpush1.bf16.msra.mxu0 %v1438
        %1994 = vmatprep.subr.bf16.mxu0 %v1443
        %1995 = vmatpush1.bf16.msra.mxu0 %v1442
        %1996 = vmatprep.subr.bf16.mxu0 %v1447
        %1997 = vmatpush1.bf16.msra.mxu0 %v1446
        %1998 = vmatprep.subr.bf16.mxu0 %v1451
        %1999 = vmatpush1.bf16.msra.mxu0 %v1450
        %2000 = vmatprep.subr.bf16.mxu0 %v1455
        %2001 = vmatpush1.bf16.msra.mxu0 %v1454
        %2002 = vmatprep.mubr.bf16.mxu0 %v366
        %2003 = vmatmul.mubr.bf16.gmra.mrb[0].mxu0 %v365
        %v2004 = vpop.f32.mrb[0].mxu0
        %v2005 = vadd.f32 %v1962, %v2004
        %v2006 = vpop.f32.mrb[0].mxu0
        %v2007 = vadd.f32 %v1964, %v2006
        %v2008 = vpop.f32.mrb[0].mxu0
        %v2009 = vadd.f32 %v1966, %v2008
        %v2010 = vpop.f32.mrb[0].mxu0
        %v2011 = vadd.f32 %v1968, %v2010
        %2012 = vdwg.mxu0
        %2013 = vmatprep.subr.bf16.mxu0 %v1459
        %2014 = vmatpush1.bf16.msra.mxu0 %v1458
        %2015 = vmatprep.subr.bf16.mxu0 %v1463
        %2016 = vmatpush1.bf16.msra.mxu0 %v1462
        %2017 = vmatprep.subr.bf16.mxu0 %v1467
        %2018 = vmatpush1.bf16.msra.mxu0 %v1466
        %2019 = vmatprep.subr.bf16.mxu0 %v1471
        %2020 = vmatpush1.bf16.msra.mxu0 %v1470
        %2021 = vmatprep.subr.bf16.mxu0 %v1475
        %2022 = vmatpush1.bf16.msra.mxu0 %v1474
        %2023 = vmatprep.subr.bf16.mxu0 %v1479
        %2024 = vmatpush1.bf16.msra.mxu0 %v1478
        %2025 = vmatprep.subr.bf16.mxu0 %v1483
        %2026 = vmatpush1.bf16.msra.mxu0 %v1482
        %2027 = vmatprep.subr.bf16.mxu0 %v1487
        %2028 = vmatpush1.bf16.msra.mxu0 %v1486
        %2029 = vmatprep.subr.bf16.mxu0 0
        %2030 = vmatpush1.bf16.msra.mxu0 0
        %2031 = vmatprep.subr.bf16.mxu0 0
        %2032 = vmatpush1.bf16.msra.mxu0 0
        %2033 = vmatprep.subr.bf16.mxu0 0
        %2034 = vmatpush1.bf16.msra.mxu0 0
        %2035 = vmatprep.subr.bf16.mxu0 0
        %2036 = vmatpush1.bf16.msra.mxu0 0
        %2037 = vmatprep.subr.bf16.mxu0 0
        %2038 = vmatpush1.bf16.msra.mxu0 0
        %2039 = vmatprep.subr.bf16.mxu0 0
        %2040 = vmatpush1.bf16.msra.mxu0 0
        %2041 = vmatprep.subr.bf16.mxu0 0
        %2042 = vmatpush1.bf16.msra.mxu0 0
        %2043 = vmatprep.subr.bf16.mxu0 0
        %2044 = vmatpush1.bf16.msra.mxu0 0
        %2045 = vmatprep.mubr.bf16.mxu0 0
        %2046 = vmatmul.mubr.bf16.gmra.mrb[0].mxu0 %v367
        %v2047 = vpop.f32.mrb[0].mxu0
        %v2048 = vadd.f32 %v2005, %v2047
        %v2049 = vpop.f32.mrb[0].mxu0
        %v2050 = vadd.f32 %v2007, %v2049
        %v2051 = vpop.f32.mrb[0].mxu0
        %v2052 = vadd.f32 %v2009, %v2051
        %v2053 = vpop.f32.mrb[0].mxu0
        %v2054 = vadd.f32 %v2011, %v2053
        %2055 = vdwg.mxu0
        %v2056 = vmax.f32 %v1876, 0.0
        %v2057 = vmax.f32 %v1878, 0.0
        %v2058 = vmax.f32 %v2048, 0.0
        %v2059 = vmax.f32 %v2050, 0.0
        %v2060 = vmax.f32 %v1880, 0.0
        %v2061 = vmax.f32 %v1882, 0.0
        %v2062 = vmax.f32 %v2052, 0.0
        %v2063 = vmax.f32 %v2054, 0.0
        %v2064 = vpack.c.bf16 %v2060, %v2056
        %v2065 = vpack.c.bf16 %v2061, %v2057
        %v2066 = vpack.c.bf16 %v2062, %v2058
        %v2067 = vpack.c.bf16 %v2063, %v2059
        %v2068 = vld [vmem:[#allocation7] sm:$0xff]
        %v2069 = vld [vmem:[#allocation7 + $0x8] sm:$0xff]
        %v2070 = vld [vmem:[#allocation7 + $0x10] sm:$0xff]
        %v2071 = vld [vmem:[#allocation7 + $0x18] sm:$0xff]
        %v2072 = vld [vmem:[#allocation7 + $0x20] sm:$0xff]
        %v2073 = vld [vmem:[#allocation7 + $0x28] sm:$0xff]
        %v2074 = vld [vmem:[#allocation7 + $0x30] sm:$0xff]
        %v2075 = vld [vmem:[#allocation7 + $0x38] sm:$0xff]
        %v2076 = vld [vmem:[#allocation7 + $0x40] sm:$0xff]
        %v2077 = vld [vmem:[#allocation7 + $0x48] sm:$0xff]
        %v2078 = vld [vmem:[#allocation7 + $0x50] sm:$0xff]
        %v2079 = vld [vmem:[#allocation7 + $0x58] sm:$0xff]
        %v2080 = vld [vmem:[#allocation7 + $0x60] sm:$0xff]
        %v2081 = vld [vmem:[#allocation7 + $0x68] sm:$0xff]
        %v2082 = vld [vmem:[#allocation7 + $0x70] sm:$0xff]
        %v2083 = vld [vmem:[#allocation7 + $0x78] sm:$0xff]
        %v2084 = vld [vmem:[#allocation7 + $0x80] sm:$0xff]
        %v2085 = vld [vmem:[#allocation7 + $0x88] sm:$0xff]
        %v2086 = vld [vmem:[#allocation7 + $0x90] sm:$0xff]
        %v2087 = vld [vmem:[#allocation7 + $0x98] sm:$0xff]
        %v2088 = vld [vmem:[#allocation7 + $0xa0] sm:$0xff]
        %v2089 = vld [vmem:[#allocation7 + $0xa8] sm:$0xff]
        %v2090 = vld [vmem:[#allocation7 + $0xb0] sm:$0xff]
        %v2091 = vld [vmem:[#allocation7 + $0xb8] sm:$0xff]
        %v2092 = vld [vmem:[#allocation7 + $0xc0] sm:$0xff]
        %v2093 = vld [vmem:[#allocation7 + $0xc8] sm:$0xff]
        %v2094 = vld [vmem:[#allocation7 + $0xd0] sm:$0xff]
        %v2095 = vld [vmem:[#allocation7 + $0xd8] sm:$0xff]
        %v2096 = vld [vmem:[#allocation7 + $0xe0] sm:$0xff]
        %v2097 = vld [vmem:[#allocation7 + $0xe8] sm:$0xff]
        %v2098 = vld [vmem:[#allocation7 + $0xf0] sm:$0xff]
        %v2099 = vld [vmem:[#allocation7 + $0xf8] sm:$0xff]
        %v2100 = vld [vmem:[#allocation7 + $0x100] sm:$0xff]
        %v2101 = vld [vmem:[#allocation7 + $0x108] sm:$0xff]
        %v2102 = vld [vmem:[#allocation7 + $0x110] sm:$0xff]
        %v2103 = vld [vmem:[#allocation7 + $0x118] sm:$0xff]
        %v2104 = vld [vmem:[#allocation7 + $0x120] sm:$0xff]
        %v2105 = vld [vmem:[#allocation7 + $0x128] sm:$0xff]
        %v2106 = vld [vmem:[#allocation7 + $0x130] sm:$0xff]
        %v2107 = vld [vmem:[#allocation7 + $0x138] sm:$0xff]
        %v2108 = vld [vmem:[#allocation7 + $0x140] sm:$0xff]
        %v2109 = vld [vmem:[#allocation7 + $0x148] sm:$0xff]
        %v2110 = vld [vmem:[#allocation7 + $0x150] sm:$0xff]
        %v2111 = vld [vmem:[#allocation7 + $0x158] sm:$0xff]
        %v2112 = vld [vmem:[#allocation7 + $0x160] sm:$0xff]
        %v2113 = vld [vmem:[#allocation7 + $0x168] sm:$0xff]
        %v2114 = vld [vmem:[#allocation7 + $0x170] sm:$0xff]
        %v2115 = vld [vmem:[#allocation7 + $0x178] sm:$0xff]
        %v2116 = vld [vmem:[#allocation7 + $0x180] sm:$0xff]
        %v2117 = vld [vmem:[#allocation7 + $0x188] sm:$0xff]
        %v2118 = vld [vmem:[#allocation7 + $0x190] sm:$0xff]
        %v2119 = vld [vmem:[#allocation7 + $0x198] sm:$0xff]
        %v2120 = vld [vmem:[#allocation7 + $0x1a0] sm:$0xff]
        %v2121 = vld [vmem:[#allocation7 + $0x1a8] sm:$0xff]
        %v2122 = vld [vmem:[#allocation7 + $0x1b0] sm:$0xff]
        %v2123 = vld [vmem:[#allocation7 + $0x1b8] sm:$0xff]
        %v2124 = vld [vmem:[#allocation7 + $0x1c0] sm:$0xff]
        %v2125 = vld [vmem:[#allocation7 + $0x1c8] sm:$0xff]
        %v2126 = vld [vmem:[#allocation7 + $0x1d0] sm:$0xff]
        %v2127 = vld [vmem:[#allocation7 + $0x1d8] sm:$0xff]
        %v2128 = vld [vmem:[#allocation7 + $0x1e0] sm:$0xff]
        %v2129 = vld [vmem:[#allocation7 + $0x1e8] sm:$0xff]
        %v2130 = vld [vmem:[#allocation7 + $0x1f0] sm:$0xff]
        %v2131 = vld [vmem:[#allocation7 + $0x1f8] sm:$0xff]
        %v2196 = vunpack.c.l.b16 %v2068
        %v2197 = vunpack.c.h.b16 %v2068
        %v2198 = vunpack.c.l.b16 %v2069
        %v2199 = vunpack.c.h.b16 %v2069
        %v2200 = vunpack.c.l.b16 %v2070
        %v2201 = vunpack.c.h.b16 %v2070
        %v2202 = vunpack.c.l.b16 %v2071
        %v2203 = vunpack.c.h.b16 %v2071
        %v2204 = vunpack.c.l.b16 %v2072
        %v2205 = vunpack.c.h.b16 %v2072
        %v2206 = vunpack.c.l.b16 %v2073
        %v2207 = vunpack.c.h.b16 %v2073
        %v2208 = vunpack.c.l.b16 %v2074
        %v2209 = vunpack.c.h.b16 %v2074
        %v2210 = vunpack.c.l.b16 %v2075
        %v2211 = vunpack.c.h.b16 %v2075
        %v2212 = vunpack.c.l.b16 %v2076
        %v2213 = vunpack.c.h.b16 %v2076
        %v2214 = vunpack.c.l.b16 %v2077
        %v2215 = vunpack.c.h.b16 %v2077
        %v2216 = vunpack.c.l.b16 %v2078
        %v2217 = vunpack.c.h.b16 %v2078
        %v2218 = vunpack.c.l.b16 %v2079
        %v2219 = vunpack.c.h.b16 %v2079
        %v2220 = vunpack.c.l.b16 %v2080
        %v2221 = vunpack.c.h.b16 %v2080
        %v2222 = vunpack.c.l.b16 %v2081
        %v2223 = vunpack.c.h.b16 %v2081
        %v2224 = vunpack.c.l.b16 %v2082
        %v2225 = vunpack.c.h.b16 %v2082
        %v2226 = vunpack.c.l.b16 %v2083
        %v2227 = vunpack.c.h.b16 %v2083
        %v2228 = vunpack.c.l.b16 %v2084
        %v2229 = vunpack.c.h.b16 %v2084
        %v2230 = vunpack.c.l.b16 %v2085
        %v2231 = vunpack.c.h.b16 %v2085
        %v2232 = vunpack.c.l.b16 %v2086
        %v2233 = vunpack.c.h.b16 %v2086
        %v2234 = vunpack.c.l.b16 %v2087
        %v2235 = vunpack.c.h.b16 %v2087
        %v2236 = vunpack.c.l.b16 %v2088
        %v2237 = vunpack.c.h.b16 %v2088
        %v2238 = vunpack.c.l.b16 %v2089
        %v2239 = vunpack.c.h.b16 %v2089
        %v2240 = vunpack.c.l.b16 %v2090
        %v2241 = vunpack.c.h.b16 %v2090
        %v2242 = vunpack.c.l.b16 %v2091
        %v2243 = vunpack.c.h.b16 %v2091
        %v2244 = vunpack.c.l.b16 %v2092
        %v2245 = vunpack.c.h.b16 %v2092
        %v2246 = vunpack.c.l.b16 %v2093
        %v2247 = vunpack.c.h.b16 %v2093
        %v2248 = vunpack.c.l.b16 %v2094
        %v2249 = vunpack.c.h.b16 %v2094
        %v2250 = vunpack.c.l.b16 %v2095
        %v2251 = vunpack.c.h.b16 %v2095
        %v2252 = vunpack.c.l.b16 %v2096
        %v2253 = vunpack.c.h.b16 %v2096
        %v2254 = vunpack.c.l.b16 %v2097
        %v2255 = vunpack.c.h.b16 %v2097
        %v2256 = vunpack.c.l.b16 %v2098
        %v2257 = vunpack.c.h.b16 %v2098
        %v2258 = vunpack.c.l.b16 %v2099
        %v2259 = vunpack.c.h.b16 %v2099
        %v2260 = vunpack.c.l.b16 %v2100
        %v2261 = vunpack.c.h.b16 %v2100
        %v2262 = vunpack.c.l.b16 %v2101
        %v2263 = vunpack.c.h.b16 %v2101
        %v2264 = vunpack.c.l.b16 %v2102
        %v2265 = vunpack.c.h.b16 %v2102
        %v2266 = vunpack.c.l.b16 %v2103
        %v2267 = vunpack.c.h.b16 %v2103
        %v2268 = vunpack.c.l.b16 %v2104
        %v2269 = vunpack.c.h.b16 %v2104
        %v2270 = vunpack.c.l.b16 %v2105
        %v2271 = vunpack.c.h.b16 %v2105
        %v2272 = vunpack.c.l.b16 %v2106
        %v2273 = vunpack.c.h.b16 %v2106
        %v2274 = vunpack.c.l.b16 %v2107
        %v2275 = vunpack.c.h.b16 %v2107
        %v2276 = vunpack.c.l.b16 %v2108
        %v2277 = vunpack.c.h.b16 %v2108
        %v2278 = vunpack.c.l.b16 %v2109
        %v2279 = vunpack.c.h.b16 %v2109
        %v2280 = vunpack.c.l.b16 %v2110
        %v2281 = vunpack.c.h.b16 %v2110
        %v2282 = vunpack.c.l.b16 %v2111
        %v2283 = vunpack.c.h.b16 %v2111
        %v2284 = vunpack.c.l.b16 %v2112
        %v2285 = vunpack.c.h.b16 %v2112
        %v2286 = vunpack.c.l.b16 %v2113
        %v2287 = vunpack.c.h.b16 %v2113
        %v2288 = vunpack.c.l.b16 %v2114
        %v2289 = vunpack.c.h.b16 %v2114
        %v2290 = vunpack.c.l.b16 %v2115
        %v2291 = vunpack.c.h.b16 %v2115
        %v2292 = vunpack.c.l.b16 %v2116
        %v2293 = vunpack.c.h.b16 %v2116
        %v2294 = vunpack.c.l.b16 %v2117
        %v2295 = vunpack.c.h.b16 %v2117
        %v2296 = vunpack.c.l.b16 %v2118
        %v2297 = vunpack.c.h.b16 %v2118
        %v2298 = vunpack.c.l.b16 %v2119
        %v2299 = vunpack.c.h.b16 %v2119
        %v2300 = vunpack.c.l.b16 %v2120
        %v2301 = vunpack.c.h.b16 %v2120
        %v2302 = vunpack.c.l.b16 %v2121
        %v2303 = vunpack.c.h.b16 %v2121
        %v2304 = vunpack.c.l.b16 %v2122
        %v2305 = vunpack.c.h.b16 %v2122
        %v2306 = vunpack.c.l.b16 %v2123
        %v2307 = vunpack.c.h.b16 %v2123
        %v2308 = vunpack.c.l.b16 %v2124
        %v2309 = vunpack.c.h.b16 %v2124
        %v2310 = vunpack.c.l.b16 %v2125
        %v2311 = vunpack.c.h.b16 %v2125
        %v2312 = vunpack.c.l.b16 %v2126
        %v2313 = vunpack.c.h.b16 %v2126
        %v2314 = vunpack.c.l.b16 %v2127
        %v2315 = vunpack.c.h.b16 %v2127
        %v2316 = vunpack.c.l.b16 %v2128
        %v2317 = vunpack.c.h.b16 %v2128
        %v2318 = vunpack.c.l.b16 %v2129
        %v2319 = vunpack.c.h.b16 %v2129
        %v2320 = vunpack.c.l.b16 %v2130
        %v2321 = vunpack.c.h.b16 %v2130
        %v2322 = vunpack.c.l.b16 %v2131
        %v2323 = vunpack.c.h.b16 %v2131
        %v2324 = vpack.c.b16 %v2198, %v2196
        %v2325 = vpack.c.b16 %v2199, %v2197
        %v2326 = vpack.c.b16 %v2202, %v2200
        %v2327 = vpack.c.b16 %v2203, %v2201
        %v2328 = vpack.c.b16 %v2206, %v2204
        %v2329 = vpack.c.b16 %v2207, %v2205
        %v2330 = vpack.c.b16 %v2210, %v2208
        %v2331 = vpack.c.b16 %v2211, %v2209
        %v2332 = vpack.c.b16 %v2214, %v2212
        %v2333 = vpack.c.b16 %v2215, %v2213
        %v2334 = vpack.c.b16 %v2218, %v2216
        %v2335 = vpack.c.b16 %v2219, %v2217
        %v2336 = vpack.c.b16 %v2222, %v2220
        %v2337 = vpack.c.b16 %v2223, %v2221
        %v2338 = vpack.c.b16 %v2226, %v2224
        %v2339 = vpack.c.b16 %v2227, %v2225
        %v2340 = vpack.c.b16 %v2230, %v2228
        %v2341 = vpack.c.b16 %v2231, %v2229
        %v2342 = vpack.c.b16 %v2234, %v2232
        %v2343 = vpack.c.b16 %v2235, %v2233
        %v2344 = vpack.c.b16 %v2238, %v2236
        %v2345 = vpack.c.b16 %v2239, %v2237
        %v2346 = vpack.c.b16 %v2242, %v2240
        %v2347 = vpack.c.b16 %v2243, %v2241
        %v2348 = vpack.c.b16 %v2246, %v2244
        %v2349 = vpack.c.b16 %v2247, %v2245
        %v2350 = vpack.c.b16 %v2250, %v2248
        %v2351 = vpack.c.b16 %v2251, %v2249
        %v2352 = vpack.c.b16 %v2254, %v2252
        %v2353 = vpack.c.b16 %v2255, %v2253
        %v2354 = vpack.c.b16 %v2258, %v2256
        %v2355 = vpack.c.b16 %v2259, %v2257
        %v2356 = vpack.c.b16 %v2262, %v2260
        %v2357 = vpack.c.b16 %v2263, %v2261
        %v2358 = vpack.c.b16 %v2266, %v2264
        %v2359 = vpack.c.b16 %v2267, %v2265
        %v2360 = vpack.c.b16 %v2270, %v2268
        %v2361 = vpack.c.b16 %v2271, %v2269
        %v2362 = vpack.c.b16 %v2274, %v2272
        %v2363 = vpack.c.b16 %v2275, %v2273
        %v2364 = vpack.c.b16 %v2278, %v2276
        %v2365 = vpack.c.b16 %v2279, %v2277
        %v2366 = vpack.c.b16 %v2282, %v2280
        %v2367 = vpack.c.b16 %v2283, %v2281
        %v2368 = vpack.c.b16 %v2286, %v2284
        %v2369 = vpack.c.b16 %v2287, %v2285
        %v2370 = vpack.c.b16 %v2290, %v2288
        %v2371 = vpack.c.b16 %v2291, %v2289
        %v2372 = vpack.c.b16 %v2294, %v2292
        %v2373 = vpack.c.b16 %v2295, %v2293
        %v2374 = vpack.c.b16 %v2298, %v2296
        %v2375 = vpack.c.b16 %v2299, %v2297
        %v2376 = vpack.c.b16 %v2302, %v2300
        %v2377 = vpack.c.b16 %v2303, %v2301
        %v2378 = vpack.c.b16 %v2306, %v2304
        %v2379 = vpack.c.b16 %v2307, %v2305
        %v2380 = vpack.c.b16 %v2310, %v2308
        %v2381 = vpack.c.b16 %v2311, %v2309
        %v2382 = vpack.c.b16 %v2314, %v2312
        %v2383 = vpack.c.b16 %v2315, %v2313
        %v2384 = vpack.c.b16 %v2318, %v2316
        %v2385 = vpack.c.b16 %v2319, %v2317
        %v2386 = vpack.c.b16 %v2322, %v2320
        %v2387 = vpack.c.b16 %v2323, %v2321
        %2452 = vmatprep.subr.bf16.mxu0 %v2325
        %2453 = vmatpush1.bf16.msra.mxu0 %v2324
        %2454 = vmatprep.subr.bf16.mxu0 %v2327
        %2455 = vmatpush1.bf16.msra.mxu0 %v2326
        %2456 = vmatprep.subr.bf16.mxu0 %v2329
        %2457 = vmatpush1.bf16.msra.mxu0 %v2328
        %2458 = vmatprep.subr.bf16.mxu0 %v2331
        %2459 = vmatpush1.bf16.msra.mxu0 %v2330
        %2460 = vmatprep.subr.bf16.mxu0 %v2333
        %2461 = vmatpush1.bf16.msra.mxu0 %v2332
        %2462 = vmatprep.subr.bf16.mxu0 %v2335
        %2463 = vmatpush1.bf16.msra.mxu0 %v2334
        %2464 = vmatprep.subr.bf16.mxu0 %v2337
        %2465 = vmatpush1.bf16.msra.mxu0 %v2336
        %2466 = vmatprep.subr.bf16.mxu0 %v2339
        %2467 = vmatpush1.bf16.msra.mxu0 %v2338
        %2468 = vmatprep.subr.bf16.mxu0 %v2341
        %2469 = vmatpush1.bf16.msra.mxu0 %v2340
        %2470 = vmatprep.subr.bf16.mxu0 %v2343
        %2471 = vmatpush1.bf16.msra.mxu0 %v2342
        %2472 = vmatprep.subr.bf16.mxu0 %v2345
        %2473 = vmatpush1.bf16.msra.mxu0 %v2344
        %2474 = vmatprep.subr.bf16.mxu0 %v2347
        %2475 = vmatpush1.bf16.msra.mxu0 %v2346
        %2476 = vmatprep.subr.bf16.mxu0 %v2349
        %2477 = vmatpush1.bf16.msra.mxu0 %v2348
        %2478 = vmatprep.subr.bf16.mxu0 %v2351
        %2479 = vmatpush1.bf16.msra.mxu0 %v2350
        %2480 = vmatprep.subr.bf16.mxu0 %v2353
        %2481 = vmatpush1.bf16.msra.mxu0 %v2352
        %2482 = vmatprep.subr.bf16.mxu0 %v2355
        %2483 = vmatpush1.bf16.msra.mxu0 %v2354
        %2484 = vmatprep.mubr.bf16.mxu0 %v2065
        %2485 = vmatmul.mubr.bf16.gmra.mrb[0].mxu0 %v2064
        %v2486 = vpop.f32.mrb[0].mxu0
        %v2487 = vadd.f32 0.0, %v2486
        %v2488 = vpop.f32.mrb[0].mxu0
        %v2489 = vadd.f32 0.0, %v2488
        %v2490 = vpop.f32.mrb[0].mxu0
        %v2491 = vadd.f32 0.0, %v2490
        %v2492 = vpop.f32.mrb[0].mxu0
        %v2493 = vadd.f32 0.0, %v2492
        %2494 = vdwg.mxu0
        %2495 = vmatprep.subr.bf16.mxu0 %v2357
        %2496 = vmatpush1.bf16.msra.mxu0 %v2356
        %2497 = vmatprep.subr.bf16.mxu0 %v2359
        %2498 = vmatpush1.bf16.msra.mxu0 %v2358
        %2499 = vmatprep.subr.bf16.mxu0 %v2361
        %2500 = vmatpush1.bf16.msra.mxu0 %v2360
        %2501 = vmatprep.subr.bf16.mxu0 %v2363
        %2502 = vmatpush1.bf16.msra.mxu0 %v2362
        %2503 = vmatprep.subr.bf16.mxu0 %v2365
        %2504 = vmatpush1.bf16.msra.mxu0 %v2364
        %2505 = vmatprep.subr.bf16.mxu0 %v2367
        %2506 = vmatpush1.bf16.msra.mxu0 %v2366
        %2507 = vmatprep.subr.bf16.mxu0 %v2369
        %2508 = vmatpush1.bf16.msra.mxu0 %v2368
        %2509 = vmatprep.subr.bf16.mxu0 %v2371
        %2510 = vmatpush1.bf16.msra.mxu0 %v2370
        %2511 = vmatprep.subr.bf16.mxu0 %v2373
        %2512 = vmatpush1.bf16.msra.mxu0 %v2372
        %2513 = vmatprep.subr.bf16.mxu0 %v2375
        %2514 = vmatpush1.bf16.msra.mxu0 %v2374
        %2515 = vmatprep.subr.bf16.mxu0 %v2377
        %2516 = vmatpush1.bf16.msra.mxu0 %v2376
        %2517 = vmatprep.subr.bf16.mxu0 %v2379
        %2518 = vmatpush1.bf16.msra.mxu0 %v2378
        %2519 = vmatprep.subr.bf16.mxu0 %v2381
        %2520 = vmatpush1.bf16.msra.mxu0 %v2380
        %2521 = vmatprep.subr.bf16.mxu0 %v2383
        %2522 = vmatpush1.bf16.msra.mxu0 %v2382
        %2523 = vmatprep.subr.bf16.mxu0 %v2385
        %2524 = vmatpush1.bf16.msra.mxu0 %v2384
        %2525 = vmatprep.subr.bf16.mxu0 %v2387
        %2526 = vmatpush1.bf16.msra.mxu0 %v2386
        %2527 = vmatprep.mubr.bf16.mxu0 %v2067
        %2528 = vmatmul.mubr.bf16.gmra.mrb[0].mxu0 %v2066
        %v2529 = vpop.f32.mrb[0].mxu0
        %v2530 = vadd.f32 %v2487, %v2529
        %v2531 = vpop.f32.mrb[0].mxu0
        %v2532 = vadd.f32 %v2489, %v2531
        %v2533 = vpop.f32.mrb[0].mxu0
        %v2534 = vadd.f32 %v2491, %v2533
        %v2535 = vpop.f32.mrb[0].mxu0
        %v2536 = vadd.f32 %v2493, %v2535
        %2537 = vdwg.mxu0
        %v2538 = vmax.f32 %v2530, 0.0
        %v2539 = vmax.f32 %v2532, 0.0
        %v2540 = vmax.f32 %v2534, 0.0
        %v2541 = vmax.f32 %v2536, 0.0
        %v2542 = vpack.c.bf16 %v2540, %v2538
        %v2543 = vpack.c.bf16 %v2541, %v2539
        %v2544 = vld [vmem:[#allocation8] sm:$0xff]
        %v2545 = vld [vmem:[#allocation8 + $0x8] sm:$0xff]
        %v2546 = vld [vmem:[#allocation8 + $0x10] sm:$0xff]
        %v2547 = vld [vmem:[#allocation8 + $0x18] sm:$0xff]
        %v2548 = vld [vmem:[#allocation8 + $0x20] sm:$0xff]
        %v2549 = vld [vmem:[#allocation8 + $0x28] sm:$0xff]
        %v2550 = vld [vmem:[#allocation8 + $0x30] sm:$0xff]
        %v2551 = vld [vmem:[#allocation8 + $0x38] sm:$0xff]
        %v2552 = vld [vmem:[#allocation8 + $0x40] sm:$0xff]
        %v2553 = vld [vmem:[#allocation8 + $0x48] sm:$0xff]
        %v2554 = vld [vmem:[#allocation8 + $0x50] sm:$0xff]
        %v2555 = vld [vmem:[#allocation8 + $0x58] sm:$0xff]
        %v2556 = vld [vmem:[#allocation8 + $0x60] sm:$0xff]
        %v2557 = vld [vmem:[#allocation8 + $0x68] sm:$0xff]
        %v2558 = vld [vmem:[#allocation8 + $0x70] sm:$0xff]
        %v2559 = vld [vmem:[#allocation8 + $0x78] sm:$0xff]
        %v2560 = vld [vmem:[#allocation8 + $0x80] sm:$0xff]
        %v2561 = vld [vmem:[#allocation8 + $0x88] sm:$0xff]
        %v2562 = vld [vmem:[#allocation8 + $0x90] sm:$0xff]
        %v2563 = vld [vmem:[#allocation8 + $0x98] sm:$0xff]
        %v2564 = vld [vmem:[#allocation8 + $0xa0] sm:$0xff]
        %v2565 = vld [vmem:[#allocation8 + $0xa8] sm:$0xff]
        %v2566 = vld [vmem:[#allocation8 + $0xb0] sm:$0xff]
        %v2567 = vld [vmem:[#allocation8 + $0xb8] sm:$0xff]
        %v2568 = vld [vmem:[#allocation8 + $0xc0] sm:$0xff]
        %v2569 = vld [vmem:[#allocation8 + $0xc8] sm:$0xff]
        %v2570 = vld [vmem:[#allocation8 + $0xd0] sm:$0xff]
        %v2571 = vld [vmem:[#allocation8 + $0xd8] sm:$0xff]
        %v2572 = vld [vmem:[#allocation8 + $0xe0] sm:$0xff]
        %v2573 = vld [vmem:[#allocation8 + $0xe8] sm:$0xff]
        %v2574 = vld [vmem:[#allocation8 + $0xf0] sm:$0xff]
        %v2575 = vld [vmem:[#allocation8 + $0xf8] sm:$0xff]
        %v2608 = vunpack.c.l.b16 %v2544
        %v2609 = vunpack.c.h.b16 %v2544
        %v2610 = vunpack.c.l.b16 %v2545
        %v2611 = vunpack.c.h.b16 %v2545
        %v2612 = vunpack.c.l.b16 %v2546
        %v2613 = vunpack.c.h.b16 %v2546
        %v2614 = vunpack.c.l.b16 %v2547
        %v2615 = vunpack.c.h.b16 %v2547
        %v2616 = vunpack.c.l.b16 %v2548
        %v2617 = vunpack.c.h.b16 %v2548
        %v2618 = vunpack.c.l.b16 %v2549
        %v2619 = vunpack.c.h.b16 %v2549
        %v2620 = vunpack.c.l.b16 %v2550
        %v2621 = vunpack.c.h.b16 %v2550
        %v2622 = vunpack.c.l.b16 %v2551
        %v2623 = vunpack.c.h.b16 %v2551
        %v2624 = vunpack.c.l.b16 %v2552
        %v2625 = vunpack.c.h.b16 %v2552
        %v2626 = vunpack.c.l.b16 %v2553
        %v2627 = vunpack.c.h.b16 %v2553
        %v2628 = vunpack.c.l.b16 %v2554
        %v2629 = vunpack.c.h.b16 %v2554
        %v2630 = vunpack.c.l.b16 %v2555
        %v2631 = vunpack.c.h.b16 %v2555
        %v2632 = vunpack.c.l.b16 %v2556
        %v2633 = vunpack.c.h.b16 %v2556
        %v2634 = vunpack.c.l.b16 %v2557
        %v2635 = vunpack.c.h.b16 %v2557
        %v2636 = vunpack.c.l.b16 %v2558
        %v2637 = vunpack.c.h.b16 %v2558
        %v2638 = vunpack.c.l.b16 %v2559
        %v2639 = vunpack.c.h.b16 %v2559
        %v2640 = vunpack.c.l.b16 %v2560
        %v2641 = vunpack.c.h.b16 %v2560
        %v2642 = vunpack.c.l.b16 %v2561
        %v2643 = vunpack.c.h.b16 %v2561
        %v2644 = vunpack.c.l.b16 %v2562
        %v2645 = vunpack.c.h.b16 %v2562
        %v2646 = vunpack.c.l.b16 %v2563
        %v2647 = vunpack.c.h.b16 %v2563
        %v2648 = vunpack.c.l.b16 %v2564
        %v2649 = vunpack.c.h.b16 %v2564
        %v2650 = vunpack.c.l.b16 %v2565
        %v2651 = vunpack.c.h.b16 %v2565
        %v2652 = vunpack.c.l.b16 %v2566
        %v2653 = vunpack.c.h.b16 %v2566
        %v2654 = vunpack.c.l.b16 %v2567
        %v2655 = vunpack.c.h.b16 %v2567
        %v2656 = vunpack.c.l.b16 %v2568
        %v2657 = vunpack.c.h.b16 %v2568
        %v2658 = vunpack.c.l.b16 %v2569
        %v2659 = vunpack.c.h.b16 %v2569
        %v2660 = vunpack.c.l.b16 %v2570
        %v2661 = vunpack.c.h.b16 %v2570
        %v2662 = vunpack.c.l.b16 %v2571
        %v2663 = vunpack.c.h.b16 %v2571
        %v2664 = vunpack.c.l.b16 %v2572
        %v2665 = vunpack.c.h.b16 %v2572
        %v2666 = vunpack.c.l.b16 %v2573
        %v2667 = vunpack.c.h.b16 %v2573
        %v2668 = vunpack.c.l.b16 %v2574
        %v2669 = vunpack.c.h.b16 %v2574
        %v2670 = vunpack.c.l.b16 %v2575
        %v2671 = vunpack.c.h.b16 %v2575
        %v2672 = vpack.c.b16 %v2610, %v2608
        %v2673 = vpack.c.b16 %v2611, %v2609
        %v2674 = vpack.c.b16 %v2614, %v2612
        %v2675 = vpack.c.b16 %v2615, %v2613
        %v2676 = vpack.c.b16 %v2618, %v2616
        %v2677 = vpack.c.b16 %v2619, %v2617
        %v2678 = vpack.c.b16 %v2622, %v2620
        %v2679 = vpack.c.b16 %v2623, %v2621
        %v2680 = vpack.c.b16 %v2626, %v2624
        %v2681 = vpack.c.b16 %v2627, %v2625
        %v2682 = vpack.c.b16 %v2630, %v2628
        %v2683 = vpack.c.b16 %v2631, %v2629
        %v2684 = vpack.c.b16 %v2634, %v2632
        %v2685 = vpack.c.b16 %v2635, %v2633
        %v2686 = vpack.c.b16 %v2638, %v2636
        %v2687 = vpack.c.b16 %v2639, %v2637
        %v2688 = vpack.c.b16 %v2642, %v2640
        %v2689 = vpack.c.b16 %v2643, %v2641
        %v2690 = vpack.c.b16 %v2646, %v2644
        %v2691 = vpack.c.b16 %v2647, %v2645
        %v2692 = vpack.c.b16 %v2650, %v2648
        %v2693 = vpack.c.b16 %v2651, %v2649
        %v2694 = vpack.c.b16 %v2654, %v2652
        %v2695 = vpack.c.b16 %v2655, %v2653
        %v2696 = vpack.c.b16 %v2658, %v2656
        %v2697 = vpack.c.b16 %v2659, %v2657
        %v2698 = vpack.c.b16 %v2662, %v2660
        %v2699 = vpack.c.b16 %v2663, %v2661
        %v2700 = vpack.c.b16 %v2666, %v2664
        %v2701 = vpack.c.b16 %v2667, %v2665
        %v2702 = vpack.c.b16 %v2670, %v2668
        %v2703 = vpack.c.b16 %v2671, %v2669
        %2736 = vmatprep.subr.bf16.mxu0 %v2673
        %2737 = vmatpush1.bf16.msra.mxu0 %v2672
        %2738 = vmatprep.subr.bf16.mxu0 %v2675
        %2739 = vmatpush1.bf16.msra.mxu0 %v2674
        %2740 = vmatprep.subr.bf16.mxu0 %v2677
        %2741 = vmatpush1.bf16.msra.mxu0 %v2676
        %2742 = vmatprep.subr.bf16.mxu0 %v2679
        %2743 = vmatpush1.bf16.msra.mxu0 %v2678
        %2744 = vmatprep.subr.bf16.mxu0 %v2681
        %2745 = vmatpush1.bf16.msra.mxu0 %v2680
        %2746 = vmatprep.subr.bf16.mxu0 %v2683
        %2747 = vmatpush1.bf16.msra.mxu0 %v2682
        %2748 = vmatprep.subr.bf16.mxu0 %v2685
        %2749 = vmatpush1.bf16.msra.mxu0 %v2684
        %2750 = vmatprep.subr.bf16.mxu0 %v2687
        %2751 = vmatpush1.bf16.msra.mxu0 %v2686
        %2752 = vmatprep.subr.bf16.mxu0 %v2689
        %2753 = vmatpush1.bf16.msra.mxu0 %v2688
        %2754 = vmatprep.subr.bf16.mxu0 %v2691
        %2755 = vmatpush1.bf16.msra.mxu0 %v2690
        %2756 = vmatprep.subr.bf16.mxu0 %v2693
        %2757 = vmatpush1.bf16.msra.mxu0 %v2692
        %2758 = vmatprep.subr.bf16.mxu0 %v2695
        %2759 = vmatpush1.bf16.msra.mxu0 %v2694
        %2760 = vmatprep.subr.bf16.mxu0 %v2697
        %2761 = vmatpush1.bf16.msra.mxu0 %v2696
        %2762 = vmatprep.subr.bf16.mxu0 %v2699
        %2763 = vmatpush1.bf16.msra.mxu0 %v2698
        %2764 = vmatprep.subr.bf16.mxu0 %v2701
        %2765 = vmatpush1.bf16.msra.mxu0 %v2700
        %2766 = vmatprep.subr.bf16.mxu0 %v2703
        %2767 = vmatpush1.bf16.msra.mxu0 %v2702
        %2768 = vmatprep.mubr.bf16.mxu0 %v2543
        %2769 = vmatmul.mubr.bf16.gmra.mrb[0].mxu0 %v2542
        %v2770 = vpop.f32.mrb[0].mxu0
        %v2771 = vadd.f32 0.0, %v2770
        %v2772 = vpop.f32.mrb[0].mxu0
        %v2773 = vadd.f32 0.0, %v2772
        %v2774 = vpop.f32.mrb[0].mxu0
        %v2775 = vadd.f32 0.0, %v2774
        %v2776 = vpop.f32.mrb[0].mxu0
        %v2777 = vadd.f32 0.0, %v2776
        %2778 = vdwg.mxu0
        %v2779 = vmax.f32 %v2771, 0.0
        %v2780 = vmax.f32 %v2773, 0.0
        %v2781 = vmax.f32 %v2775, 0.0
        %v2782 = vmax.f32 %v2777, 0.0
        %v2783 = vpack.c.bf16 %v2781, %v2779
        %v2784 = vpack.c.bf16 %v2782, %v2780
        %v2785 = vld [vmem:[#allocation10] sm:$0xff]
        %v2786 = vld [vmem:[#allocation10 + $0x8] sm:$0xff]
        %v2787 = vld [vmem:[#allocation10 + $0x10] sm:$0xff]
        %v2788 = vld [vmem:[#allocation10 + $0x18] sm:$0xff]
        %v2789 = vld [vmem:[#allocation10 + $0x20] sm:$0xff]
        %v2790 = vld [vmem:[#allocation10 + $0x28] sm:$0xff]
        %v2791 = vld [vmem:[#allocation10 + $0x30] sm:$0xff]
        %v2792 = vld [vmem:[#allocation10 + $0x38] sm:$0xff]
        %v2793 = vld [vmem:[#allocation10 + $0x40] sm:$0xff]
        %v2794 = vld [vmem:[#allocation10 + $0x48] sm:$0xff]
        %v2795 = vld [vmem:[#allocation10 + $0x50] sm:$0xff]
        %v2796 = vld [vmem:[#allocation10 + $0x58] sm:$0xff]
        %v2797 = vld [vmem:[#allocation10 + $0x60] sm:$0xff]
        %v2798 = vld [vmem:[#allocation10 + $0x68] sm:$0xff]
        %v2799 = vld [vmem:[#allocation10 + $0x70] sm:$0xff]
        %v2800 = vld [vmem:[#allocation10 + $0x78] sm:$0xff]
        %v2801 = vld [vmem:[#allocation10 + $0x80] sm:$0xff]
        %v2802 = vld [vmem:[#allocation10 + $0x88] sm:$0xff]
        %v2803 = vld [vmem:[#allocation10 + $0x90] sm:$0xff]
        %v2804 = vld [vmem:[#allocation10 + $0x98] sm:$0xff]
        %v2805 = vld [vmem:[#allocation10 + $0xa0] sm:$0xff]
        %v2806 = vld [vmem:[#allocation10 + $0xa8] sm:$0xff]
        %v2807 = vld [vmem:[#allocation10 + $0xb0] sm:$0xff]
        %v2808 = vld [vmem:[#allocation10 + $0xb8] sm:$0xff]
        %v2809 = vld [vmem:[#allocation10 + $0xc0] sm:$0xff]
        %v2810 = vld [vmem:[#allocation10 + $0xc8] sm:$0xff]
        %v2811 = vld [vmem:[#allocation10 + $0xd0] sm:$0xff]
        %v2812 = vld [vmem:[#allocation10 + $0xd8] sm:$0xff]
        %v2813 = vld [vmem:[#allocation10 + $0xe0] sm:$0xff]
        %v2814 = vld [vmem:[#allocation10 + $0xe8] sm:$0xff]
        %v2815 = vld [vmem:[#allocation10 + $0xf0] sm:$0xff]
        %v2816 = vld [vmem:[#allocation10 + $0xf8] sm:$0xff]
        %v2817 = vld [vmem:[#allocation10 + $0x100] sm:$0xff]
        %v2818 = vld [vmem:[#allocation10 + $0x108] sm:$0xff]
        %v2819 = vld [vmem:[#allocation10 + $0x110] sm:$0xff]
        %v2820 = vld [vmem:[#allocation10 + $0x118] sm:$0xff]
        %v2821 = vld [vmem:[#allocation10 + $0x120] sm:$0xff]
        %v2822 = vld [vmem:[#allocation10 + $0x128] sm:$0xff]
        %v2823 = vld [vmem:[#allocation10 + $0x130] sm:$0xff]
        %v2824 = vld [vmem:[#allocation10 + $0x138] sm:$0xff]
        %v2825 = vld [vmem:[#allocation10 + $0x140] sm:$0xff]
        %v2826 = vld [vmem:[#allocation10 + $0x148] sm:$0xff]
        %v2827 = vld [vmem:[#allocation10 + $0x150] sm:$0xff]
        %v2828 = vld [vmem:[#allocation10 + $0x158] sm:$0xff]
        %v2829 = vld [vmem:[#allocation10 + $0x160] sm:$0xff]
        %v2830 = vld [vmem:[#allocation10 + $0x168] sm:$0xff]
        %v2831 = vld [vmem:[#allocation10 + $0x170] sm:$0xff]
        %v2832 = vld [vmem:[#allocation10 + $0x178] sm:$0xff]
        %v2833 = vld [vmem:[#allocation10 + $0x180] sm:$0xff]
        %v2834 = vld [vmem:[#allocation10 + $0x188] sm:$0xff]
        %v2835 = vld [vmem:[#allocation10 + $0x190] sm:$0xff]
        %v2836 = vld [vmem:[#allocation10 + $0x198] sm:$0xff]
        %v2837 = vld [vmem:[#allocation10 + $0x1a0] sm:$0xff]
        %v2838 = vld [vmem:[#allocation10 + $0x1a8] sm:$0xff]
        %v2839 = vld [vmem:[#allocation10 + $0x1b0] sm:$0xff]
        %v2840 = vld [vmem:[#allocation10 + $0x1b8] sm:$0xff]
        %v2841 = vld [vmem:[#allocation10 + $0x1c0] sm:$0xff]
        %v2842 = vld [vmem:[#allocation10 + $0x1c8] sm:$0xff]
        %v2843 = vld [vmem:[#allocation10 + $0x1d0] sm:$0xff]
        %v2844 = vld [vmem:[#allocation10 + $0x1d8] sm:$0xff]
        %v2845 = vld [vmem:[#allocation10 + $0x1e0] sm:$0xff]
        %v2846 = vld [vmem:[#allocation10 + $0x1e8] sm:$0xff]
        %v2847 = vld [vmem:[#allocation10 + $0x1f0] sm:$0xff]
        %v2848 = vld [vmem:[#allocation10 + $0x1f8] sm:$0xff]
        %v2913 = vunpack.c.l.b16 %v2785
        %v2914 = vunpack.c.h.b16 %v2785
        %v2915 = vunpack.c.l.b16 %v2786
        %v2916 = vunpack.c.h.b16 %v2786
        %v2917 = vunpack.c.l.b16 %v2787
        %v2918 = vunpack.c.h.b16 %v2787
        %v2919 = vunpack.c.l.b16 %v2788
        %v2920 = vunpack.c.h.b16 %v2788
        %v2921 = vunpack.c.l.b16 %v2789
        %v2922 = vunpack.c.h.b16 %v2789
        %v2923 = vunpack.c.l.b16 %v2790
        %v2924 = vunpack.c.h.b16 %v2790
        %v2925 = vunpack.c.l.b16 %v2791
        %v2926 = vunpack.c.h.b16 %v2791
        %v2927 = vunpack.c.l.b16 %v2792
        %v2928 = vunpack.c.h.b16 %v2792
        %v2929 = vunpack.c.l.b16 %v2793
        %v2930 = vunpack.c.h.b16 %v2793
        %v2931 = vunpack.c.l.b16 %v2794
        %v2932 = vunpack.c.h.b16 %v2794
        %v2933 = vunpack.c.l.b16 %v2795
        %v2934 = vunpack.c.h.b16 %v2795
        %v2935 = vunpack.c.l.b16 %v2796
        %v2936 = vunpack.c.h.b16 %v2796
        %v2937 = vunpack.c.l.b16 %v2797
        %v2938 = vunpack.c.h.b16 %v2797
        %v2939 = vunpack.c.l.b16 %v2798
        %v2940 = vunpack.c.h.b16 %v2798
        %v2941 = vunpack.c.l.b16 %v2799
        %v2942 = vunpack.c.h.b16 %v2799
        %v2943 = vunpack.c.l.b16 %v2800
        %v2944 = vunpack.c.h.b16 %v2800
        %v2945 = vunpack.c.l.b16 %v2801
        %v2946 = vunpack.c.h.b16 %v2801
        %v2947 = vunpack.c.l.b16 %v2802
        %v2948 = vunpack.c.h.b16 %v2802
        %v2949 = vunpack.c.l.b16 %v2803
        %v2950 = vunpack.c.h.b16 %v2803
        %v2951 = vunpack.c.l.b16 %v2804
        %v2952 = vunpack.c.h.b16 %v2804
        %v2953 = vunpack.c.l.b16 %v2805
        %v2954 = vunpack.c.h.b16 %v2805
        %v2955 = vunpack.c.l.b16 %v2806
        %v2956 = vunpack.c.h.b16 %v2806
        %v2957 = vunpack.c.l.b16 %v2807
        %v2958 = vunpack.c.h.b16 %v2807
        %v2959 = vunpack.c.l.b16 %v2808
        %v2960 = vunpack.c.h.b16 %v2808
        %v2961 = vunpack.c.l.b16 %v2809
        %v2962 = vunpack.c.h.b16 %v2809
        %v2963 = vunpack.c.l.b16 %v2810
        %v2964 = vunpack.c.h.b16 %v2810
        %v2965 = vunpack.c.l.b16 %v2811
        %v2966 = vunpack.c.h.b16 %v2811
        %v2967 = vunpack.c.l.b16 %v2812
        %v2968 = vunpack.c.h.b16 %v2812
        %v2969 = vunpack.c.l.b16 %v2813
        %v2970 = vunpack.c.h.b16 %v2813
        %v2971 = vunpack.c.l.b16 %v2814
        %v2972 = vunpack.c.h.b16 %v2814
        %v2973 = vunpack.c.l.b16 %v2815
        %v2974 = vunpack.c.h.b16 %v2815
        %v2975 = vunpack.c.l.b16 %v2816
        %v2976 = vunpack.c.h.b16 %v2816
        %v2977 = vunpack.c.l.b16 %v2817
        %v2978 = vunpack.c.h.b16 %v2817
        %v2979 = vunpack.c.l.b16 %v2818
        %v2980 = vunpack.c.h.b16 %v2818
        %v2981 = vunpack.c.l.b16 %v2819
        %v2982 = vunpack.c.h.b16 %v2819
        %v2983 = vunpack.c.l.b16 %v2820
        %v2984 = vunpack.c.h.b16 %v2820
        %v2985 = vunpack.c.l.b16 %v2821
        %v2986 = vunpack.c.h.b16 %v2821
        %v2987 = vunpack.c.l.b16 %v2822
        %v2988 = vunpack.c.h.b16 %v2822
        %v2989 = vunpack.c.l.b16 %v2823
        %v2990 = vunpack.c.h.b16 %v2823
        %v2991 = vunpack.c.l.b16 %v2824
        %v2992 = vunpack.c.h.b16 %v2824
        %v2993 = vunpack.c.l.b16 %v2825
        %v2994 = vunpack.c.h.b16 %v2825
        %v2995 = vunpack.c.l.b16 %v2826
        %v2996 = vunpack.c.h.b16 %v2826
        %v2997 = vunpack.c.l.b16 %v2827
        %v2998 = vunpack.c.h.b16 %v2827
        %v2999 = vunpack.c.l.b16 %v2828
        %v3000 = vunpack.c.h.b16 %v2828
        %v3001 = vunpack.c.l.b16 %v2829
        %v3002 = vunpack.c.h.b16 %v2829
        %v3003 = vunpack.c.l.b16 %v2830
        %v3004 = vunpack.c.h.b16 %v2830
        %v3005 = vunpack.c.l.b16 %v2831
        %v3006 = vunpack.c.h.b16 %v2831
        %v3007 = vunpack.c.l.b16 %v2832
        %v3008 = vunpack.c.h.b16 %v2832
        %v3009 = vunpack.c.l.b16 %v2833
        %v3010 = vunpack.c.h.b16 %v2833
        %v3011 = vunpack.c.l.b16 %v2834
        %v3012 = vunpack.c.h.b16 %v2834
        %v3013 = vunpack.c.l.b16 %v2835
        %v3014 = vunpack.c.h.b16 %v2835
        %v3015 = vunpack.c.l.b16 %v2836
        %v3016 = vunpack.c.h.b16 %v2836
        %v3017 = vunpack.c.l.b16 %v2837
        %v3018 = vunpack.c.h.b16 %v2837
        %v3019 = vunpack.c.l.b16 %v2838
        %v3020 = vunpack.c.h.b16 %v2838
        %v3021 = vunpack.c.l.b16 %v2839
        %v3022 = vunpack.c.h.b16 %v2839
        %v3023 = vunpack.c.l.b16 %v2840
        %v3024 = vunpack.c.h.b16 %v2840
        %v3025 = vunpack.c.l.b16 %v2841
        %v3026 = vunpack.c.h.b16 %v2841
        %v3027 = vunpack.c.l.b16 %v2842
        %v3028 = vunpack.c.h.b16 %v2842
        %v3029 = vunpack.c.l.b16 %v2843
        %v3030 = vunpack.c.h.b16 %v2843
        %v3031 = vunpack.c.l.b16 %v2844
        %v3032 = vunpack.c.h.b16 %v2844
        %v3033 = vunpack.c.l.b16 %v2845
        %v3034 = vunpack.c.h.b16 %v2845
        %v3035 = vunpack.c.l.b16 %v2846
        %v3036 = vunpack.c.h.b16 %v2846
        %v3037 = vunpack.c.l.b16 %v2847
        %v3038 = vunpack.c.h.b16 %v2847
        %v3039 = vunpack.c.l.b16 %v2848
        %v3040 = vunpack.c.h.b16 %v2848
        %v3041 = vpack.c.b16 %v2917, %v2913
        %v3042 = vpack.c.b16 %v2918, %v2914
        %v3043 = vpack.c.b16 %v2919, %v2915
        %v3044 = vpack.c.b16 %v2920, %v2916
        %v3045 = vpack.c.b16 %v2925, %v2921
        %v3046 = vpack.c.b16 %v2926, %v2922
        %v3047 = vpack.c.b16 %v2927, %v2923
        %v3048 = vpack.c.b16 %v2928, %v2924
        %v3049 = vpack.c.b16 %v2933, %v2929
        %v3050 = vpack.c.b16 %v2934, %v2930
        %v3051 = vpack.c.b16 %v2935, %v2931
        %v3052 = vpack.c.b16 %v2936, %v2932
        %v3053 = vpack.c.b16 %v2941, %v2937
        %v3054 = vpack.c.b16 %v2942, %v2938
        %v3055 = vpack.c.b16 %v2943, %v2939
        %v3056 = vpack.c.b16 %v2944, %v2940
        %v3057 = vpack.c.b16 %v2949, %v2945
        %v3058 = vpack.c.b16 %v2950, %v2946
        %v3059 = vpack.c.b16 %v2951, %v2947
        %v3060 = vpack.c.b16 %v2952, %v2948
        %v3061 = vpack.c.b16 %v2957, %v2953
        %v3062 = vpack.c.b16 %v2958, %v2954
        %v3063 = vpack.c.b16 %v2959, %v2955
        %v3064 = vpack.c.b16 %v2960, %v2956
        %v3065 = vpack.c.b16 %v2965, %v2961
        %v3066 = vpack.c.b16 %v2966, %v2962
        %v3067 = vpack.c.b16 %v2967, %v2963
        %v3068 = vpack.c.b16 %v2968, %v2964
        %v3069 = vpack.c.b16 %v2973, %v2969
        %v3070 = vpack.c.b16 %v2974, %v2970
        %v3071 = vpack.c.b16 %v2975, %v2971
        %v3072 = vpack.c.b16 %v2976, %v2972
        %v3073 = vpack.c.b16 %v2981, %v2977
        %v3074 = vpack.c.b16 %v2982, %v2978
        %v3075 = vpack.c.b16 %v2983, %v2979
        %v3076 = vpack.c.b16 %v2984, %v2980
        %v3077 = vpack.c.b16 %v2989, %v2985
        %v3078 = vpack.c.b16 %v2990, %v2986
        %v3079 = vpack.c.b16 %v2991, %v2987
        %v3080 = vpack.c.b16 %v2992, %v2988
        %v3081 = vpack.c.b16 %v2997, %v2993
        %v3082 = vpack.c.b16 %v2998, %v2994
        %v3083 = vpack.c.b16 %v2999, %v2995
        %v3084 = vpack.c.b16 %v3000, %v2996
        %v3085 = vpack.c.b16 %v3005, %v3001
        %v3086 = vpack.c.b16 %v3006, %v3002
        %v3087 = vpack.c.b16 %v3007, %v3003
        %v3088 = vpack.c.b16 %v3008, %v3004
        %v3089 = vpack.c.b16 %v3013, %v3009
        %v3090 = vpack.c.b16 %v3014, %v3010
        %v3091 = vpack.c.b16 %v3015, %v3011
        %v3092 = vpack.c.b16 %v3016, %v3012
        %v3093 = vpack.c.b16 %v3021, %v3017
        %v3094 = vpack.c.b16 %v3022, %v3018
        %v3095 = vpack.c.b16 %v3023, %v3019
        %v3096 = vpack.c.b16 %v3024, %v3020
        %v3097 = vpack.c.b16 %v3029, %v3025
        %v3098 = vpack.c.b16 %v3030, %v3026
        %v3099 = vpack.c.b16 %v3031, %v3027
        %v3100 = vpack.c.b16 %v3032, %v3028
        %v3101 = vpack.c.b16 %v3037, %v3033
        %v3102 = vpack.c.b16 %v3038, %v3034
        %v3103 = vpack.c.b16 %v3039, %v3035
        %v3104 = vpack.c.b16 %v3040, %v3036
        %3169 = vmatprep.subr.bf16.mxu0 %v3042
        %3170 = vmatpush1.bf16.msra.mxu0 %v3041
        %3171 = vmatprep.subr.bf16.mxu0 %v3046
        %3172 = vmatpush1.bf16.msra.mxu0 %v3045
        %3173 = vmatprep.subr.bf16.mxu0 %v3050
        %3174 = vmatpush1.bf16.msra.mxu0 %v3049
        %3175 = vmatprep.subr.bf16.mxu0 %v3054
        %3176 = vmatpush1.bf16.msra.mxu0 %v3053
        %3177 = vmatprep.subr.bf16.mxu0 %v3058
        %3178 = vmatpush1.bf16.msra.mxu0 %v3057
        %3179 = vmatprep.subr.bf16.mxu0 %v3062
        %3180 = vmatpush1.bf16.msra.mxu0 %v3061
        %3181 = vmatprep.subr.bf16.mxu0 %v3066
        %3182 = vmatpush1.bf16.msra.mxu0 %v3065
        %3183 = vmatprep.subr.bf16.mxu0 %v3070
        %3184 = vmatpush1.bf16.msra.mxu0 %v3069
        %3185 = vmatprep.subr.bf16.mxu0 %v3074
        %3186 = vmatpush1.bf16.msra.mxu0 %v3073
        %3187 = vmatprep.subr.bf16.mxu0 %v3078
        %3188 = vmatpush1.bf16.msra.mxu0 %v3077
        %3189 = vmatprep.subr.bf16.mxu0 %v3082
        %3190 = vmatpush1.bf16.msra.mxu0 %v3081
        %3191 = vmatprep.subr.bf16.mxu0 %v3086
        %3192 = vmatpush1.bf16.msra.mxu0 %v3085
        %3193 = vmatprep.subr.bf16.mxu0 %v3090
        %3194 = vmatpush1.bf16.msra.mxu0 %v3089
        %3195 = vmatprep.subr.bf16.mxu0 %v3094
        %3196 = vmatpush1.bf16.msra.mxu0 %v3093
        %3197 = vmatprep.subr.bf16.mxu0 %v3098
        %3198 = vmatpush1.bf16.msra.mxu0 %v3097
        %3199 = vmatprep.subr.bf16.mxu0 %v3102
        %3200 = vmatpush1.bf16.msra.mxu0 %v3101
        %3201 = vmatprep.mubr.bf16.mxu0 %v2784
        %3202 = vmatmul.mubr.bf16.gmra.mrb[0].mxu0 %v2783
        %v3203 = vpop.f32.mrb[0].mxu0
        %v3204 = vadd.f32 0.0, %v3203
        %v3205 = vpop.f32.mrb[0].mxu0
        %v3206 = vadd.f32 0.0, %v3205
        %v3207 = vpop.f32.mrb[0].mxu0
        %v3208 = vadd.f32 0.0, %v3207
        %v3209 = vpop.f32.mrb[0].mxu0
        %v3210 = vadd.f32 0.0, %v3209
        %3211 = vdwg.mxu0
        %3212 = vmatprep.subr.bf16.mxu0 %v3044
        %3213 = vmatpush1.bf16.msra.mxu0 %v3043
        %3214 = vmatprep.subr.bf16.mxu0 %v3048
        %3215 = vmatpush1.bf16.msra.mxu0 %v3047
        %3216 = vmatprep.subr.bf16.mxu0 %v3052
        %3217 = vmatpush1.bf16.msra.mxu0 %v3051
        %3218 = vmatprep.subr.bf16.mxu0 %v3056
        %3219 = vmatpush1.bf16.msra.mxu0 %v3055
        %3220 = vmatprep.subr.bf16.mxu0 %v3060
        %3221 = vmatpush1.bf16.msra.mxu0 %v3059
        %3222 = vmatprep.subr.bf16.mxu0 %v3064
        %3223 = vmatpush1.bf16.msra.mxu0 %v3063
        %3224 = vmatprep.subr.bf16.mxu0 %v3068
        %3225 = vmatpush1.bf16.msra.mxu0 %v3067
        %3226 = vmatprep.subr.bf16.mxu0 %v3072
        %3227 = vmatpush1.bf16.msra.mxu0 %v3071
        %3228 = vmatprep.subr.bf16.mxu0 %v3076
        %3229 = vmatpush1.bf16.msra.mxu0 %v3075
        %3230 = vmatprep.subr.bf16.mxu0 %v3080
        %3231 = vmatpush1.bf16.msra.mxu0 %v3079
        %3232 = vmatprep.subr.bf16.mxu0 %v3084
        %3233 = vmatpush1.bf16.msra.mxu0 %v3083
        %3234 = vmatprep.subr.bf16.mxu0 %v3088
        %3235 = vmatpush1.bf16.msra.mxu0 %v3087
        %3236 = vmatprep.subr.bf16.mxu0 %v3092
        %3237 = vmatpush1.bf16.msra.mxu0 %v3091
        %3238 = vmatprep.subr.bf16.mxu0 %v3096
        %3239 = vmatpush1.bf16.msra.mxu0 %v3095
        %3240 = vmatprep.subr.bf16.mxu0 %v3100
        %3241 = vmatpush1.bf16.msra.mxu0 %v3099
        %3242 = vmatprep.subr.bf16.mxu0 %v3104
        %3243 = vmatpush1.bf16.msra.mxu0 %v3103
        %3244 = vmatprep.mubr.bf16.mxu0 %v2784
        %3245 = vmatmul.mubr.bf16.gmra.mrb[0].mxu0 %v2783
        %v3246 = vpop.f32.mrb[0].mxu0
        %v3247 = vadd.f32 0.0, %v3246
        %v3248 = vpop.f32.mrb[0].mxu0
        %v3249 = vadd.f32 0.0, %v3248
        %v3250 = vpop.f32.mrb[0].mxu0
        %v3251 = vadd.f32 0.0, %v3250
        %v3252 = vpop.f32.mrb[0].mxu0
        %v3253 = vadd.f32 0.0, %v3252
        %3254 = vdwg.mxu0
        %v3255 = vmax.f32 %v3204, 0.0
        %v3256 = vmax.f32 %v3206, 0.0
        %v3257 = vmax.f32 %v3247, 0.0
        %v3258 = vmax.f32 %v3249, 0.0
        %v3259 = vmax.f32 %v3208, 0.0
        %v3260 = vmax.f32 %v3210, 0.0
        %v3261 = vmax.f32 %v3251, 0.0
        %v3262 = vmax.f32 %v3253, 0.0
        %v3263 = vpack.c.bf16 %v3259, %v3255
        %v3264 = vpack.c.bf16 %v3260, %v3256
        %v3265 = vpack.c.bf16 %v3261, %v3257
        %v3266 = vpack.c.bf16 %v3262, %v3258
        %v3267 = vld [vmem:[#allocation11] sm:$0xff]
        %v3268 = vld [vmem:[#allocation11 + $0x8] sm:$0xff]
        %v3269 = vld [vmem:[#allocation11 + $0x10] sm:$0xff]
        %v3270 = vld [vmem:[#allocation11 + $0x18] sm:$0xf]
        %v3271 = vld [vmem:[#allocation11 + $0x1c] sm:$0xff]
        %v3272 = vld [vmem:[#allocation11 + $0x24] sm:$0xff]
        %v3273 = vld [vmem:[#allocation11 + $0x2c] sm:$0xff]
        %v3274 = vld [vmem:[#allocation11 + $0x34] sm:$0xf]
        %v3275 = vld [vmem:[#allocation11 + $0x38] sm:$0xff]
        %v3276 = vld [vmem:[#allocation11 + $0x40] sm:$0xff]
        %v3277 = vld [vmem:[#allocation11 + $0x48] sm:$0xff]
        %v3278 = vld [vmem:[#allocation11 + $0x50] sm:$0xf]
        %v3279 = vld [vmem:[#allocation11 + $0x54] sm:$0xff]
        %v3280 = vld [vmem:[#allocation11 + $0x5c] sm:$0xff]
        %v3281 = vld [vmem:[#allocation11 + $0x64] sm:$0xff]
        %v3282 = vld [vmem:[#allocation11 + $0x6c] sm:$0xf]
        %v3283 = vld [vmem:[#allocation11 + $0x70] sm:$0xff]
        %v3284 = vld [vmem:[#allocation11 + $0x78] sm:$0xff]
        %v3285 = vld [vmem:[#allocation11 + $0x80] sm:$0xff]
        %v3286 = vld [vmem:[#allocation11 + $0x88] sm:$0xf]
        %v3287 = vld [vmem:[#allocation11 + $0x8c] sm:$0xff]
        %v3288 = vld [vmem:[#allocation11 + $0x94] sm:$0xff]
        %v3289 = vld [vmem:[#allocation11 + $0x9c] sm:$0xff]
        %v3290 = vld [vmem:[#allocation11 + $0xa4] sm:$0xf]
        %v3291 = vld [vmem:[#allocation11 + $0xa8] sm:$0xff]
        %v3292 = vld [vmem:[#allocation11 + $0xb0] sm:$0xff]
        %v3293 = vld [vmem:[#allocation11 + $0xb8] sm:$0xff]
        %v3294 = vld [vmem:[#allocation11 + $0xc0] sm:$0xf]
        %v3295 = vld [vmem:[#allocation11 + $0xc4] sm:$0xff]
        %v3296 = vld [vmem:[#allocation11 + $0xcc] sm:$0xff]
        %v3297 = vld [vmem:[#allocation11 + $0xd4] sm:$0xff]
        %v3298 = vld [vmem:[#allocation11 + $0xdc] sm:$0xf]
        %v3299 = vld [vmem:[#allocation11 + $0xe0] sm:$0xff]
        %v3300 = vld [vmem:[#allocation11 + $0xe8] sm:$0xff]
        %v3301 = vld [vmem:[#allocation11 + $0xf0] sm:$0xff]
        %v3302 = vld [vmem:[#allocation11 + $0xf8] sm:$0xf]
        %v3303 = vld [vmem:[#allocation11 + $0xfc] sm:$0xff]
        %v3304 = vld [vmem:[#allocation11 + $0x104] sm:$0xff]
        %v3305 = vld [vmem:[#allocation11 + $0x10c] sm:$0xff]
        %v3306 = vld [vmem:[#allocation11 + $0x114] sm:$0xf]
        %v3307 = vld [vmem:[#allocation11 + $0x118] sm:$0xff]
        %v3308 = vld [vmem:[#allocation11 + $0x120] sm:$0xff]
        %v3309 = vld [vmem:[#allocation11 + $0x128] sm:$0xff]
        %v3310 = vld [vmem:[#allocation11 + $0x130] sm:$0xf]
        %v3311 = vld [vmem:[#allocation11 + $0x134] sm:$0xff]
        %v3312 = vld [vmem:[#allocation11 + $0x13c] sm:$0xff]
        %v3313 = vld [vmem:[#allocation11 + $0x144] sm:$0xff]
        %v3314 = vld [vmem:[#allocation11 + $0x14c] sm:$0xf]
        %v3315 = vld [vmem:[#allocation11 + $0x150] sm:$0xff]
        %v3316 = vld [vmem:[#allocation11 + $0x158] sm:$0xff]
        %v3317 = vld [vmem:[#allocation11 + $0x160] sm:$0xff]
        %v3318 = vld [vmem:[#allocation11 + $0x168] sm:$0xf]
        %v3319 = vld [vmem:[#allocation11 + $0x16c] sm:$0xff]
        %v3320 = vld [vmem:[#allocation11 + $0x174] sm:$0xff]
        %v3321 = vld [vmem:[#allocation11 + $0x17c] sm:$0xff]
        %v3322 = vld [vmem:[#allocation11 + $0x184] sm:$0xf]
        %v3323 = vld [vmem:[#allocation11 + $0x188] sm:$0xff]
        %v3324 = vld [vmem:[#allocation11 + $0x190] sm:$0xff]
        %v3325 = vld [vmem:[#allocation11 + $0x198] sm:$0xff]
        %v3326 = vld [vmem:[#allocation11 + $0x1a0] sm:$0xf]
        %v3327 = vld [vmem:[#allocation11 + $0x1a4] sm:$0xff]
        %v3328 = vld [vmem:[#allocation11 + $0x1ac] sm:$0xff]
        %v3329 = vld [vmem:[#allocation11 + $0x1b4] sm:$0xff]
        %v3330 = vld [vmem:[#allocation11 + $0x1bc] sm:$0xf]
        %v3331 = vld [vmem:[#allocation11 + $0x1c0] sm:$0xff]
        %v3332 = vld [vmem:[#allocation11 + $0x1c8] sm:$0xff]
        %v3333 = vld [vmem:[#allocation11 + $0x1d0] sm:$0xff]
        %v3334 = vld [vmem:[#allocation11 + $0x1d8] sm:$0xf]
        %v3335 = vld [vmem:[#allocation11 + $0x1dc] sm:$0xff]
        %v3336 = vld [vmem:[#allocation11 + $0x1e4] sm:$0xff]
        %v3337 = vld [vmem:[#allocation11 + $0x1ec] sm:$0xff]
        %v3338 = vld [vmem:[#allocation11 + $0x1f4] sm:$0xf]
        %v3339 = vld [vmem:[#allocation11 + $0x1f8] sm:$0xff]
        %v3340 = vld [vmem:[#allocation11 + $0x200] sm:$0xff]
        %v3341 = vld [vmem:[#allocation11 + $0x208] sm:$0xff]
        %v3342 = vld [vmem:[#allocation11 + $0x210] sm:$0xf]
        %v3343 = vld [vmem:[#allocation11 + $0x214] sm:$0xff]
        %v3344 = vld [vmem:[#allocation11 + $0x21c] sm:$0xff]
        %v3345 = vld [vmem:[#allocation11 + $0x224] sm:$0xff]
        %v3346 = vld [vmem:[#allocation11 + $0x22c] sm:$0xf]
        %v3347 = vld [vmem:[#allocation11 + $0x230] sm:$0xff]
        %v3348 = vld [vmem:[#allocation11 + $0x238] sm:$0xff]
        %v3349 = vld [vmem:[#allocation11 + $0x240] sm:$0xff]
        %v3350 = vld [vmem:[#allocation11 + $0x248] sm:$0xf]
        %v3351 = vld [vmem:[#allocation11 + $0x24c] sm:$0xff]
        %v3352 = vld [vmem:[#allocation11 + $0x254] sm:$0xff]
        %v3353 = vld [vmem:[#allocation11 + $0x25c] sm:$0xff]
        %v3354 = vld [vmem:[#allocation11 + $0x264] sm:$0xf]
        %v3355 = vld [vmem:[#allocation11 + $0x268] sm:$0xff]
        %v3356 = vld [vmem:[#allocation11 + $0x270] sm:$0xff]
        %v3357 = vld [vmem:[#allocation11 + $0x278] sm:$0xff]
        %v3358 = vld [vmem:[#allocation11 + $0x280] sm:$0xf]
        %v3359 = vld [vmem:[#allocation11 + $0x284] sm:$0xff]
        %v3360 = vld [vmem:[#allocation11 + $0x28c] sm:$0xff]
        %v3361 = vld [vmem:[#allocation11 + $0x294] sm:$0xff]
        %v3362 = vld [vmem:[#allocation11 + $0x29c] sm:$0xf]
        %v3363 = vld [vmem:[#allocation11 + $0x2a0] sm:$0xff]
        %v3364 = vld [vmem:[#allocation11 + $0x2a8] sm:$0xff]
        %v3365 = vld [vmem:[#allocation11 + $0x2b0] sm:$0xff]
        %v3366 = vld [vmem:[#allocation11 + $0x2b8] sm:$0xf]
        %v3367 = vld [vmem:[#allocation11 + $0x2bc] sm:$0xff]
        %v3368 = vld [vmem:[#allocation11 + $0x2c4] sm:$0xff]
        %v3369 = vld [vmem:[#allocation11 + $0x2cc] sm:$0xff]
        %v3370 = vld [vmem:[#allocation11 + $0x2d4] sm:$0xf]
        %v3371 = vld [vmem:[#allocation11 + $0x2d8] sm:$0xff]
        %v3372 = vld [vmem:[#allocation11 + $0x2e0] sm:$0xff]
        %v3373 = vld [vmem:[#allocation11 + $0x2e8] sm:$0xff]
        %v3374 = vld [vmem:[#allocation11 + $0x2f0] sm:$0xf]
        %v3375 = vld [vmem:[#allocation11 + $0x2f4] sm:$0xff]
        %v3376 = vld [vmem:[#allocation11 + $0x2fc] sm:$0xff]
        %v3377 = vld [vmem:[#allocation11 + $0x304] sm:$0xff]
        %v3378 = vld [vmem:[#allocation11 + $0x30c] sm:$0xf]
        %v3379 = vld [vmem:[#allocation11 + $0x310] sm:$0xff]
        %v3380 = vld [vmem:[#allocation11 + $0x318] sm:$0xff]
        %v3381 = vld [vmem:[#allocation11 + $0x320] sm:$0xff]
        %v3382 = vld [vmem:[#allocation11 + $0x328] sm:$0xf]
        %v3383 = vld [vmem:[#allocation11 + $0x32c] sm:$0xff]
        %v3384 = vld [vmem:[#allocation11 + $0x334] sm:$0xff]
        %v3385 = vld [vmem:[#allocation11 + $0x33c] sm:$0xff]
        %v3386 = vld [vmem:[#allocation11 + $0x344] sm:$0xf]
        %v3387 = vld [vmem:[#allocation11 + $0x348] sm:$0xff]
        %v3388 = vld [vmem:[#allocation11 + $0x350] sm:$0xff]
        %v3389 = vld [vmem:[#allocation11 + $0x358] sm:$0xff]
        %v3390 = vld [vmem:[#allocation11 + $0x360] sm:$0xf]
        %v3391 = vld [vmem:[#allocation11 + $0x364] sm:$0xff]
        %v3392 = vld [vmem:[#allocation11 + $0x36c] sm:$0xff]
        %v3393 = vld [vmem:[#allocation11 + $0x374] sm:$0xff]
        %v3394 = vld [vmem:[#allocation11 + $0x37c] sm:$0xf]
        %v3395 = vld [vmem:[#allocation11 + $0x380] sm:$0xff]
        %v3396 = vld [vmem:[#allocation11 + $0x388] sm:$0xff]
        %v3397 = vld [vmem:[#allocation11 + $0x390] sm:$0xff]
        %v3398 = vld [vmem:[#allocation11 + $0x398] sm:$0xf]
        %v3399 = vld [vmem:[#allocation11 + $0x39c] sm:$0xff]
        %v3400 = vld [vmem:[#allocation11 + $0x3a4] sm:$0xff]
        %v3401 = vld [vmem:[#allocation11 + $0x3ac] sm:$0xff]
        %v3402 = vld [vmem:[#allocation11 + $0x3b4] sm:$0xf]
        %v3403 = vld [vmem:[#allocation11 + $0x3b8] sm:$0xff]
        %v3404 = vld [vmem:[#allocation11 + $0x3c0] sm:$0xff]
        %v3405 = vld [vmem:[#allocation11 + $0x3c8] sm:$0xff]
        %v3406 = vld [vmem:[#allocation11 + $0x3d0] sm:$0xf]
        %v3407 = vld [vmem:[#allocation11 + $0x3d4] sm:$0xff]
        %v3408 = vld [vmem:[#allocation11 + $0x3dc] sm:$0xff]
        %v3409 = vld [vmem:[#allocation11 + $0x3e4] sm:$0xff]
        %v3410 = vld [vmem:[#allocation11 + $0x3ec] sm:$0xf]
        %v3411 = vld [vmem:[#allocation11 + $0x3f0] sm:$0xff]
        %v3412 = vld [vmem:[#allocation11 + $0x3f8] sm:$0xff]
        %v3413 = vld [vmem:[#allocation11 + $0x400] sm:$0xff]
        %v3414 = vld [vmem:[#allocation11 + $0x408] sm:$0xf]
        %v3415 = vld [vmem:[#allocation11 + $0x40c] sm:$0xff]
        %v3416 = vld [vmem:[#allocation11 + $0x414] sm:$0xff]
        %v3417 = vld [vmem:[#allocation11 + $0x41c] sm:$0xff]
        %v3418 = vld [vmem:[#allocation11 + $0x424] sm:$0xf]
        %v3419 = vld [vmem:[#allocation11 + $0x428] sm:$0xff]
        %v3420 = vld [vmem:[#allocation11 + $0x430] sm:$0xff]
        %v3421 = vld [vmem:[#allocation11 + $0x438] sm:$0xff]
        %v3422 = vld [vmem:[#allocation11 + $0x440] sm:$0xf]
        %v3423 = vld [vmem:[#allocation11 + $0x444] sm:$0xff]
        %v3424 = vld [vmem:[#allocation11 + $0x44c] sm:$0xff]
        %v3425 = vld [vmem:[#allocation11 + $0x454] sm:$0xff]
        %v3426 = vld [vmem:[#allocation11 + $0x45c] sm:$0xf]
        %v3427 = vld [vmem:[#allocation11 + $0x460] sm:$0xff]
        %v3428 = vld [vmem:[#allocation11 + $0x468] sm:$0xff]
        %v3429 = vld [vmem:[#allocation11 + $0x470] sm:$0xff]
        %v3430 = vld [vmem:[#allocation11 + $0x478] sm:$0xf]
        %v3431 = vld [vmem:[#allocation11 + $0x47c] sm:$0xff]
        %v3432 = vld [vmem:[#allocation11 + $0x484] sm:$0xff]
        %v3433 = vld [vmem:[#allocation11 + $0x48c] sm:$0xff]
        %v3434 = vld [vmem:[#allocation11 + $0x494] sm:$0xf]
        %v3435 = vld [vmem:[#allocation11 + $0x498] sm:$0xff]
        %v3436 = vld [vmem:[#allocation11 + $0x4a0] sm:$0xff]
        %v3437 = vld [vmem:[#allocation11 + $0x4a8] sm:$0xff]
        %v3438 = vld [vmem:[#allocation11 + $0x4b0] sm:$0xf]
        %v3439 = vld [vmem:[#allocation11 + $0x4b4] sm:$0xff]
        %v3440 = vld [vmem:[#allocation11 + $0x4bc] sm:$0xff]
        %v3441 = vld [vmem:[#allocation11 + $0x4c4] sm:$0xff]
        %v3442 = vld [vmem:[#allocation11 + $0x4cc] sm:$0xf]
        %v3443 = vld [vmem:[#allocation11 + $0x4d0] sm:$0xff]
        %v3444 = vld [vmem:[#allocation11 + $0x4d8] sm:$0xff]
        %v3445 = vld [vmem:[#allocation11 + $0x4e0] sm:$0xff]
        %v3446 = vld [vmem:[#allocation11 + $0x4e8] sm:$0xf]
        %v3447 = vld [vmem:[#allocation11 + $0x4ec] sm:$0xff]
        %v3448 = vld [vmem:[#allocation11 + $0x4f4] sm:$0xff]
        %v3449 = vld [vmem:[#allocation11 + $0x4fc] sm:$0xff]
        %v3450 = vld [vmem:[#allocation11 + $0x504] sm:$0xf]
        %v3451 = vld [vmem:[#allocation11 + $0x508] sm:$0xff]
        %v3452 = vld [vmem:[#allocation11 + $0x510] sm:$0xff]
        %v3453 = vld [vmem:[#allocation11 + $0x518] sm:$0xff]
        %v3454 = vld [vmem:[#allocation11 + $0x520] sm:$0xf]
        %v3455 = vld [vmem:[#allocation11 + $0x524] sm:$0xff]
        %v3456 = vld [vmem:[#allocation11 + $0x52c] sm:$0xff]
        %v3457 = vld [vmem:[#allocation11 + $0x534] sm:$0xff]
        %v3458 = vld [vmem:[#allocation11 + $0x53c] sm:$0xf]
        %v3459 = vld [vmem:[#allocation11 + $0x540] sm:$0xff]
        %v3460 = vld [vmem:[#allocation11 + $0x548] sm:$0xff]
        %v3461 = vld [vmem:[#allocation11 + $0x550] sm:$0xff]
        %v3462 = vld [vmem:[#allocation11 + $0x558] sm:$0xf]
        %v3463 = vld [vmem:[#allocation11 + $0x55c] sm:$0xff]
        %v3464 = vld [vmem:[#allocation11 + $0x564] sm:$0xff]
        %v3465 = vld [vmem:[#allocation11 + $0x56c] sm:$0xff]
        %v3466 = vld [vmem:[#allocation11 + $0x574] sm:$0xf]
        %v3467 = vld [vmem:[#allocation11 + $0x578] sm:$0xff]
        %v3468 = vld [vmem:[#allocation11 + $0x580] sm:$0xff]
        %v3469 = vld [vmem:[#allocation11 + $0x588] sm:$0xff]
        %v3470 = vld [vmem:[#allocation11 + $0x590] sm:$0xf]
        %v3471 = vld [vmem:[#allocation11 + $0x594] sm:$0xff]
        %v3472 = vld [vmem:[#allocation11 + $0x59c] sm:$0xff]
        %v3473 = vld [vmem:[#allocation11 + $0x5a4] sm:$0xff]
        %v3474 = vld [vmem:[#allocation11 + $0x5ac] sm:$0xf]
        %v3475 = vld [vmem:[#allocation11 + $0x5b0] sm:$0xff]
        %v3476 = vld [vmem:[#allocation11 + $0x5b8] sm:$0xff]
        %v3477 = vld [vmem:[#allocation11 + $0x5c0] sm:$0xff]
        %v3478 = vld [vmem:[#allocation11 + $0x5c8] sm:$0xf]
        %v3479 = vld [vmem:[#allocation11 + $0x5cc] sm:$0xff]
        %v3480 = vld [vmem:[#allocation11 + $0x5d4] sm:$0xff]
        %v3481 = vld [vmem:[#allocation11 + $0x5dc] sm:$0xff]
        %v3482 = vld [vmem:[#allocation11 + $0x5e4] sm:$0xf]
        %v3483 = vld [vmem:[#allocation11 + $0x5e8] sm:$0xff]
        %v3484 = vld [vmem:[#allocation11 + $0x5f0] sm:$0xff]
        %v3485 = vld [vmem:[#allocation11 + $0x5f8] sm:$0xff]
        %v3486 = vld [vmem:[#allocation11 + $0x600] sm:$0xf]
        %v3487 = vld [vmem:[#allocation11 + $0x604] sm:$0xff]
        %v3488 = vld [vmem:[#allocation11 + $0x60c] sm:$0xff]
        %v3489 = vld [vmem:[#allocation11 + $0x614] sm:$0xff]
        %v3490 = vld [vmem:[#allocation11 + $0x61c] sm:$0xf]
        %v3491 = vld [vmem:[#allocation11 + $0x620] sm:$0xff]
        %v3492 = vld [vmem:[#allocation11 + $0x628] sm:$0xff]
        %v3493 = vld [vmem:[#allocation11 + $0x630] sm:$0xff]
        %v3494 = vld [vmem:[#allocation11 + $0x638] sm:$0xf]
        %v3495 = vld [vmem:[#allocation11 + $0x63c] sm:$0xff]
        %v3496 = vld [vmem:[#allocation11 + $0x644] sm:$0xff]
        %v3497 = vld [vmem:[#allocation11 + $0x64c] sm:$0xff]
        %v3498 = vld [vmem:[#allocation11 + $0x654] sm:$0xf]
        %v3499 = vld [vmem:[#allocation11 + $0x658] sm:$0xff]
        %v3500 = vld [vmem:[#allocation11 + $0x660] sm:$0xff]
        %v3501 = vld [vmem:[#allocation11 + $0x668] sm:$0xff]
        %v3502 = vld [vmem:[#allocation11 + $0x670] sm:$0xf]
        %v3503 = vld [vmem:[#allocation11 + $0x674] sm:$0xff]
        %v3504 = vld [vmem:[#allocation11 + $0x67c] sm:$0xff]
        %v3505 = vld [vmem:[#allocation11 + $0x684] sm:$0xff]
        %v3506 = vld [vmem:[#allocation11 + $0x68c] sm:$0xf]
        %v3507 = vld [vmem:[#allocation11 + $0x690] sm:$0xff]
        %v3508 = vld [vmem:[#allocation11 + $0x698] sm:$0xff]
        %v3509 = vld [vmem:[#allocation11 + $0x6a0] sm:$0xff]
        %v3510 = vld [vmem:[#allocation11 + $0x6a8] sm:$0xf]
        %v3511 = vld [vmem:[#allocation11 + $0x6ac] sm:$0xff]
        %v3512 = vld [vmem:[#allocation11 + $0x6b4] sm:$0xff]
        %v3513 = vld [vmem:[#allocation11 + $0x6bc] sm:$0xff]
        %v3514 = vld [vmem:[#allocation11 + $0x6c4] sm:$0xf]
        %v3515 = vld [vmem:[#allocation11 + $0x6c8] sm:$0xff]
        %v3516 = vld [vmem:[#allocation11 + $0x6d0] sm:$0xff]
        %v3517 = vld [vmem:[#allocation11 + $0x6d8] sm:$0xff]
        %v3518 = vld [vmem:[#allocation11 + $0x6e0] sm:$0xf]
        %v3519 = vld [vmem:[#allocation11 + $0x6e4] sm:$0xff]
        %v3520 = vld [vmem:[#allocation11 + $0x6ec] sm:$0xff]
        %v3521 = vld [vmem:[#allocation11 + $0x6f4] sm:$0xff]
        %v3522 = vld [vmem:[#allocation11 + $0x6fc] sm:$0xf]
        %v3779 = vunpack.c.l.b16 %v3267
        %v3780 = vunpack.c.h.b16 %v3267
        %v3781 = vunpack.c.l.b16 %v3268
        %v3782 = vunpack.c.h.b16 %v3268
        %v3783 = vunpack.c.l.b16 %v3269
        %v3784 = vunpack.c.h.b16 %v3269
        %v3785 = vunpack.c.l.b16 %v3270
        %v3786 = vunpack.c.l.b16 %v3271
        %v3787 = vunpack.c.h.b16 %v3271
        %v3788 = vunpack.c.l.b16 %v3272
        %v3789 = vunpack.c.h.b16 %v3272
        %v3790 = vunpack.c.l.b16 %v3273
        %v3791 = vunpack.c.h.b16 %v3273
        %v3792 = vunpack.c.l.b16 %v3274
        %v3793 = vunpack.c.l.b16 %v3275
        %v3794 = vunpack.c.h.b16 %v3275
        %v3795 = vunpack.c.l.b16 %v3276
        %v3796 = vunpack.c.h.b16 %v3276
        %v3797 = vunpack.c.l.b16 %v3277
        %v3798 = vunpack.c.h.b16 %v3277
        %v3799 = vunpack.c.l.b16 %v3278
        %v3800 = vunpack.c.l.b16 %v3279
        %v3801 = vunpack.c.h.b16 %v3279
        %v3802 = vunpack.c.l.b16 %v3280
        %v3803 = vunpack.c.h.b16 %v3280
        %v3804 = vunpack.c.l.b16 %v3281
        %v3805 = vunpack.c.h.b16 %v3281
        %v3806 = vunpack.c.l.b16 %v3282
        %v3807 = vunpack.c.l.b16 %v3283
        %v3808 = vunpack.c.h.b16 %v3283
        %v3809 = vunpack.c.l.b16 %v3284
        %v3810 = vunpack.c.h.b16 %v3284
        %v3811 = vunpack.c.l.b16 %v3285
        %v3812 = vunpack.c.h.b16 %v3285
        %v3813 = vunpack.c.l.b16 %v3286
        %v3814 = vunpack.c.l.b16 %v3287
        %v3815 = vunpack.c.h.b16 %v3287
        %v3816 = vunpack.c.l.b16 %v3288
        %v3817 = vunpack.c.h.b16 %v3288
        %v3818 = vunpack.c.l.b16 %v3289
        %v3819 = vunpack.c.h.b16 %v3289
        %v3820 = vunpack.c.l.b16 %v3290
        %v3821 = vunpack.c.l.b16 %v3291
        %v3822 = vunpack.c.h.b16 %v3291
        %v3823 = vunpack.c.l.b16 %v3292
        %v3824 = vunpack.c.h.b16 %v3292
        %v3825 = vunpack.c.l.b16 %v3293
        %v3826 = vunpack.c.h.b16 %v3293
        %v3827 = vunpack.c.l.b16 %v3294
        %v3828 = vunpack.c.l.b16 %v3295
        %v3829 = vunpack.c.h.b16 %v3295
        %v3830 = vunpack.c.l.b16 %v3296
        %v3831 = vunpack.c.h.b16 %v3296
        %v3832 = vunpack.c.l.b16 %v3297
        %v3833 = vunpack.c.h.b16 %v3297
        %v3834 = vunpack.c.l.b16 %v3298
        %v3835 = vunpack.c.l.b16 %v3299
        %v3836 = vunpack.c.h.b16 %v3299
        %v3837 = vunpack.c.l.b16 %v3300
        %v3838 = vunpack.c.h.b16 %v3300
        %v3839 = vunpack.c.l.b16 %v3301
        %v3840 = vunpack.c.h.b16 %v3301
        %v3841 = vunpack.c.l.b16 %v3302
        %v3842 = vunpack.c.l.b16 %v3303
        %v3843 = vunpack.c.h.b16 %v3303
        %v3844 = vunpack.c.l.b16 %v3304
        %v3845 = vunpack.c.h.b16 %v3304
        %v3846 = vunpack.c.l.b16 %v3305
        %v3847 = vunpack.c.h.b16 %v3305
        %v3848 = vunpack.c.l.b16 %v3306
        %v3849 = vunpack.c.l.b16 %v3307
        %v3850 = vunpack.c.h.b16 %v3307
        %v3851 = vunpack.c.l.b16 %v3308
        %v3852 = vunpack.c.h.b16 %v3308
        %v3853 = vunpack.c.l.b16 %v3309
        %v3854 = vunpack.c.h.b16 %v3309
        %v3855 = vunpack.c.l.b16 %v3310
        %v3856 = vunpack.c.l.b16 %v3311
        %v3857 = vunpack.c.h.b16 %v3311
        %v3858 = vunpack.c.l.b16 %v3312
        %v3859 = vunpack.c.h.b16 %v3312
        %v3860 = vunpack.c.l.b16 %v3313
        %v3861 = vunpack.c.h.b16 %v3313
        %v3862 = vunpack.c.l.b16 %v3314
        %v3863 = vunpack.c.l.b16 %v3315
        %v3864 = vunpack.c.h.b16 %v3315
        %v3865 = vunpack.c.l.b16 %v3316
        %v3866 = vunpack.c.h.b16 %v3316
        %v3867 = vunpack.c.l.b16 %v3317
        %v3868 = vunpack.c.h.b16 %v3317
        %v3869 = vunpack.c.l.b16 %v3318
        %v3870 = vunpack.c.l.b16 %v3319
        %v3871 = vunpack.c.h.b16 %v3319
        %v3872 = vunpack.c.l.b16 %v3320
        %v3873 = vunpack.c.h.b16 %v3320
        %v3874 = vunpack.c.l.b16 %v3321
        %v3875 = vunpack.c.h.b16 %v3321
        %v3876 = vunpack.c.l.b16 %v3322
        %v3877 = vunpack.c.l.b16 %v3323
        %v3878 = vunpack.c.h.b16 %v3323
        %v3879 = vunpack.c.l.b16 %v3324
        %v3880 = vunpack.c.h.b16 %v3324
        %v3881 = vunpack.c.l.b16 %v3325
        %v3882 = vunpack.c.h.b16 %v3325
        %v3883 = vunpack.c.l.b16 %v3326
        %v3884 = vunpack.c.l.b16 %v3327
        %v3885 = vunpack.c.h.b16 %v3327
        %v3886 = vunpack.c.l.b16 %v3328
        %v3887 = vunpack.c.h.b16 %v3328
        %v3888 = vunpack.c.l.b16 %v3329
        %v3889 = vunpack.c.h.b16 %v3329
        %v3890 = vunpack.c.l.b16 %v3330
        %v3891 = vunpack.c.l.b16 %v3331
        %v3892 = vunpack.c.h.b16 %v3331
        %v3893 = vunpack.c.l.b16 %v3332
        %v3894 = vunpack.c.h.b16 %v3332
        %v3895 = vunpack.c.l.b16 %v3333
        %v3896 = vunpack.c.h.b16 %v3333
        %v3897 = vunpack.c.l.b16 %v3334
        %v3898 = vunpack.c.l.b16 %v3335
        %v3899 = vunpack.c.h.b16 %v3335
        %v3900 = vunpack.c.l.b16 %v3336
        %v3901 = vunpack.c.h.b16 %v3336
        %v3902 = vunpack.c.l.b16 %v3337
        %v3903 = vunpack.c.h.b16 %v3337
        %v3904 = vunpack.c.l.b16 %v3338
        %v3905 = vunpack.c.l.b16 %v3339
        %v3906 = vunpack.c.h.b16 %v3339
        %v3907 = vunpack.c.l.b16 %v3340
        %v3908 = vunpack.c.h.b16 %v3340
        %v3909 = vunpack.c.l.b16 %v3341
        %v3910 = vunpack.c.h.b16 %v3341
        %v3911 = vunpack.c.l.b16 %v3342
        %v3912 = vunpack.c.l.b16 %v3343
        %v3913 = vunpack.c.h.b16 %v3343
        %v3914 = vunpack.c.l.b16 %v3344
        %v3915 = vunpack.c.h.b16 %v3344
        %v3916 = vunpack.c.l.b16 %v3345
        %v3917 = vunpack.c.h.b16 %v3345
        %v3918 = vunpack.c.l.b16 %v3346
        %v3919 = vunpack.c.l.b16 %v3347
        %v3920 = vunpack.c.h.b16 %v3347
        %v3921 = vunpack.c.l.b16 %v3348
        %v3922 = vunpack.c.h.b16 %v3348
        %v3923 = vunpack.c.l.b16 %v3349
        %v3924 = vunpack.c.h.b16 %v3349
        %v3925 = vunpack.c.l.b16 %v3350
        %v3926 = vunpack.c.l.b16 %v3351
        %v3927 = vunpack.c.h.b16 %v3351
        %v3928 = vunpack.c.l.b16 %v3352
        %v3929 = vunpack.c.h.b16 %v3352
        %v3930 = vunpack.c.l.b16 %v3353
        %v3931 = vunpack.c.h.b16 %v3353
        %v3932 = vunpack.c.l.b16 %v3354
        %v3933 = vunpack.c.l.b16 %v3355
        %v3934 = vunpack.c.h.b16 %v3355
        %v3935 = vunpack.c.l.b16 %v3356
        %v3936 = vunpack.c.h.b16 %v3356
        %v3937 = vunpack.c.l.b16 %v3357
        %v3938 = vunpack.c.h.b16 %v3357
        %v3939 = vunpack.c.l.b16 %v3358
        %v3940 = vunpack.c.l.b16 %v3359
        %v3941 = vunpack.c.h.b16 %v3359
        %v3942 = vunpack.c.l.b16 %v3360
        %v3943 = vunpack.c.h.b16 %v3360
        %v3944 = vunpack.c.l.b16 %v3361
        %v3945 = vunpack.c.h.b16 %v3361
        %v3946 = vunpack.c.l.b16 %v3362
        %v3947 = vunpack.c.l.b16 %v3363
        %v3948 = vunpack.c.h.b16 %v3363
        %v3949 = vunpack.c.l.b16 %v3364
        %v3950 = vunpack.c.h.b16 %v3364
        %v3951 = vunpack.c.l.b16 %v3365
        %v3952 = vunpack.c.h.b16 %v3365
        %v3953 = vunpack.c.l.b16 %v3366
        %v3954 = vunpack.c.l.b16 %v3367
        %v3955 = vunpack.c.h.b16 %v3367
        %v3956 = vunpack.c.l.b16 %v3368
        %v3957 = vunpack.c.h.b16 %v3368
        %v3958 = vunpack.c.l.b16 %v3369
        %v3959 = vunpack.c.h.b16 %v3369
        %v3960 = vunpack.c.l.b16 %v3370
        %v3961 = vunpack.c.l.b16 %v3371
        %v3962 = vunpack.c.h.b16 %v3371
        %v3963 = vunpack.c.l.b16 %v3372
        %v3964 = vunpack.c.h.b16 %v3372
        %v3965 = vunpack.c.l.b16 %v3373
        %v3966 = vunpack.c.h.b16 %v3373
        %v3967 = vunpack.c.l.b16 %v3374
        %v3968 = vunpack.c.l.b16 %v3375
        %v3969 = vunpack.c.h.b16 %v3375
        %v3970 = vunpack.c.l.b16 %v3376
        %v3971 = vunpack.c.h.b16 %v3376
        %v3972 = vunpack.c.l.b16 %v3377
        %v3973 = vunpack.c.h.b16 %v3377
        %v3974 = vunpack.c.l.b16 %v3378
        %v3975 = vunpack.c.l.b16 %v3379
        %v3976 = vunpack.c.h.b16 %v3379
        %v3977 = vunpack.c.l.b16 %v3380
        %v3978 = vunpack.c.h.b16 %v3380
        %v3979 = vunpack.c.l.b16 %v3381
        %v3980 = vunpack.c.h.b16 %v3381
        %v3981 = vunpack.c.l.b16 %v3382
        %v3982 = vunpack.c.l.b16 %v3383
        %v3983 = vunpack.c.h.b16 %v3383
        %v3984 = vunpack.c.l.b16 %v3384
        %v3985 = vunpack.c.h.b16 %v3384
        %v3986 = vunpack.c.l.b16 %v3385
        %v3987 = vunpack.c.h.b16 %v3385
        %v3988 = vunpack.c.l.b16 %v3386
        %v3989 = vunpack.c.l.b16 %v3387
        %v3990 = vunpack.c.h.b16 %v3387
        %v3991 = vunpack.c.l.b16 %v3388
        %v3992 = vunpack.c.h.b16 %v3388
        %v3993 = vunpack.c.l.b16 %v3389
        %v3994 = vunpack.c.h.b16 %v3389
        %v3995 = vunpack.c.l.b16 %v3390
        %v3996 = vunpack.c.l.b16 %v3391
        %v3997 = vunpack.c.h.b16 %v3391
        %v3998 = vunpack.c.l.b16 %v3392
        %v3999 = vunpack.c.h.b16 %v3392
        %v4000 = vunpack.c.l.b16 %v3393
        %v4001 = vunpack.c.h.b16 %v3393
        %v4002 = vunpack.c.l.b16 %v3394
        %v4003 = vunpack.c.l.b16 %v3395
        %v4004 = vunpack.c.h.b16 %v3395
        %v4005 = vunpack.c.l.b16 %v3396
        %v4006 = vunpack.c.h.b16 %v3396
        %v4007 = vunpack.c.l.b16 %v3397
        %v4008 = vunpack.c.h.b16 %v3397
        %v4009 = vunpack.c.l.b16 %v3398
        %v4010 = vunpack.c.l.b16 %v3399
        %v4011 = vunpack.c.h.b16 %v3399
        %v4012 = vunpack.c.l.b16 %v3400
        %v4013 = vunpack.c.h.b16 %v3400
        %v4014 = vunpack.c.l.b16 %v3401
        %v4015 = vunpack.c.h.b16 %v3401
        %v4016 = vunpack.c.l.b16 %v3402
        %v4017 = vunpack.c.l.b16 %v3403
        %v4018 = vunpack.c.h.b16 %v3403
        %v4019 = vunpack.c.l.b16 %v3404
        %v4020 = vunpack.c.h.b16 %v3404
        %v4021 = vunpack.c.l.b16 %v3405
        %v4022 = vunpack.c.h.b16 %v3405
        %v4023 = vunpack.c.l.b16 %v3406
        %v4024 = vunpack.c.l.b16 %v3407
        %v4025 = vunpack.c.h.b16 %v3407
        %v4026 = vunpack.c.l.b16 %v3408
        %v4027 = vunpack.c.h.b16 %v3408
        %v4028 = vunpack.c.l.b16 %v3409
        %v4029 = vunpack.c.h.b16 %v3409
        %v4030 = vunpack.c.l.b16 %v3410
        %v4031 = vunpack.c.l.b16 %v3411
        %v4032 = vunpack.c.h.b16 %v3411
        %v4033 = vunpack.c.l.b16 %v3412
        %v4034 = vunpack.c.h.b16 %v3412
        %v4035 = vunpack.c.l.b16 %v3413
        %v4036 = vunpack.c.h.b16 %v3413
        %v4037 = vunpack.c.l.b16 %v3414
        %v4038 = vunpack.c.l.b16 %v3415
        %v4039 = vunpack.c.h.b16 %v3415
        %v4040 = vunpack.c.l.b16 %v3416
        %v4041 = vunpack.c.h.b16 %v3416
        %v4042 = vunpack.c.l.b16 %v3417
        %v4043 = vunpack.c.h.b16 %v3417
        %v4044 = vunpack.c.l.b16 %v3418
        %v4045 = vunpack.c.l.b16 %v3419
        %v4046 = vunpack.c.h.b16 %v3419
        %v4047 = vunpack.c.l.b16 %v3420
        %v4048 = vunpack.c.h.b16 %v3420
        %v4049 = vunpack.c.l.b16 %v3421
        %v4050 = vunpack.c.h.b16 %v3421
        %v4051 = vunpack.c.l.b16 %v3422
        %v4052 = vunpack.c.l.b16 %v3423
        %v4053 = vunpack.c.h.b16 %v3423
        %v4054 = vunpack.c.l.b16 %v3424
        %v4055 = vunpack.c.h.b16 %v3424
        %v4056 = vunpack.c.l.b16 %v3425
        %v4057 = vunpack.c.h.b16 %v3425
        %v4058 = vunpack.c.l.b16 %v3426
        %v4059 = vunpack.c.l.b16 %v3427
        %v4060 = vunpack.c.h.b16 %v3427
        %v4061 = vunpack.c.l.b16 %v3428
        %v4062 = vunpack.c.h.b16 %v3428
        %v4063 = vunpack.c.l.b16 %v3429
        %v4064 = vunpack.c.h.b16 %v3429
        %v4065 = vunpack.c.l.b16 %v3430
        %v4066 = vunpack.c.l.b16 %v3431
        %v4067 = vunpack.c.h.b16 %v3431
        %v4068 = vunpack.c.l.b16 %v3432
        %v4069 = vunpack.c.h.b16 %v3432
        %v4070 = vunpack.c.l.b16 %v3433
        %v4071 = vunpack.c.h.b16 %v3433
        %v4072 = vunpack.c.l.b16 %v3434
        %v4073 = vunpack.c.l.b16 %v3435
        %v4074 = vunpack.c.h.b16 %v3435
        %v4075 = vunpack.c.l.b16 %v3436
        %v4076 = vunpack.c.h.b16 %v3436
        %v4077 = vunpack.c.l.b16 %v3437
        %v4078 = vunpack.c.h.b16 %v3437
        %v4079 = vunpack.c.l.b16 %v3438
        %v4080 = vunpack.c.l.b16 %v3439
        %v4081 = vunpack.c.h.b16 %v3439
        %v4082 = vunpack.c.l.b16 %v3440
        %v4083 = vunpack.c.h.b16 %v3440
        %v4084 = vunpack.c.l.b16 %v3441
        %v4085 = vunpack.c.h.b16 %v3441
        %v4086 = vunpack.c.l.b16 %v3442
        %v4087 = vunpack.c.l.b16 %v3443
        %v4088 = vunpack.c.h.b16 %v3443
        %v4089 = vunpack.c.l.b16 %v3444
        %v4090 = vunpack.c.h.b16 %v3444
        %v4091 = vunpack.c.l.b16 %v3445
        %v4092 = vunpack.c.h.b16 %v3445
        %v4093 = vunpack.c.l.b16 %v3446
        %v4094 = vunpack.c.l.b16 %v3447
        %v4095 = vunpack.c.h.b16 %v3447
        %v4096 = vunpack.c.l.b16 %v3448
        %v4097 = vunpack.c.h.b16 %v3448
        %v4098 = vunpack.c.l.b16 %v3449
        %v4099 = vunpack.c.h.b16 %v3449
        %v4100 = vunpack.c.l.b16 %v3450
        %v4101 = vunpack.c.l.b16 %v3451
        %v4102 = vunpack.c.h.b16 %v3451
        %v4103 = vunpack.c.l.b16 %v3452
        %v4104 = vunpack.c.h.b16 %v3452
        %v4105 = vunpack.c.l.b16 %v3453
        %v4106 = vunpack.c.h.b16 %v3453
        %v4107 = vunpack.c.l.b16 %v3454
        %v4108 = vunpack.c.l.b16 %v3455
        %v4109 = vunpack.c.h.b16 %v3455
        %v4110 = vunpack.c.l.b16 %v3456
        %v4111 = vunpack.c.h.b16 %v3456
        %v4112 = vunpack.c.l.b16 %v3457
        %v4113 = vunpack.c.h.b16 %v3457
        %v4114 = vunpack.c.l.b16 %v3458
        %v4115 = vunpack.c.l.b16 %v3459
        %v4116 = vunpack.c.h.b16 %v3459
        %v4117 = vunpack.c.l.b16 %v3460
        %v4118 = vunpack.c.h.b16 %v3460
        %v4119 = vunpack.c.l.b16 %v3461
        %v4120 = vunpack.c.h.b16 %v3461
        %v4121 = vunpack.c.l.b16 %v3462
        %v4122 = vunpack.c.l.b16 %v3463
        %v4123 = vunpack.c.h.b16 %v3463
        %v4124 = vunpack.c.l.b16 %v3464
        %v4125 = vunpack.c.h.b16 %v3464
        %v4126 = vunpack.c.l.b16 %v3465
        %v4127 = vunpack.c.h.b16 %v3465
        %v4128 = vunpack.c.l.b16 %v3466
        %v4129 = vunpack.c.l.b16 %v3467
        %v4130 = vunpack.c.h.b16 %v3467
        %v4131 = vunpack.c.l.b16 %v3468
        %v4132 = vunpack.c.h.b16 %v3468
        %v4133 = vunpack.c.l.b16 %v3469
        %v4134 = vunpack.c.h.b16 %v3469
        %v4135 = vunpack.c.l.b16 %v3470
        %v4136 = vunpack.c.l.b16 %v3471
        %v4137 = vunpack.c.h.b16 %v3471
        %v4138 = vunpack.c.l.b16 %v3472
        %v4139 = vunpack.c.h.b16 %v3472
        %v4140 = vunpack.c.l.b16 %v3473
        %v4141 = vunpack.c.h.b16 %v3473
        %v4142 = vunpack.c.l.b16 %v3474
        %v4143 = vunpack.c.l.b16 %v3475
        %v4144 = vunpack.c.h.b16 %v3475
        %v4145 = vunpack.c.l.b16 %v3476
        %v4146 = vunpack.c.h.b16 %v3476
        %v4147 = vunpack.c.l.b16 %v3477
        %v4148 = vunpack.c.h.b16 %v3477
        %v4149 = vunpack.c.l.b16 %v3478
        %v4150 = vunpack.c.l.b16 %v3479
        %v4151 = vunpack.c.h.b16 %v3479
        %v4152 = vunpack.c.l.b16 %v3480
        %v4153 = vunpack.c.h.b16 %v3480
        %v4154 = vunpack.c.l.b16 %v3481
        %v4155 = vunpack.c.h.b16 %v3481
        %v4156 = vunpack.c.l.b16 %v3482
        %v4157 = vunpack.c.l.b16 %v3483
        %v4158 = vunpack.c.h.b16 %v3483
        %v4159 = vunpack.c.l.b16 %v3484
        %v4160 = vunpack.c.h.b16 %v3484
        %v4161 = vunpack.c.l.b16 %v3485
        %v4162 = vunpack.c.h.b16 %v3485
        %v4163 = vunpack.c.l.b16 %v3486
        %v4164 = vunpack.c.l.b16 %v3487
        %v4165 = vunpack.c.h.b16 %v3487
        %v4166 = vunpack.c.l.b16 %v3488
        %v4167 = vunpack.c.h.b16 %v3488
        %v4168 = vunpack.c.l.b16 %v3489
        %v4169 = vunpack.c.h.b16 %v3489
        %v4170 = vunpack.c.l.b16 %v3490
        %v4171 = vunpack.c.l.b16 %v3491
        %v4172 = vunpack.c.h.b16 %v3491
        %v4173 = vunpack.c.l.b16 %v3492
        %v4174 = vunpack.c.h.b16 %v3492
        %v4175 = vunpack.c.l.b16 %v3493
        %v4176 = vunpack.c.h.b16 %v3493
        %v4177 = vunpack.c.l.b16 %v3494
        %v4178 = vunpack.c.l.b16 %v3495
        %v4179 = vunpack.c.h.b16 %v3495
        %v4180 = vunpack.c.l.b16 %v3496
        %v4181 = vunpack.c.h.b16 %v3496
        %v4182 = vunpack.c.l.b16 %v3497
        %v4183 = vunpack.c.h.b16 %v3497
        %v4184 = vunpack.c.l.b16 %v3498
        %v4185 = vunpack.c.l.b16 %v3499
        %v4186 = vunpack.c.h.b16 %v3499
        %v4187 = vunpack.c.l.b16 %v3500
        %v4188 = vunpack.c.h.b16 %v3500
        %v4189 = vunpack.c.l.b16 %v3501
        %v4190 = vunpack.c.h.b16 %v3501
        %v4191 = vunpack.c.l.b16 %v3502
        %v4192 = vunpack.c.l.b16 %v3503
        %v4193 = vunpack.c.h.b16 %v3503
        %v4194 = vunpack.c.l.b16 %v3504
        %v4195 = vunpack.c.h.b16 %v3504
        %v4196 = vunpack.c.l.b16 %v3505
        %v4197 = vunpack.c.h.b16 %v3505
        %v4198 = vunpack.c.l.b16 %v3506
        %v4199 = vunpack.c.l.b16 %v3507
        %v4200 = vunpack.c.h.b16 %v3507
        %v4201 = vunpack.c.l.b16 %v3508
        %v4202 = vunpack.c.h.b16 %v3508
        %v4203 = vunpack.c.l.b16 %v3509
        %v4204 = vunpack.c.h.b16 %v3509
        %v4205 = vunpack.c.l.b16 %v3510
        %v4206 = vunpack.c.l.b16 %v3511
        %v4207 = vunpack.c.h.b16 %v3511
        %v4208 = vunpack.c.l.b16 %v3512
        %v4209 = vunpack.c.h.b16 %v3512
        %v4210 = vunpack.c.l.b16 %v3513
        %v4211 = vunpack.c.h.b16 %v3513
        %v4212 = vunpack.c.l.b16 %v3514
        %v4213 = vunpack.c.l.b16 %v3515
        %v4214 = vunpack.c.h.b16 %v3515
        %v4215 = vunpack.c.l.b16 %v3516
        %v4216 = vunpack.c.h.b16 %v3516
        %v4217 = vunpack.c.l.b16 %v3517
        %v4218 = vunpack.c.h.b16 %v3517
        %v4219 = vunpack.c.l.b16 %v3518
        %v4220 = vunpack.c.l.b16 %v3519
        %v4221 = vunpack.c.h.b16 %v3519
        %v4222 = vunpack.c.l.b16 %v3520
        %v4223 = vunpack.c.h.b16 %v3520
        %v4224 = vunpack.c.l.b16 %v3521
        %v4225 = vunpack.c.h.b16 %v3521
        %v4226 = vunpack.c.l.b16 %v3522
        %v4227 = vpack.c.b16 %v3786, %v3779
        %v4228 = vpack.c.b16 %v3787, %v3780
        %v4229 = vpack.c.b16 %v3788, %v3781
        %v4230 = vpack.c.b16 %v3789, %v3782
        %v4231 = vpack.c.b16 %v3790, %v3783
        %v4232 = vpack.c.b16 %v3791, %v3784
        %v4233 = vpack.c.b16 %v3792, %v3785
        %v4234 = vpack.c.b16 %v3800, %v3793
        %v4235 = vpack.c.b16 %v3801, %v3794
        %v4236 = vpack.c.b16 %v3802, %v3795
        %v4237 = vpack.c.b16 %v3803, %v3796
        %v4238 = vpack.c.b16 %v3804, %v3797
        %v4239 = vpack.c.b16 %v3805, %v3798
        %v4240 = vpack.c.b16 %v3806, %v3799
        %v4241 = vpack.c.b16 %v3814, %v3807
        %v4242 = vpack.c.b16 %v3815, %v3808
        %v4243 = vpack.c.b16 %v3816, %v3809
        %v4244 = vpack.c.b16 %v3817, %v3810
        %v4245 = vpack.c.b16 %v3818, %v3811
        %v4246 = vpack.c.b16 %v3819, %v3812
        %v4247 = vpack.c.b16 %v3820, %v3813
        %v4248 = vpack.c.b16 %v3828, %v3821
        %v4249 = vpack.c.b16 %v3829, %v3822
        %v4250 = vpack.c.b16 %v3830, %v3823
        %v4251 = vpack.c.b16 %v3831, %v3824
        %v4252 = vpack.c.b16 %v3832, %v3825
        %v4253 = vpack.c.b16 %v3833, %v3826
        %v4254 = vpack.c.b16 %v3834, %v3827
        %v4255 = vpack.c.b16 %v3842, %v3835
        %v4256 = vpack.c.b16 %v3843, %v3836
        %v4257 = vpack.c.b16 %v3844, %v3837
        %v4258 = vpack.c.b16 %v3845, %v3838
        %v4259 = vpack.c.b16 %v3846, %v3839
        %v4260 = vpack.c.b16 %v3847, %v3840
        %v4261 = vpack.c.b16 %v3848, %v3841
        %v4262 = vpack.c.b16 %v3856, %v3849
        %v4263 = vpack.c.b16 %v3857, %v3850
        %v4264 = vpack.c.b16 %v3858, %v3851
        %v4265 = vpack.c.b16 %v3859, %v3852
        %v4266 = vpack.c.b16 %v3860, %v3853
        %v4267 = vpack.c.b16 %v3861, %v3854
        %v4268 = vpack.c.b16 %v3862, %v3855
        %v4269 = vpack.c.b16 %v3870, %v3863
        %v4270 = vpack.c.b16 %v3871, %v3864
        %v4271 = vpack.c.b16 %v3872, %v3865
        %v4272 = vpack.c.b16 %v3873, %v3866
        %v4273 = vpack.c.b16 %v3874, %v3867
        %v4274 = vpack.c.b16 %v3875, %v3868
        %v4275 = vpack.c.b16 %v3876, %v3869
        %v4276 = vpack.c.b16 %v3884, %v3877
        %v4277 = vpack.c.b16 %v3885, %v3878
        %v4278 = vpack.c.b16 %v3886, %v3879
        %v4279 = vpack.c.b16 %v3887, %v3880
        %v4280 = vpack.c.b16 %v3888, %v3881
        %v4281 = vpack.c.b16 %v3889, %v3882
        %v4282 = vpack.c.b16 %v3890, %v3883
        %v4283 = vpack.c.b16 %v3898, %v3891
        %v4284 = vpack.c.b16 %v3899, %v3892
        %v4285 = vpack.c.b16 %v3900, %v3893
        %v4286 = vpack.c.b16 %v3901, %v3894
        %v4287 = vpack.c.b16 %v3902, %v3895
        %v4288 = vpack.c.b16 %v3903, %v3896
        %v4289 = vpack.c.b16 %v3904, %v3897
        %v4290 = vpack.c.b16 %v3912, %v3905
        %v4291 = vpack.c.b16 %v3913, %v3906
        %v4292 = vpack.c.b16 %v3914, %v3907
        %v4293 = vpack.c.b16 %v3915, %v3908
        %v4294 = vpack.c.b16 %v3916, %v3909
        %v4295 = vpack.c.b16 %v3917, %v3910
        %v4296 = vpack.c.b16 %v3918, %v3911
        %v4297 = vpack.c.b16 %v3926, %v3919
        %v4298 = vpack.c.b16 %v3927, %v3920
        %v4299 = vpack.c.b16 %v3928, %v3921
        %v4300 = vpack.c.b16 %v3929, %v3922
        %v4301 = vpack.c.b16 %v3930, %v3923
        %v4302 = vpack.c.b16 %v3931, %v3924
        %v4303 = vpack.c.b16 %v3932, %v3925
        %v4304 = vpack.c.b16 %v3940, %v3933
        %v4305 = vpack.c.b16 %v3941, %v3934
        %v4306 = vpack.c.b16 %v3942, %v3935
        %v4307 = vpack.c.b16 %v3943, %v3936
        %v4308 = vpack.c.b16 %v3944, %v3937
        %v4309 = vpack.c.b16 %v3945, %v3938
        %v4310 = vpack.c.b16 %v3946, %v3939
        %v4311 = vpack.c.b16 %v3954, %v3947
        %v4312 = vpack.c.b16 %v3955, %v3948
        %v4313 = vpack.c.b16 %v3956, %v3949
        %v4314 = vpack.c.b16 %v3957, %v3950
        %v4315 = vpack.c.b16 %v3958, %v3951
        %v4316 = vpack.c.b16 %v3959, %v3952
        %v4317 = vpack.c.b16 %v3960, %v3953
        %v4318 = vpack.c.b16 %v3968, %v3961
        %v4319 = vpack.c.b16 %v3969, %v3962
        %v4320 = vpack.c.b16 %v3970, %v3963
        %v4321 = vpack.c.b16 %v3971, %v3964
        %v4322 = vpack.c.b16 %v3972, %v3965
        %v4323 = vpack.c.b16 %v3973, %v3966
        %v4324 = vpack.c.b16 %v3974, %v3967
        %v4325 = vpack.c.b16 %v3982, %v3975
        %v4326 = vpack.c.b16 %v3983, %v3976
        %v4327 = vpack.c.b16 %v3984, %v3977
        %v4328 = vpack.c.b16 %v3985, %v3978
        %v4329 = vpack.c.b16 %v3986, %v3979
        %v4330 = vpack.c.b16 %v3987, %v3980
        %v4331 = vpack.c.b16 %v3988, %v3981
        %v4332 = vpack.c.b16 %v3996, %v3989
        %v4333 = vpack.c.b16 %v3997, %v3990
        %v4334 = vpack.c.b16 %v3998, %v3991
        %v4335 = vpack.c.b16 %v3999, %v3992
        %v4336 = vpack.c.b16 %v4000, %v3993
        %v4337 = vpack.c.b16 %v4001, %v3994
        %v4338 = vpack.c.b16 %v4002, %v3995
        %v4339 = vpack.c.b16 %v4010, %v4003
        %v4340 = vpack.c.b16 %v4011, %v4004
        %v4341 = vpack.c.b16 %v4012, %v4005
        %v4342 = vpack.c.b16 %v4013, %v4006
        %v4343 = vpack.c.b16 %v4014, %v4007
        %v4344 = vpack.c.b16 %v4015, %v4008
        %v4345 = vpack.c.b16 %v4016, %v4009
        %v4346 = vpack.c.b16 %v4024, %v4017
        %v4347 = vpack.c.b16 %v4025, %v4018
        %v4348 = vpack.c.b16 %v4026, %v4019
        %v4349 = vpack.c.b16 %v4027, %v4020
        %v4350 = vpack.c.b16 %v4028, %v4021
        %v4351 = vpack.c.b16 %v4029, %v4022
        %v4352 = vpack.c.b16 %v4030, %v4023
        %v4353 = vpack.c.b16 %v4038, %v4031
        %v4354 = vpack.c.b16 %v4039, %v4032
        %v4355 = vpack.c.b16 %v4040, %v4033
        %v4356 = vpack.c.b16 %v4041, %v4034
        %v4357 = vpack.c.b16 %v4042, %v4035
        %v4358 = vpack.c.b16 %v4043, %v4036
        %v4359 = vpack.c.b16 %v4044, %v4037
        %v4360 = vpack.c.b16 %v4052, %v4045
        %v4361 = vpack.c.b16 %v4053, %v4046
        %v4362 = vpack.c.b16 %v4054, %v4047
        %v4363 = vpack.c.b16 %v4055, %v4048
        %v4364 = vpack.c.b16 %v4056, %v4049
        %v4365 = vpack.c.b16 %v4057, %v4050
        %v4366 = vpack.c.b16 %v4058, %v4051
        %v4367 = vpack.c.b16 %v4066, %v4059
        %v4368 = vpack.c.b16 %v4067, %v4060
        %v4369 = vpack.c.b16 %v4068, %v4061
        %v4370 = vpack.c.b16 %v4069, %v4062
        %v4371 = vpack.c.b16 %v4070, %v4063
        %v4372 = vpack.c.b16 %v4071, %v4064
        %v4373 = vpack.c.b16 %v4072, %v4065
        %v4374 = vpack.c.b16 %v4080, %v4073
        %v4375 = vpack.c.b16 %v4081, %v4074
        %v4376 = vpack.c.b16 %v4082, %v4075
        %v4377 = vpack.c.b16 %v4083, %v4076
        %v4378 = vpack.c.b16 %v4084, %v4077
        %v4379 = vpack.c.b16 %v4085, %v4078
        %v4380 = vpack.c.b16 %v4086, %v4079
        %v4381 = vpack.c.b16 %v4094, %v4087
        %v4382 = vpack.c.b16 %v4095, %v4088
        %v4383 = vpack.c.b16 %v4096, %v4089
        %v4384 = vpack.c.b16 %v4097, %v4090
        %v4385 = vpack.c.b16 %v4098, %v4091
        %v4386 = vpack.c.b16 %v4099, %v4092
        %v4387 = vpack.c.b16 %v4100, %v4093
        %v4388 = vpack.c.b16 %v4108, %v4101
        %v4389 = vpack.c.b16 %v4109, %v4102
        %v4390 = vpack.c.b16 %v4110, %v4103
        %v4391 = vpack.c.b16 %v4111, %v4104
        %v4392 = vpack.c.b16 %v4112, %v4105
        %v4393 = vpack.c.b16 %v4113, %v4106
        %v4394 = vpack.c.b16 %v4114, %v4107
        %v4395 = vpack.c.b16 %v4122, %v4115
        %v4396 = vpack.c.b16 %v4123, %v4116
        %v4397 = vpack.c.b16 %v4124, %v4117
        %v4398 = vpack.c.b16 %v4125, %v4118
        %v4399 = vpack.c.b16 %v4126, %v4119
        %v4400 = vpack.c.b16 %v4127, %v4120
        %v4401 = vpack.c.b16 %v4128, %v4121
        %v4402 = vpack.c.b16 %v4136, %v4129
        %v4403 = vpack.c.b16 %v4137, %v4130
        %v4404 = vpack.c.b16 %v4138, %v4131
        %v4405 = vpack.c.b16 %v4139, %v4132
        %v4406 = vpack.c.b16 %v4140, %v4133
        %v4407 = vpack.c.b16 %v4141, %v4134
        %v4408 = vpack.c.b16 %v4142, %v4135
        %v4409 = vpack.c.b16 %v4150, %v4143
        %v4410 = vpack.c.b16 %v4151, %v4144
        %v4411 = vpack.c.b16 %v4152, %v4145
        %v4412 = vpack.c.b16 %v4153, %v4146
        %v4413 = vpack.c.b16 %v4154, %v4147
        %v4414 = vpack.c.b16 %v4155, %v4148
        %v4415 = vpack.c.b16 %v4156, %v4149
        %v4416 = vpack.c.b16 %v4164, %v4157
        %v4417 = vpack.c.b16 %v4165, %v4158
        %v4418 = vpack.c.b16 %v4166, %v4159
        %v4419 = vpack.c.b16 %v4167, %v4160
        %v4420 = vpack.c.b16 %v4168, %v4161
        %v4421 = vpack.c.b16 %v4169, %v4162
        %v4422 = vpack.c.b16 %v4170, %v4163
        %v4423 = vpack.c.b16 %v4178, %v4171
        %v4424 = vpack.c.b16 %v4179, %v4172
        %v4425 = vpack.c.b16 %v4180, %v4173
        %v4426 = vpack.c.b16 %v4181, %v4174
        %v4427 = vpack.c.b16 %v4182, %v4175
        %v4428 = vpack.c.b16 %v4183, %v4176
        %v4429 = vpack.c.b16 %v4184, %v4177
        %v4430 = vpack.c.b16 %v4192, %v4185
        %v4431 = vpack.c.b16 %v4193, %v4186
        %v4432 = vpack.c.b16 %v4194, %v4187
        %v4433 = vpack.c.b16 %v4195, %v4188
        %v4434 = vpack.c.b16 %v4196, %v4189
        %v4435 = vpack.c.b16 %v4197, %v4190
        %v4436 = vpack.c.b16 %v4198, %v4191
        %v4437 = vpack.c.b16 %v4206, %v4199
        %v4438 = vpack.c.b16 %v4207, %v4200
        %v4439 = vpack.c.b16 %v4208, %v4201
        %v4440 = vpack.c.b16 %v4209, %v4202
        %v4441 = vpack.c.b16 %v4210, %v4203
        %v4442 = vpack.c.b16 %v4211, %v4204
        %v4443 = vpack.c.b16 %v4212, %v4205
        %v4444 = vpack.c.b16 %v4220, %v4213
        %v4445 = vpack.c.b16 %v4221, %v4214
        %v4446 = vpack.c.b16 %v4222, %v4215
        %v4447 = vpack.c.b16 %v4223, %v4216
        %v4448 = vpack.c.b16 %v4224, %v4217
        %v4449 = vpack.c.b16 %v4225, %v4218
        %v4450 = vpack.c.b16 %v4226, %v4219
        %4675 = vmatprep.subr.bf16.mxu0 %v4228
        %4676 = vmatpush1.bf16.msra.mxu0 %v4227
        %4677 = vmatprep.subr.bf16.mxu0 %v4235
        %4678 = vmatpush1.bf16.msra.mxu0 %v4234
        %4679 = vmatprep.subr.bf16.mxu0 %v4242
        %4680 = vmatpush1.bf16.msra.mxu0 %v4241
        %4681 = vmatprep.subr.bf16.mxu0 %v4249
        %4682 = vmatpush1.bf16.msra.mxu0 %v4248
        %4683 = vmatprep.subr.bf16.mxu0 %v4256
        %4684 = vmatpush1.bf16.msra.mxu0 %v4255
        %4685 = vmatprep.subr.bf16.mxu0 %v4263
        %4686 = vmatpush1.bf16.msra.mxu0 %v4262
        %4687 = vmatprep.subr.bf16.mxu0 %v4270
        %4688 = vmatpush1.bf16.msra.mxu0 %v4269
        %4689 = vmatprep.subr.bf16.mxu0 %v4277
        %4690 = vmatpush1.bf16.msra.mxu0 %v4276
        %4691 = vmatprep.subr.bf16.mxu0 %v4284
        %4692 = vmatpush1.bf16.msra.mxu0 %v4283
        %4693 = vmatprep.subr.bf16.mxu0 %v4291
        %4694 = vmatpush1.bf16.msra.mxu0 %v4290
        %4695 = vmatprep.subr.bf16.mxu0 %v4298
        %4696 = vmatpush1.bf16.msra.mxu0 %v4297
        %4697 = vmatprep.subr.bf16.mxu0 %v4305
        %4698 = vmatpush1.bf16.msra.mxu0 %v4304
        %4699 = vmatprep.subr.bf16.mxu0 %v4312
        %4700 = vmatpush1.bf16.msra.mxu0 %v4311
        %4701 = vmatprep.subr.bf16.mxu0 %v4319
        %4702 = vmatpush1.bf16.msra.mxu0 %v4318
        %4703 = vmatprep.subr.bf16.mxu0 %v4326
        %4704 = vmatpush1.bf16.msra.mxu0 %v4325
        %4705 = vmatprep.subr.bf16.mxu0 %v4333
        %4706 = vmatpush1.bf16.msra.mxu0 %v4332
        %4707 = vmatprep.mubr.bf16.mxu0 %v3264
        %4708 = vmatmul.mubr.bf16.gmra.mrb[0].mxu0 %v3263
        %v4709 = vpop.f32.mrb[0].mxu0
        %v4710 = vadd.f32 0.0, %v4709
        %v4711 = vpop.f32.mrb[0].mxu0
        %v4712 = vadd.f32 0.0, %v4711
        %v4713 = vpop.f32.mrb[0].mxu0
        %v4714 = vadd.f32 0.0, %v4713
        %v4715 = vpop.f32.mrb[0].mxu0
        %v4716 = vadd.f32 0.0, %v4715
        %4717 = vdwg.mxu0
        %4718 = vmatprep.subr.bf16.mxu0 %v4340
        %4719 = vmatpush1.bf16.msra.mxu0 %v4339
        %4720 = vmatprep.subr.bf16.mxu0 %v4347
        %4721 = vmatpush1.bf16.msra.mxu0 %v4346
        %4722 = vmatprep.subr.bf16.mxu0 %v4354
        %4723 = vmatpush1.bf16.msra.mxu0 %v4353
        %4724 = vmatprep.subr.bf16.mxu0 %v4361
        %4725 = vmatpush1.bf16.msra.mxu0 %v4360
        %4726 = vmatprep.subr.bf16.mxu0 %v4368
        %4727 = vmatpush1.bf16.msra.mxu0 %v4367
        %4728 = vmatprep.subr.bf16.mxu0 %v4375
        %4729 = vmatpush1.bf16.msra.mxu0 %v4374
        %4730 = vmatprep.subr.bf16.mxu0 %v4382
        %4731 = vmatpush1.bf16.msra.mxu0 %v4381
        %4732 = vmatprep.subr.bf16.mxu0 %v4389
        %4733 = vmatpush1.bf16.msra.mxu0 %v4388
        %4734 = vmatprep.subr.bf16.mxu0 %v4396
        %4735 = vmatpush1.bf16.msra.mxu0 %v4395
        %4736 = vmatprep.subr.bf16.mxu0 %v4403
        %4737 = vmatpush1.bf16.msra.mxu0 %v4402
        %4738 = vmatprep.subr.bf16.mxu0 %v4410
        %4739 = vmatpush1.bf16.msra.mxu0 %v4409
        %4740 = vmatprep.subr.bf16.mxu0 %v4417
        %4741 = vmatpush1.bf16.msra.mxu0 %v4416
        %4742 = vmatprep.subr.bf16.mxu0 %v4424
        %4743 = vmatpush1.bf16.msra.mxu0 %v4423
        %4744 = vmatprep.subr.bf16.mxu0 %v4431
        %4745 = vmatpush1.bf16.msra.mxu0 %v4430
        %4746 = vmatprep.subr.bf16.mxu0 %v4438
        %4747 = vmatpush1.bf16.msra.mxu0 %v4437
        %4748 = vmatprep.subr.bf16.mxu0 %v4445
        %4749 = vmatpush1.bf16.msra.mxu0 %v4444
        %4750 = vmatprep.mubr.bf16.mxu0 %v3266
        %4751 = vmatmul.mubr.bf16.gmra.mrb[0].mxu0 %v3265
        %v4752 = vpop.f32.mrb[0].mxu0
        %v4753 = vadd.f32 %v4710, %v4752
        %v4754 = vpop.f32.mrb[0].mxu0
        %v4755 = vadd.f32 %v4712, %v4754
        %v4756 = vpop.f32.mrb[0].mxu0
        %v4757 = vadd.f32 %v4714, %v4756
        %v4758 = vpop.f32.mrb[0].mxu0
        %v4759 = vadd.f32 %v4716, %v4758
        %4760 = vdwg.mxu0
        %4761 = vmatprep.subr.bf16.mxu0 %v4230
        %4762 = vmatpush1.bf16.msra.mxu0 %v4229
        %4763 = vmatprep.subr.bf16.mxu0 %v4237
        %4764 = vmatpush1.bf16.msra.mxu0 %v4236
        %4765 = vmatprep.subr.bf16.mxu0 %v4244
        %4766 = vmatpush1.bf16.msra.mxu0 %v4243
        %4767 = vmatprep.subr.bf16.mxu0 %v4251
        %4768 = vmatpush1.bf16.msra.mxu0 %v4250
        %4769 = vmatprep.subr.bf16.mxu0 %v4258
        %4770 = vmatpush1.bf16.msra.mxu0 %v4257
        %4771 = vmatprep.subr.bf16.mxu0 %v4265
        %4772 = vmatpush1.bf16.msra.mxu0 %v4264
        %4773 = vmatprep.subr.bf16.mxu0 %v4272
        %4774 = vmatpush1.bf16.msra.mxu0 %v4271
        %4775 = vmatprep.subr.bf16.mxu0 %v4279
        %4776 = vmatpush1.bf16.msra.mxu0 %v4278
        %4777 = vmatprep.subr.bf16.mxu0 %v4286
        %4778 = vmatpush1.bf16.msra.mxu0 %v4285
        %4779 = vmatprep.subr.bf16.mxu0 %v4293
        %4780 = vmatpush1.bf16.msra.mxu0 %v4292
        %4781 = vmatprep.subr.bf16.mxu0 %v4300
        %4782 = vmatpush1.bf16.msra.mxu0 %v4299
        %4783 = vmatprep.subr.bf16.mxu0 %v4307
        %4784 = vmatpush1.bf16.msra.mxu0 %v4306
        %4785 = vmatprep.subr.bf16.mxu0 %v4314
        %4786 = vmatpush1.bf16.msra.mxu0 %v4313
        %4787 = vmatprep.subr.bf16.mxu0 %v4321
        %4788 = vmatpush1.bf16.msra.mxu0 %v4320
        %4789 = vmatprep.subr.bf16.mxu0 %v4328
        %4790 = vmatpush1.bf16.msra.mxu0 %v4327
        %4791 = vmatprep.subr.bf16.mxu0 %v4335
        %4792 = vmatpush1.bf16.msra.mxu0 %v4334
        %4793 = vmatprep.mubr.bf16.mxu0 %v3264
        %4794 = vmatmul.mubr.bf16.gmra.mrb[0].mxu0 %v3263
        %v4795 = vpop.f32.mrb[0].mxu0
        %v4796 = vadd.f32 0.0, %v4795
        %v4797 = vpop.f32.mrb[0].mxu0
        %v4798 = vadd.f32 0.0, %v4797
        %v4799 = vpop.f32.mrb[0].mxu0
        %v4800 = vadd.f32 0.0, %v4799
        %v4801 = vpop.f32.mrb[0].mxu0
        %v4802 = vadd.f32 0.0, %v4801
        %4803 = vdwg.mxu0
        %4804 = vmatprep.subr.bf16.mxu0 %v4342
        %4805 = vmatpush1.bf16.msra.mxu0 %v4341
        %4806 = vmatprep.subr.bf16.mxu0 %v4349
        %4807 = vmatpush1.bf16.msra.mxu0 %v4348
        %4808 = vmatprep.subr.bf16.mxu0 %v4356
        %4809 = vmatpush1.bf16.msra.mxu0 %v4355
        %4810 = vmatprep.subr.bf16.mxu0 %v4363
        %4811 = vmatpush1.bf16.msra.mxu0 %v4362
        %4812 = vmatprep.subr.bf16.mxu0 %v4370
        %4813 = vmatpush1.bf16.msra.mxu0 %v4369
        %4814 = vmatprep.subr.bf16.mxu0 %v4377
        %4815 = vmatpush1.bf16.msra.mxu0 %v4376
        %4816 = vmatprep.subr.bf16.mxu0 %v4384
        %4817 = vmatpush1.bf16.msra.mxu0 %v4383
        %4818 = vmatprep.subr.bf16.mxu0 %v4391
        %4819 = vmatpush1.bf16.msra.mxu0 %v4390
        %4820 = vmatprep.subr.bf16.mxu0 %v4398
        %4821 = vmatpush1.bf16.msra.mxu0 %v4397
        %4822 = vmatprep.subr.bf16.mxu0 %v4405
        %4823 = vmatpush1.bf16.msra.mxu0 %v4404
        %4824 = vmatprep.subr.bf16.mxu0 %v4412
        %4825 = vmatpush1.bf16.msra.mxu0 %v4411
        %4826 = vmatprep.subr.bf16.mxu0 %v4419
        %4827 = vmatpush1.bf16.msra.mxu0 %v4418
        %4828 = vmatprep.subr.bf16.mxu0 %v4426
        %4829 = vmatpush1.bf16.msra.mxu0 %v4425
        %4830 = vmatprep.subr.bf16.mxu0 %v4433
        %4831 = vmatpush1.bf16.msra.mxu0 %v4432
        %4832 = vmatprep.subr.bf16.mxu0 %v4440
        %4833 = vmatpush1.bf16.msra.mxu0 %v4439
        %4834 = vmatprep.subr.bf16.mxu0 %v4447
        %4835 = vmatpush1.bf16.msra.mxu0 %v4446
        %4836 = vmatprep.mubr.bf16.mxu0 %v3266
        %4837 = vmatmul.mubr.bf16.gmra.mrb[0].mxu0 %v3265
        %v4838 = vpop.f32.mrb[0].mxu0
        %v4839 = vadd.f32 %v4796, %v4838
        %v4840 = vpop.f32.mrb[0].mxu0
        %v4841 = vadd.f32 %v4798, %v4840
        %v4842 = vpop.f32.mrb[0].mxu0
        %v4843 = vadd.f32 %v4800, %v4842
        %v4844 = vpop.f32.mrb[0].mxu0
        %v4845 = vadd.f32 %v4802, %v4844
        %4846 = vdwg.mxu0
        %4847 = vmatprep.subr.bf16.mxu0 %v4232
        %4848 = vmatpush1.bf16.msra.mxu0 %v4231
        %4849 = vmatprep.subr.bf16.mxu0 %v4239
        %4850 = vmatpush1.bf16.msra.mxu0 %v4238
        %4851 = vmatprep.subr.bf16.mxu0 %v4246
        %4852 = vmatpush1.bf16.msra.mxu0 %v4245
        %4853 = vmatprep.subr.bf16.mxu0 %v4253
        %4854 = vmatpush1.bf16.msra.mxu0 %v4252
        %4855 = vmatprep.subr.bf16.mxu0 %v4260
        %4856 = vmatpush1.bf16.msra.mxu0 %v4259
        %4857 = vmatprep.subr.bf16.mxu0 %v4267
        %4858 = vmatpush1.bf16.msra.mxu0 %v4266
        %4859 = vmatprep.subr.bf16.mxu0 %v4274
        %4860 = vmatpush1.bf16.msra.mxu0 %v4273
        %4861 = vmatprep.subr.bf16.mxu0 %v4281
        %4862 = vmatpush1.bf16.msra.mxu0 %v4280
        %4863 = vmatprep.subr.bf16.mxu0 %v4288
        %4864 = vmatpush1.bf16.msra.mxu0 %v4287
        %4865 = vmatprep.subr.bf16.mxu0 %v4295
        %4866 = vmatpush1.bf16.msra.mxu0 %v4294
        %4867 = vmatprep.subr.bf16.mxu0 %v4302
        %4868 = vmatpush1.bf16.msra.mxu0 %v4301
        %4869 = vmatprep.subr.bf16.mxu0 %v4309
        %4870 = vmatpush1.bf16.msra.mxu0 %v4308
        %4871 = vmatprep.subr.bf16.mxu0 %v4316
        %4872 = vmatpush1.bf16.msra.mxu0 %v4315
        %4873 = vmatprep.subr.bf16.mxu0 %v4323
        %4874 = vmatpush1.bf16.msra.mxu0 %v4322
        %4875 = vmatprep.subr.bf16.mxu0 %v4330
        %4876 = vmatpush1.bf16.msra.mxu0 %v4329
        %4877 = vmatprep.subr.bf16.mxu0 %v4337
        %4878 = vmatpush1.bf16.msra.mxu0 %v4336
        %4879 = vmatprep.mubr.bf16.mxu0 %v3264
        %4880 = vmatmul.mubr.bf16.gmra.mrb[0].mxu0 %v3263
        %v4881 = vpop.f32.mrb[0].mxu0
        %v4882 = vadd.f32 0.0, %v4881
        %v4883 = vpop.f32.mrb[0].mxu0
        %v4884 = vadd.f32 0.0, %v4883
        %v4885 = vpop.f32.mrb[0].mxu0
        %v4886 = vadd.f32 0.0, %v4885
        %v4887 = vpop.f32.mrb[0].mxu0
        %v4888 = vadd.f32 0.0, %v4887
        %4889 = vdwg.mxu0
        %4890 = vmatprep.subr.bf16.mxu0 %v4344
        %4891 = vmatpush1.bf16.msra.mxu0 %v4343
        %4892 = vmatprep.subr.bf16.mxu0 %v4351
        %4893 = vmatpush1.bf16.msra.mxu0 %v4350
        %4894 = vmatprep.subr.bf16.mxu0 %v4358
        %4895 = vmatpush1.bf16.msra.mxu0 %v4357
        %4896 = vmatprep.subr.bf16.mxu0 %v4365
        %4897 = vmatpush1.bf16.msra.mxu0 %v4364
        %4898 = vmatprep.subr.bf16.mxu0 %v4372
        %4899 = vmatpush1.bf16.msra.mxu0 %v4371
        %4900 = vmatprep.subr.bf16.mxu0 %v4379
        %4901 = vmatpush1.bf16.msra.mxu0 %v4378
        %4902 = vmatprep.subr.bf16.mxu0 %v4386
        %4903 = vmatpush1.bf16.msra.mxu0 %v4385
        %4904 = vmatprep.subr.bf16.mxu0 %v4393
        %4905 = vmatpush1.bf16.msra.mxu0 %v4392
        %4906 = vmatprep.subr.bf16.mxu0 %v4400
        %4907 = vmatpush1.bf16.msra.mxu0 %v4399
        %4908 = vmatprep.subr.bf16.mxu0 %v4407
        %4909 = vmatpush1.bf16.msra.mxu0 %v4406
        %4910 = vmatprep.subr.bf16.mxu0 %v4414
        %4911 = vmatpush1.bf16.msra.mxu0 %v4413
        %4912 = vmatprep.subr.bf16.mxu0 %v4421
        %4913 = vmatpush1.bf16.msra.mxu0 %v4420
        %4914 = vmatprep.subr.bf16.mxu0 %v4428
        %4915 = vmatpush1.bf16.msra.mxu0 %v4427
        %4916 = vmatprep.subr.bf16.mxu0 %v4435
        %4917 = vmatpush1.bf16.msra.mxu0 %v4434
        %4918 = vmatprep.subr.bf16.mxu0 %v4442
        %4919 = vmatpush1.bf16.msra.mxu0 %v4441
        %4920 = vmatprep.subr.bf16.mxu0 %v4449
        %4921 = vmatpush1.bf16.msra.mxu0 %v4448
        %4922 = vmatprep.mubr.bf16.mxu0 %v3266
        %4923 = vmatmul.mubr.bf16.gmra.mrb[0].mxu0 %v3265
        %v4924 = vpop.f32.mrb[0].mxu0
        %v4925 = vadd.f32 %v4882, %v4924
        %v4926 = vpop.f32.mrb[0].mxu0
        %v4927 = vadd.f32 %v4884, %v4926
        %v4928 = vpop.f32.mrb[0].mxu0
        %v4929 = vadd.f32 %v4886, %v4928
        %v4930 = vpop.f32.mrb[0].mxu0
        %v4931 = vadd.f32 %v4888, %v4930
        %4932 = vdwg.mxu0
        %4933 = vmatprep.subr.bf16.mxu0 0
        %4934 = vmatpush1.bf16.msra.mxu0 %v4233
        %4935 = vmatprep.subr.bf16.mxu0 0
        %4936 = vmatpush1.bf16.msra.mxu0 %v4240
        %4937 = vmatprep.subr.bf16.mxu0 0
        %4938 = vmatpush1.bf16.msra.mxu0 %v4247
        %4939 = vmatprep.subr.bf16.mxu0 0
        %4940 = vmatpush1.bf16.msra.mxu0 %v4254
        %4941 = vmatprep.subr.bf16.mxu0 0
        %4942 = vmatpush1.bf16.msra.mxu0 %v4261
        %4943 = vmatprep.subr.bf16.mxu0 0
        %4944 = vmatpush1.bf16.msra.mxu0 %v4268
        %4945 = vmatprep.subr.bf16.mxu0 0
        %4946 = vmatpush1.bf16.msra.mxu0 %v4275
        %4947 = vmatprep.subr.bf16.mxu0 0
        %4948 = vmatpush1.bf16.msra.mxu0 %v4282
        %4949 = vmatprep.subr.bf16.mxu0 0
        %4950 = vmatpush1.bf16.msra.mxu0 %v4289
        %4951 = vmatprep.subr.bf16.mxu0 0
        %4952 = vmatpush1.bf16.msra.mxu0 %v4296
        %4953 = vmatprep.subr.bf16.mxu0 0
        %4954 = vmatpush1.bf16.msra.mxu0 %v4303
        %4955 = vmatprep.subr.bf16.mxu0 0
        %4956 = vmatpush1.bf16.msra.mxu0 %v4310
        %4957 = vmatprep.subr.bf16.mxu0 0
        %4958 = vmatpush1.bf16.msra.mxu0 %v4317
        %4959 = vmatprep.subr.bf16.mxu0 0
        %4960 = vmatpush1.bf16.msra.mxu0 %v4324
        %4961 = vmatprep.subr.bf16.mxu0 0
        %4962 = vmatpush1.bf16.msra.mxu0 %v4331
        %4963 = vmatprep.subr.bf16.mxu0 0
        %4964 = vmatpush1.bf16.msra.mxu0 %v4338
        %4965 = vmatprep.mubr.bf16.mxu0 %v3264
        %4966 = vmatmul.mubr.bf16.gmra.mrb[0].mxu0 %v3263
        %v4967 = vpop.f32.mrb[0].mxu0
        %v4968 = vadd.f32 0.0, %v4967
        %v4969 = vpop.f32.mrb[0].mxu0
        %v4970 = vpop.f32.mrb[0].mxu0
        %v4971 = vadd.f32 0.0, %v4970
        %v4972 = vpop.f32.mrb[0].mxu0
        %4973 = vdwg.mxu0
        %4974 = vmatprep.subr.bf16.mxu0 0
        %4975 = vmatpush1.bf16.msra.mxu0 %v4345
        %4976 = vmatprep.subr.bf16.mxu0 0
        %4977 = vmatpush1.bf16.msra.mxu0 %v4352
        %4978 = vmatprep.subr.bf16.mxu0 0
        %4979 = vmatpush1.bf16.msra.mxu0 %v4359
        %4980 = vmatprep.subr.bf16.mxu0 0
        %4981 = vmatpush1.bf16.msra.mxu0 %v4366
        %4982 = vmatprep.subr.bf16.mxu0 0
        %4983 = vmatpush1.bf16.msra.mxu0 %v4373
        %4984 = vmatprep.subr.bf16.mxu0 0
        %4985 = vmatpush1.bf16.msra.mxu0 %v4380
        %4986 = vmatprep.subr.bf16.mxu0 0
        %4987 = vmatpush1.bf16.msra.mxu0 %v4387
        %4988 = vmatprep.subr.bf16.mxu0 0
        %4989 = vmatpush1.bf16.msra.mxu0 %v4394
        %4990 = vmatprep.subr.bf16.mxu0 0
        %4991 = vmatpush1.bf16.msra.mxu0 %v4401
        %4992 = vmatprep.subr.bf16.mxu0 0
        %4993 = vmatpush1.bf16.msra.mxu0 %v4408
        %4994 = vmatprep.subr.bf16.mxu0 0
        %4995 = vmatpush1.bf16.msra.mxu0 %v4415
        %4996 = vmatprep.subr.bf16.mxu0 0
        %4997 = vmatpush1.bf16.msra.mxu0 %v4422
        %4998 = vmatprep.subr.bf16.mxu0 0
        %4999 = vmatpush1.bf16.msra.mxu0 %v4429
        %5000 = vmatprep.subr.bf16.mxu0 0
        %5001 = vmatpush1.bf16.msra.mxu0 %v4436
        %5002 = vmatprep.subr.bf16.mxu0 0
        %5003 = vmatpush1.bf16.msra.mxu0 %v4443
        %5004 = vmatprep.subr.bf16.mxu0 0
        %5005 = vmatpush1.bf16.msra.mxu0 %v4450
        %5006 = vmatprep.mubr.bf16.mxu0 %v3266
        %5007 = vmatmul.mubr.bf16.gmra.mrb[0].mxu0 %v3265
        %v5008 = vpop.f32.mrb[0].mxu0
        %v5009 = vadd.f32 %v4968, %v5008
        %v5010 = vpop.f32.mrb[0].mxu0
        %v5011 = vpop.f32.mrb[0].mxu0
        %v5012 = vadd.f32 %v4971, %v5011
        %v5013 = vpop.f32.mrb[0].mxu0
        %5014 = vdwg.mxu0
        %v5015 = vsub.f32 0.0, %v4753
        %v5016 = vsub.f32 0.0, %v4755
        %v5017 = vsub.f32 0.0, %v4839
        %v5018 = vsub.f32 0.0, %v4841
        %v5019 = vsub.f32 0.0, %v4925
        %v5020 = vsub.f32 0.0, %v4927
        %v5021 = vsub.f32 0.0, %v5009
        %v5022 = vsub.f32 0.0, %v4757
        %v5023 = vsub.f32 0.0, %v4759
        %v5024 = vsub.f32 0.0, %v4843
        %v5025 = vsub.f32 0.0, %v4845
        %v5026 = vsub.f32 0.0, %v4929
        %v5027 = vsub.f32 0.0, %v4931
        %v5028 = vsub.f32 0.0, %v5012
        %v5029 = vmul.f32 %v5015, 1.442695
        %v5030 = vpow.pop %v5029
        %v5031 = vmul.f32 %v5016, 1.442695
        %v5032 = vpow.pop %v5031
        %v5033 = vmul.f32 %v5017, 1.442695
        %v5034 = vpow.pop %v5033
        %v5035 = vmul.f32 %v5018, 1.442695
        %v5036 = vpow.pop %v5035
        %v5037 = vmul.f32 %v5019, 1.442695
        %v5038 = vpow.pop %v5037
        %v5039 = vmul.f32 %v5020, 1.442695
        %v5040 = vpow.pop %v5039
        %v5041 = vmul.f32 %v5021, 1.442695
        %v5042 = vpow.pop %v5041
        %v5043 = vmul.f32 %v5022, 1.442695
        %v5044 = vpow.pop %v5043
        %v5045 = vmul.f32 %v5023, 1.442695
        %v5046 = vpow.pop %v5045
        %v5047 = vmul.f32 %v5024, 1.442695
        %v5048 = vpow.pop %v5047
        %v5049 = vmul.f32 %v5025, 1.442695
        %v5050 = vpow.pop %v5049
        %v5051 = vmul.f32 %v5026, 1.442695
        %v5052 = vpow.pop %v5051
        %v5053 = vmul.f32 %v5027, 1.442695
        %v5054 = vpow.pop %v5053
        %v5055 = vmul.f32 %v5028, 1.442695
        %v5056 = vpow.pop %v5055
        %v5057 = vadd.f32 %v5030, 1.0
        %v5058 = vadd.f32 %v5032, 1.0
        %v5059 = vadd.f32 %v5034, 1.0
        %v5060 = vadd.f32 %v5036, 1.0
        %v5061 = vadd.f32 %v5038, 1.0
        %v5062 = vadd.f32 %v5040, 1.0
        %v5063 = vadd.f32 %v5042, 1.0
        %v5064 = vadd.f32 %v5044, 1.0
        %v5065 = vadd.f32 %v5046, 1.0
        %v5066 = vadd.f32 %v5048, 1.0
        %v5067 = vadd.f32 %v5050, 1.0
        %v5068 = vadd.f32 %v5052, 1.0
        %v5069 = vadd.f32 %v5054, 1.0
        %v5070 = vadd.f32 %v5056, 1.0
        %v5071 = vrcp.pop %v5057
        %v5072 = vrcp.pop %v5058
        %v5073 = vrcp.pop %v5059
        %v5074 = vrcp.pop %v5060
        %v5075 = vrcp.pop %v5061
        %v5076 = vrcp.pop %v5062
        %v5077 = vrcp.pop %v5063
        %v5078 = vrcp.pop %v5064
        %v5079 = vrcp.pop %v5065
        %v5080 = vrcp.pop %v5066
        %v5081 = vrcp.pop %v5067
        %v5082 = vrcp.pop %v5068
        %v5083 = vrcp.pop %v5069
        %v5084 = vrcp.pop %v5070
        %5085 = vst [vmem:[%s343] sm:$0xff] %v5071
        %5086 = vst [vmem:[%s343 + $0x8] sm:$0xff] %v5072
        %5087 = vst [vmem:[%s343 + $0x10] sm:$0xff] %v5073
        %5088 = vst [vmem:[%s343 + $0x18] sm:$0xff] %v5074
        %5089 = vst [vmem:[%s343 + $0x20] sm:$0xff] %v5075
        %5090 = vst [vmem:[%s343 + $0x28] sm:$0xff] %v5076
        %5091 = vst [vmem:[%s343 + $0x30] sm:$0xff] %v5077
        %5092 = vst [vmem:[%s343 + $0x38] sm:$0xff] %v5078
        %5093 = vst [vmem:[%s343 + $0x40] sm:$0xff] %v5079
        %5094 = vst [vmem:[%s343 + $0x48] sm:$0xff] %v5080
        %5095 = vst [vmem:[%s343 + $0x50] sm:$0xff] %v5081
        %5096 = vst [vmem:[%s343 + $0x58] sm:$0xff] %v5082
        %5097 = vst [vmem:[%s343 + $0x60] sm:$0xff] %v5083
        %5098 = vst [vmem:[%s343 + $0x68] sm:$0xff] %v5084
        %s5099 = sand.u32 %s165, 1
        %s5100 = scalar_lea.sflag [#allocation4], %s5099
        %s5101 = sand.u32 %s165, 1
        %s5102 = smul.addr %s5101, 112
        %s5103 = scalar_lea.vmem [#allocation13], %s5102
        // Predicated region
        $region69: #{tpu_custom_call.1} parent=43 // pred_check
          %p5104 = pneg %p175
        $region70: #{tpu_custom_call.1} parent=43 // pred_check_branch
          %5106 = sbr.rel (%p5104) target = $region72
        $region71: #{tpu_custom_call.1} parent=43 // pred_region
          %s5107 = smul.u32 2, %s26
          %s5109 = ssub.s32 1792, 1792
          %5110 = vsyncadd %s5100, %s5109
          %s5111 = smul.addr %s5107, 7
          %s5112 = smul.addr %s5111, 128
          %s5113 = scalar_lea.hbm %s6, %s5112
          %s5114 = sshll.u32 %s5103, 4
          %s5115 = int_to_ptr.vmem [resolvable:$true] %s5114
          %5120 = dma.vmem_to_hbm [thread:$0]  %s5115, 1792, %s5113, %s5100, 896, 896, 56
        $region72: #{tpu_custom_call.1} parent=43 // pred_fallthru
          _
      $region44: #{tpu_custom_call.1} parent=5 // pred_fallthru
        _
      %p5121 = scmp.le.s32.totalorder 2, %s21
      // Predicated region
      $region73: #{tpu_custom_call.1} parent=5 // pred_check
        %p5122 = pneg %p5121
      $region74: #{tpu_custom_call.1} parent=5 // pred_check_branch
        %5124 = sbr.rel (%p5122) target = $region76
      $region75: #{tpu_custom_call.1} parent=5 // pred_region
        %s5125 = ssub.s32 %s21, 2
        // Predicated region
        $region77: #{tpu_custom_call.1} parent=75 // pred_check
          %p5126 = pneg %p181
        $region78: #{tpu_custom_call.1} parent=75 // pred_check_branch
          %5128 = sbr.rel (%p5126) target = $region80
        $region79: #{tpu_custom_call.1} parent=75 // pred_region
          %s5129 = sand.u32 %s166, 1
          %s5130 = scalar_lea.sflag [#allocation4], %s5129
          %s5131 = sand.u32 %s166, 1
          %s5132 = smul.addr %s5131, 112
          %s5133 = scalar_lea.vmem [#allocation13], %s5132
          %5134 = dma.done %s5130, 1792
        $region80: #{tpu_custom_call.1} parent=75 // pred_fallthru
          _
      $region76: #{tpu_custom_call.1} parent=5 // pred_fallthru
        _
    $region6: #{tpu_custom_call.1} parent=1 // loop_footer
      %s25 = sadd.s32 1, %s21
    $region7: #{tpu_custom_call.1} parent=1 // loop_footer_branch
      %20 = sbr.rel target = $region3
    $region8: #{tpu_custom_call.1} parent=1 // loop_exit
      _
    %5135 = vsyncpa [#allocation3], 1
    %s5136 = scalar_lea.sflag [#allocation3], 1
    %5137 = vsyncpa %s5136, 1
    %5138 = vsyncpa [#allocation6], 1
    %5139 = vsyncpa [#allocation9], 1
    %5140 = vsyncpa [#allocation12], 1
    %5141 = vsyncpa [#allocation4], 1
    %s5142 = scalar_lea.sflag [#allocation4], 1
    %5143 = vsyncpa %s5142, 1

</llo_original>
